<compile_context>
chip_gen: v5e
topology: v5e:2x2
jax: 0.10.0
libtpu: 0.0.40
codegen_flags: <defaults>
</compile_context>

<pallas_src>
import functools
import math

import jax
import jax.numpy as jnp
from jax import lax
from jax.experimental import pallas as pl
from jax.experimental.pallas import tpu as pltpu


# ----------------------------------------------------------------------------
# Fused whole-model Pallas kernel
# ----------------------------------------------------------------------------
def _layer_norm(x, g, b, eps=1e-12):
    mean = jnp.mean(x, axis=-1, keepdims=True)
    var = jnp.mean((x - mean) ** 2, axis=-1, keepdims=True)
    return (x - mean) * lax.rsqrt(var + eps) * g + b


def _fused_bert_kernel(
    ids_ref, mask_ref, we_ref, pt_ref, eg_ref, eb_ref,
    wq_ref, bq_ref, wk_ref, bk_ref, wv_ref, bv_ref, wo_ref, bo_ref,
    g1_ref, b1_ref, wi_ref, bi_ref, wp_ref, bp_ref, g2_ref, b2_ref,
    pw_ref, pb_ref, fw_ref, fb_ref,
    seq_ref, pooled_ref, logits_ref, *rest,
    num_layers, batch, seq_len, num_heads):
    f32 = jnp.float32
    attn_refs = rest[:num_layers]
    emb_ref = rest[num_layers]                 # VMEM scratch (B*S, H)

    # ---- in-kernel word-embedding gather (ids live in SMEM) ----------------
    for t in range(batch * seq_len):
        tok = ids_ref[t // seq_len, t % seq_len]               # SMEM scalar
        emb_ref[pl.ds(t, 1), :] = we_ref[pl.ds(tok, 1), :]     # dynamic row copy
    # pos + token-type(=0) embeddings pre-folded into one additive table.
    h = _layer_norm(emb_ref[...] + pt_ref[...], eg_ref[...], eb_ref[...])

    # ---- additive attention bias from mask, computed in-kernel -------------
    bias = (1.0 - mask_ref[...].astype(f32)) * (-10000.0)      # (B, S)

    for l in range(num_layers):
        attn_rows = []
        for b in range(batch):
            r0 = b * seq_len
            hb = h[r0:r0 + seq_len, :]                         # (S, H) sublane slice
            bias_b = bias[b:b + 1, :]                          # (1, S) over keys
            acc = None
            for hd in range(num_heads):
                # Per-head projections: MXU does the "head slicing".
                q = jnp.dot(hb, wq_ref[l, hd], preferred_element_type=f32) + bq_ref[l, hd]
                k = jnp.dot(hb, wk_ref[l, hd], preferred_element_type=f32) + bk_ref[l, hd]
                v = jnp.dot(hb, wv_ref[l, hd], preferred_element_type=f32) + bv_ref[l, hd]
                # 1/sqrt(dh) already folded into wq/bq at pack time.
                s = lax.dot_general(q, k, (((1,), (1,)), ((), ())),
                                    preferred_element_type=f32) + bias_b
                s = s - jnp.max(s, axis=-1, keepdims=True)
                e = jnp.exp(s)
                p = e / jnp.sum(e, axis=-1, keepdims=True)     # exact probs (user-visible)
                attn_refs[l][b, hd, :, :] = p
                ctx = jnp.dot(p, v, preferred_element_type=f32)                 # (S, dh)
                contrib = jnp.dot(ctx, wo_ref[l, hd], preferred_element_type=f32)  # (S, H)
                acc = contrib if acc is None else acc + contrib
            attn_rows.append(acc)
        attn_out = jnp.concatenate(attn_rows, axis=0) + bo_ref[l]   # (B*S, H), sublane concat
        h = _layer_norm(attn_out + h, g1_ref[l], b1_ref[l])

        # ---- feed forward ----
        inter = jnp.dot(h, wi_ref[l], preferred_element_type=f32) + bi_ref[l]
        # TODO(synk): HF BERT default GELU is the exact erf form; tanh approximation
        # kept for Mosaic-safe lowering (small numeric difference).
        inter = jax.nn.gelu(inter, approximate=True)
        ffn = jnp.dot(inter, wp_ref[l], preferred_element_type=f32) + bp_ref[l]
        h = _layer_norm(ffn + h, g2_ref[l], b2_ref[l])

    # ---- outputs: sequence (B,S,H), pooled CLS dense+tanh, classifier ------
    for b in range(batch):
        seq_ref[b] = h[b * seq_len:(b + 1) * seq_len, :]
    emb_ref[...] = h                                           # reuse scratch as 2-D staging
    cls = emb_ref[pl.ds(0, batch, stride=seq_len), :]          # strided CLS-row read (B, H)
    pooled = jnp.tanh(jnp.dot(cls, pw_ref[...], preferred_element_type=f32) + pb_ref[...])
    pooled_ref[...] = pooled
    logits_ref[...] = (jnp.dot(pooled, fw_ref[...], preferred_element_type=f32)
                       + fb_ref[...])


# ----------------------------------------------------------------------------
# Config / parameters (frozen, deterministic weights)
# ----------------------------------------------------------------------------
class Config:
    vocab_size = 64
    hidden_size = 32
    num_heads = 2
    num_layers = 2
    intermediate_size = 64
    max_position = 16
    type_vocab_size = 2
    num_classes = 3
    with_linguistic_information_embedding_layer = False
    with_linguistic_information_selfattention_layer = False


def init_params(cfg, key):
    def nrm(k, shape):
        return jax.random.normal(k, shape, dtype=jnp.float32) * 0.02

    keys = iter(jax.random.split(key, 64))
    H, I = cfg.hidden_size, cfg.intermediate_size
    p = {
        "word_emb": nrm(next(keys), (cfg.vocab_size, H)),
        "pos_emb": nrm(next(keys), (cfg.max_position, H)),
        "type_emb": nrm(next(keys), (cfg.type_vocab_size, H)),
        "emb_ln_g": jnp.ones((H,), jnp.float32),
        "emb_ln_b": jnp.zeros((H,), jnp.float32),
        "pool_w": nrm(next(keys), (H, H)),
        "pool_b": jnp.zeros((H,), jnp.float32),
        "fc_w": nrm(next(keys), (H, cfg.num_classes)),
        "fc_b": jnp.zeros((cfg.num_classes,), jnp.float32),
        "layers": [],
    }
    for _ in range(cfg.num_layers):
        layer = {
            "wq": nrm(next(keys), (H, H)), "bq": jnp.zeros((H,), jnp.float32),
            "wk": nrm(next(keys), (H, H)), "bk": jnp.zeros((H,), jnp.float32),
            "wv": nrm(next(keys), (H, H)), "bv": jnp.zeros((H,), jnp.float32),
            "wo": nrm(next(keys), (H, H)), "bo": jnp.zeros((H,), jnp.float32),
            "ln1_g": jnp.ones((H,), jnp.float32), "ln1_b": jnp.zeros((H,), jnp.float32),
            "wi": nrm(next(keys), (H, I)), "bi": jnp.zeros((I,), jnp.float32),
            "wp": nrm(next(keys), (I, H)), "bp": jnp.zeros((H,), jnp.float32),
            "ln2_g": jnp.ones((H,), jnp.float32), "ln2_b": jnp.zeros((H,), jnp.float32),
        }
        p["layers"].append(layer)
    return p


def pack_params(params, cfg, batch, seq_len):
    """Per-head weight packing, scale folding and pos/type table pre-folding."""
    H, I, C = cfg.hidden_size, cfg.intermediate_size, cfg.num_classes
    nh = cfg.num_heads
    dh = H // nh
    scale = 1.0 / math.sqrt(dh)
    layers = params["layers"]

    def heads_cols(w):      # (H, H) -> (nh, H, dh): split output columns per head
        return jnp.stack([w[:, i * dh:(i + 1) * dh] for i in range(nh)])

    def heads_rows(w):      # (H, H) -> (nh, dh, H): split input rows per head (wo)
        return jnp.stack([w[i * dh:(i + 1) * dh, :] for i in range(nh)])

    def heads_bias(b):      # (H,) -> (nh, 1, dh)
        return jnp.stack([b[i * dh:(i + 1) * dh].reshape(1, dh) for i in range(nh)])

    # token_type_ids is always 0 -> fold pos_emb + type_emb[0] into one table,
    # tiled to (B*S, H) so the kernel does a single add.
    pos_type = (params["pos_emb"][:seq_len] + params["type_emb"][0:1]).astype(jnp.float32)
    pos_type = jnp.tile(pos_type, (batch, 1))

    return {
        "word_emb": params["word_emb"].astype(jnp.float32),
        "pos_type": pos_type,
        "emb_ln_g": params["emb_ln_g"].reshape(1, H),
        "emb_ln_b": params["emb_ln_b"].reshape(1, H),
        "wq": jnp.stack([heads_cols(lp["wq"]) for lp in layers]) * scale,   # (L,nh,H,dh)
        "bq": jnp.stack([heads_bias(lp["bq"]) for lp in layers]) * scale,   # (L,nh,1,dh)
        "wk": jnp.stack([heads_cols(lp["wk"]) for lp in layers]),
        "bk": jnp.stack([heads_bias(lp["bk"]) for lp in layers]),
        "wv": jnp.stack([heads_cols(lp["wv"]) for lp in layers]),
        "bv": jnp.stack([heads_bias(lp["bv"]) for lp in layers]),
        "wo": jnp.stack([heads_rows(lp["wo"]) for lp in layers]),           # (L,nh,dh,H)
        "bo": jnp.stack([lp["bo"].reshape(1, H) for lp in layers]),
        "ln1_g": jnp.stack([lp["ln1_g"].reshape(1, H) for lp in layers]),
        "ln1_b": jnp.stack([lp["ln1_b"].reshape(1, H) for lp in layers]),
        "wi": jnp.stack([lp["wi"] for lp in layers]),
        "bi": jnp.stack([lp["bi"].reshape(1, I) for lp in layers]),
        "wp": jnp.stack([lp["wp"] for lp in layers]),
        "bp": jnp.stack([lp["bp"].reshape(1, H) for lp in layers]),
        "ln2_g": jnp.stack([lp["ln2_g"].reshape(1, H) for lp in layers]),
        "ln2_b": jnp.stack([lp["ln2_b"].reshape(1, H) for lp in layers]),
        "pool_w": params["pool_w"],
        "pool_b": params["pool_b"].reshape(1, H),
        "fc_w": params["fc_w"],
        "fc_b": params["fc_b"].reshape(1, C),
    }


# ----------------------------------------------------------------------------
# Forward
# ----------------------------------------------------------------------------
def bert_forward(packed, cfg, input_ids, attention_mask):
    B, S = input_ids.shape
    H, nh, L, C = cfg.hidden_size, cfg.num_heads, cfg.num_layers, cfg.num_classes

    out_shape = (
        jax.ShapeDtypeStruct((B, S, H), jnp.float32),                  # sequence output
        jax.ShapeDtypeStruct((B, H), jnp.float32),                     # pooled
        jax.ShapeDtypeStruct((B, C), jnp.float32),                     # logits
    ) + tuple(jax.ShapeDtypeStruct((B, nh, S, S), jnp.float32) for _ in range(L))

    smem = pl.BlockSpec(memory_space=pltpu.MemorySpace.SMEM)
    vmem = pl.BlockSpec(memory_space=pltpu.MemorySpace.VMEM)
    kernel = functools.partial(
        _fused_bert_kernel,
        num_layers=L, batch=B, seq_len=S, num_heads=nh)

    results = pl.pallas_call(
        kernel,
        out_shape=out_shape,
        in_specs=[smem] + [vmem] * 25,
        out_specs=tuple([vmem] * (3 + L)),
        scratch_shapes=[pltpu.VMEM((B * S, H), jnp.float32)],
    )(input_ids, attention_mask,
      packed["word_emb"], packed["pos_type"],
      packed["emb_ln_g"], packed["emb_ln_b"],
      packed["wq"], packed["bq"], packed["wk"], packed["bk"],
      packed["wv"], packed["bv"], packed["wo"], packed["bo"],
      packed["ln1_g"], packed["ln1_b"],
      packed["wi"], packed["bi"], packed["wp"], packed["bp"],
      packed["ln2_g"], packed["ln2_b"],
      packed["pool_w"], packed["pool_b"], packed["fc_w"], packed["fc_b"])

    seq_out, pooled, logits = results[0], results[1], results[2]
    attentions = tuple(results[3:])                # already (B, nh, S, S), no reshape
    return seq_out, pooled, attentions, logits


def model_forward(packed, cfg, x):
    context, mask = x[0], x[1]
    # token_type_ids = zeros -> folded into the pos_type table at pack time.
    seq_out, pooled, attentions, logits = bert_forward(packed, cfg, context, mask)
    outs = (seq_out, pooled, attentions)           # mirrors HF output_attentions=True
    return outs, logits                            # logits = self.fc(pooled)


# ----------------------------------------------------------------------------
if __name__ == "__main__":
    cfg = Config()
    B, S = 2, 8

    key = jax.random.PRNGKey(0)
    k_param, k_ids = jax.random.split(key)
    params = init_params(cfg, k_param)
    packed = pack_params(params, cfg, B, S)

    input_ids = jax.random.randint(k_ids, (B, S), 0, cfg.vocab_size, dtype=jnp.int32)
    attention_mask = jnp.ones((B, S), jnp.float32).at[1, 6:].set(0.0)  # some padding

    fwd = jax.jit(lambda pk, ids, m: model_forward(pk, cfg, (ids, m)))
    outs, logits = fwd(packed, input_ids, attention_mask)

    jax.block_until_ready(logits)
    jax.block_until_ready(outs[0])
    jax.block_until_ready(outs[1])
    for a in outs[2]:
        jax.block_until_ready(a)

    assert logits.shape == (B, cfg.num_classes)
    assert outs[0].shape == (B, S, cfg.hidden_size)
    assert outs[1].shape == (B, cfg.hidden_size)
    for a in outs[2]:
        assert a.shape == (B, cfg.num_heads, S, S)
    print("KERNEL_OK")
</pallas_src>

<mosaic_0001>
module attributes {stable_mosaic.version = 11 : i64} {
  func.func @_fused_bert_kernel(%arg0: memref<2x8xi32, #tpu.memory_space<smem>>, %arg1: memref<2x8xf32, #tpu.memory_space<vmem>>, %arg2: memref<64x32xf32, #tpu.memory_space<vmem>>, %arg3: memref<16x32xf32, #tpu.memory_space<vmem>>, %arg4: memref<1x32xf32, #tpu.memory_space<vmem>>, %arg5: memref<1x32xf32, #tpu.memory_space<vmem>>, %arg6: memref<2x2x32x16xf32, #tpu.memory_space<vmem>>, %arg7: memref<2x2x1x16xf32, #tpu.memory_space<vmem>>, %arg8: memref<2x2x32x16xf32, #tpu.memory_space<vmem>>, %arg9: memref<2x2x1x16xf32, #tpu.memory_space<vmem>>, %arg10: memref<2x2x32x16xf32, #tpu.memory_space<vmem>>, %arg11: memref<2x2x1x16xf32, #tpu.memory_space<vmem>>, %arg12: memref<2x2x16x32xf32, #tpu.memory_space<vmem>>, %arg13: memref<2x1x32xf32, #tpu.memory_space<vmem>>, %arg14: memref<2x1x32xf32, #tpu.memory_space<vmem>>, %arg15: memref<2x1x32xf32, #tpu.memory_space<vmem>>, %arg16: memref<2x32x64xf32, #tpu.memory_space<vmem>>, %arg17: memref<2x1x64xf32, #tpu.memory_space<vmem>>, %arg18: memref<2x64x32xf32, #tpu.memory_space<vmem>>, %arg19: memref<2x1x32xf32, #tpu.memory_space<vmem>>, %arg20: memref<2x1x32xf32, #tpu.memory_space<vmem>>, %arg21: memref<2x1x32xf32, #tpu.memory_space<vmem>>, %arg22: memref<32x32xf32, #tpu.memory_space<vmem>>, %arg23: memref<1x32xf32, #tpu.memory_space<vmem>>, %arg24: memref<32x3xf32, #tpu.memory_space<vmem>>, %arg25: memref<1x3xf32, #tpu.memory_space<vmem>>, %arg26: memref<2x8x32xf32, #tpu.memory_space<vmem>>, %arg27: memref<2x32xf32, #tpu.memory_space<vmem>>, %arg28: memref<2x3xf32, #tpu.memory_space<vmem>>, %arg29: memref<2x2x8x8xf32, #tpu.memory_space<vmem>>, %arg30: memref<2x2x8x8xf32, #tpu.memory_space<vmem>>, %arg31: memref<16x32xf32, #tpu.memory_space<vmem>>) attributes {dimension_semantics = [], scalar_prefetch = 0 : i64, scratch_operands = 1 : i64, tpu.core_type = #tpu.core_type<tc>} {
    %c0 = arith.constant 0 : index
    %c0_0 = arith.constant 0 : index
    %0 = memref.load %arg0[%c0, %c0_0] : memref<2x8xi32, #tpu.memory_space<smem>>
    %1 = arith.index_cast %0 : i32 to index
    %c0_1 = arith.constant 0 : index
    %2 = vector.load %arg2[%1, %c0_1] : memref<64x32xf32, #tpu.memory_space<vmem>>, vector<1x32xf32>
    %c0_2 = arith.constant 0 : index
    %c0_3 = arith.constant 0 : index
    %3 = vector.load %arg31[%c0_2, %c0_3] : memref<16x32xf32, #tpu.memory_space<vmem>>, vector<1x32xf32>
    tpu.vector_store %arg31[%c0_2, %c0_3], %2 {strides = array<i32>} : memref<16x32xf32, #tpu.memory_space<vmem>>, vector<1x32xf32>,
    %c0_4 = arith.constant 0 : index
    %c1 = arith.constant 1 : index
    %4 = memref.load %arg0[%c0_4, %c1] : memref<2x8xi32, #tpu.memory_space<smem>>
    %5 = arith.index_cast %4 : i32 to index
    %c0_5 = arith.constant 0 : index
    %6 = vector.load %arg2[%5, %c0_5] : memref<64x32xf32, #tpu.memory_space<vmem>>, vector<1x32xf32>
    %c1_6 = arith.constant 1 : index
    %c0_7 = arith.constant 0 : index
    %7 = vector.load %arg31[%c1_6, %c0_7] : memref<16x32xf32, #tpu.memory_space<vmem>>, vector<1x32xf32>
    tpu.vector_store %arg31[%c1_6, %c0_7], %6 {strides = array<i32>} : memref<16x32xf32, #tpu.memory_space<vmem>>, vector<1x32xf32>,
    %c0_8 = arith.constant 0 : index
    %c2 = arith.constant 2 : index
    %8 = memref.load %arg0[%c0_8, %c2] : memref<2x8xi32, #tpu.memory_space<smem>>
    %9 = arith.index_cast %8 : i32 to index
    %c0_9 = arith.constant 0 : index
    %10 = vector.load %arg2[%9, %c0_9] : memref<64x32xf32, #tpu.memory_space<vmem>>, vector<1x32xf32>
    %c2_10 = arith.constant 2 : index
    %c0_11 = arith.constant 0 : index
    %11 = vector.load %arg31[%c2_10, %c0_11] : memref<16x32xf32, #tpu.memory_space<vmem>>, vector<1x32xf32>
    tpu.vector_store %arg31[%c2_10, %c0_11], %10 {strides = array<i32>} : memref<16x32xf32, #tpu.memory_space<vmem>>, vector<1x32xf32>,
    %c0_12 = arith.constant 0 : index
    %c3 = arith.constant 3 : index
    %12 = memref.load %arg0[%c0_12, %c3] : memref<2x8xi32, #tpu.memory_space<smem>>
    %13 = arith.index_cast %12 : i32 to index
    %c0_13 = arith.constant 0 : index
    %14 = vector.load %arg2[%13, %c0_13] : memref<64x32xf32, #tpu.memory_space<vmem>>, vector<1x32xf32>
    %c3_14 = arith.constant 3 : index
    %c0_15 = arith.constant 0 : index
    %15 = vector.load %arg31[%c3_14, %c0_15] : memref<16x32xf32, #tpu.memory_space<vmem>>, vector<1x32xf32>
    tpu.vector_store %arg31[%c3_14, %c0_15], %14 {strides = array<i32>} : memref<16x32xf32, #tpu.memory_space<vmem>>, vector<1x32xf32>,
    %c0_16 = arith.constant 0 : index
    %c4 = arith.constant 4 : index
    %16 = memref.load %arg0[%c0_16, %c4] : memref<2x8xi32, #tpu.memory_space<smem>>
    %17 = arith.index_cast %16 : i32 to index
    %c0_17 = arith.constant 0 : index
    %18 = vector.load %arg2[%17, %c0_17] : memref<64x32xf32, #tpu.memory_space<vmem>>, vector<1x32xf32>
    %c4_18 = arith.constant 4 : index
    %c0_19 = arith.constant 0 : index
    %19 = vector.load %arg31[%c4_18, %c0_19] : memref<16x32xf32, #tpu.memory_space<vmem>>, vector<1x32xf32>
    tpu.vector_store %arg31[%c4_18, %c0_19], %18 {strides = array<i32>} : memref<16x32xf32, #tpu.memory_space<vmem>>, vector<1x32xf32>,
    %c0_20 = arith.constant 0 : index
    %c5 = arith.constant 5 : index
    %20 = memref.load %arg0[%c0_20, %c5] : memref<2x8xi32, #tpu.memory_space<smem>>
    %21 = arith.index_cast %20 : i32 to index
    %c0_21 = arith.constant 0 : index
    %22 = vector.load %arg2[%21, %c0_21] : memref<64x32xf32, #tpu.memory_space<vmem>>, vector<1x32xf32>
    %c5_22 = arith.constant 5 : index
    %c0_23 = arith.constant 0 : index
    %23 = vector.load %arg31[%c5_22, %c0_23] : memref<16x32xf32, #tpu.memory_space<vmem>>, vector<1x32xf32>
    tpu.vector_store %arg31[%c5_22, %c0_23], %22 {strides = array<i32>} : memref<16x32xf32, #tpu.memory_space<vmem>>, vector<1x32xf32>,
    %c0_24 = arith.constant 0 : index
    %c6 = arith.constant 6 : index
    %24 = memref.load %arg0[%c0_24, %c6] : memref<2x8xi32, #tpu.memory_space<smem>>
    %25 = arith.index_cast %24 : i32 to index
    %c0_25 = arith.constant 0 : index
    %26 = vector.load %arg2[%25, %c0_25] : memref<64x32xf32, #tpu.memory_space<vmem>>, vector<1x32xf32>
    %c6_26 = arith.constant 6 : index
    %c0_27 = arith.constant 0 : index
    %27 = vector.load %arg31[%c6_26, %c0_27] : memref<16x32xf32, #tpu.memory_space<vmem>>, vector<1x32xf32>
    tpu.vector_store %arg31[%c6_26, %c0_27], %26 {strides = array<i32>} : memref<16x32xf32, #tpu.memory_space<vmem>>, vector<1x32xf32>,
    %c0_28 = arith.constant 0 : index
    %c7 = arith.constant 7 : index
    %28 = memref.load %arg0[%c0_28, %c7] : memref<2x8xi32, #tpu.memory_space<smem>>
    %29 = arith.index_cast %28 : i32 to index
    %c0_29 = arith.constant 0 : index
    %30 = vector.load %arg2[%29, %c0_29] : memref<64x32xf32, #tpu.memory_space<vmem>>, vector<1x32xf32>
    %c7_30 = arith.constant 7 : index
    %c0_31 = arith.constant 0 : index
    %31 = vector.load %arg31[%c7_30, %c0_31] : memref<16x32xf32, #tpu.memory_space<vmem>>, vector<1x32xf32>
    tpu.vector_store %arg31[%c7_30, %c0_31], %30 {strides = array<i32>} : memref<16x32xf32, #tpu.memory_space<vmem>>, vector<1x32xf32>,
    %c1_32 = arith.constant 1 : index
    %c0_33 = arith.constant 0 : index
    %32 = memref.load %arg0[%c1_32, %c0_33] : memref<2x8xi32, #tpu.memory_space<smem>>
    %33 = arith.index_cast %32 : i32 to index
    %c0_34 = arith.constant 0 : index
    %34 = vector.load %arg2[%33, %c0_34] : memref<64x32xf32, #tpu.memory_space<vmem>>, vector<1x32xf32>
    %c8 = arith.constant 8 : index
    %c0_35 = arith.constant 0 : index
    %35 = vector.load %arg31[%c8, %c0_35] : memref<16x32xf32, #tpu.memory_space<vmem>>, vector<1x32xf32>
    tpu.vector_store %arg31[%c8, %c0_35], %34 {strides = array<i32>} : memref<16x32xf32, #tpu.memory_space<vmem>>, vector<1x32xf32>,
    %c1_36 = arith.constant 1 : index
    %c1_37 = arith.constant 1 : index
    %36 = memref.load %arg0[%c1_36, %c1_37] : memref<2x8xi32, #tpu.memory_space<smem>>
    %37 = arith.index_cast %36 : i32 to index
    %c0_38 = arith.constant 0 : index
    %38 = vector.load %arg2[%37, %c0_38] : memref<64x32xf32, #tpu.memory_space<vmem>>, vector<1x32xf32>
    %c9 = arith.constant 9 : index
    %c0_39 = arith.constant 0 : index
    %39 = vector.load %arg31[%c9, %c0_39] : memref<16x32xf32, #tpu.memory_space<vmem>>, vector<1x32xf32>
    tpu.vector_store %arg31[%c9, %c0_39], %38 {strides = array<i32>} : memref<16x32xf32, #tpu.memory_space<vmem>>, vector<1x32xf32>,
    %c1_40 = arith.constant 1 : index
    %c2_41 = arith.constant 2 : index
    %40 = memref.load %arg0[%c1_40, %c2_41] : memref<2x8xi32, #tpu.memory_space<smem>>
    %41 = arith.index_cast %40 : i32 to index
    %c0_42 = arith.constant 0 : index
    %42 = vector.load %arg2[%41, %c0_42] : memref<64x32xf32, #tpu.memory_space<vmem>>, vector<1x32xf32>
    %c10 = arith.constant 10 : index
    %c0_43 = arith.constant 0 : index
    %43 = vector.load %arg31[%c10, %c0_43] : memref<16x32xf32, #tpu.memory_space<vmem>>, vector<1x32xf32>
    tpu.vector_store %arg31[%c10, %c0_43], %42 {strides = array<i32>} : memref<16x32xf32, #tpu.memory_space<vmem>>, vector<1x32xf32>,
    %c1_44 = arith.constant 1 : index
    %c3_45 = arith.constant 3 : index
    %44 = memref.load %arg0[%c1_44, %c3_45] : memref<2x8xi32, #tpu.memory_space<smem>>
    %45 = arith.index_cast %44 : i32 to index
    %c0_46 = arith.constant 0 : index
    %46 = vector.load %arg2[%45, %c0_46] : memref<64x32xf32, #tpu.memory_space<vmem>>, vector<1x32xf32>
    %c11 = arith.constant 11 : index
    %c0_47 = arith.constant 0 : index
    %47 = vector.load %arg31[%c11, %c0_47] : memref<16x32xf32, #tpu.memory_space<vmem>>, vector<1x32xf32>
    tpu.vector_store %arg31[%c11, %c0_47], %46 {strides = array<i32>} : memref<16x32xf32, #tpu.memory_space<vmem>>, vector<1x32xf32>,
    %c1_48 = arith.constant 1 : index
    %c4_49 = arith.constant 4 : index
    %48 = memref.load %arg0[%c1_48, %c4_49] : memref<2x8xi32, #tpu.memory_space<smem>>
    %49 = arith.index_cast %48 : i32 to index
    %c0_50 = arith.constant 0 : index
    %50 = vector.load %arg2[%49, %c0_50] : memref<64x32xf32, #tpu.memory_space<vmem>>, vector<1x32xf32>
    %c12 = arith.constant 12 : index
    %c0_51 = arith.constant 0 : index
    %51 = vector.load %arg31[%c12, %c0_51] : memref<16x32xf32, #tpu.memory_space<vmem>>, vector<1x32xf32>
    tpu.vector_store %arg31[%c12, %c0_51], %50 {strides = array<i32>} : memref<16x32xf32, #tpu.memory_space<vmem>>, vector<1x32xf32>,
    %c1_52 = arith.constant 1 : index
    %c5_53 = arith.constant 5 : index
    %52 = memref.load %arg0[%c1_52, %c5_53] : memref<2x8xi32, #tpu.memory_space<smem>>
    %53 = arith.index_cast %52 : i32 to index
    %c0_54 = arith.constant 0 : index
    %54 = vector.load %arg2[%53, %c0_54] : memref<64x32xf32, #tpu.memory_space<vmem>>, vector<1x32xf32>
    %c13 = arith.constant 13 : index
    %c0_55 = arith.constant 0 : index
    %55 = vector.load %arg31[%c13, %c0_55] : memref<16x32xf32, #tpu.memory_space<vmem>>, vector<1x32xf32>
    tpu.vector_store %arg31[%c13, %c0_55], %54 {strides = array<i32>} : memref<16x32xf32, #tpu.memory_space<vmem>>, vector<1x32xf32>,
    %c1_56 = arith.constant 1 : index
    %c6_57 = arith.constant 6 : index
    %56 = memref.load %arg0[%c1_56, %c6_57] : memref<2x8xi32, #tpu.memory_space<smem>>
    %57 = arith.index_cast %56 : i32 to index
    %c0_58 = arith.constant 0 : index
    %58 = vector.load %arg2[%57, %c0_58] : memref<64x32xf32, #tpu.memory_space<vmem>>, vector<1x32xf32>
    %c14 = arith.constant 14 : index
    %c0_59 = arith.constant 0 : index
    %59 = vector.load %arg31[%c14, %c0_59] : memref<16x32xf32, #tpu.memory_space<vmem>>, vector<1x32xf32>
    tpu.vector_store %arg31[%c14, %c0_59], %58 {strides = array<i32>} : memref<16x32xf32, #tpu.memory_space<vmem>>, vector<1x32xf32>,
    %c1_60 = arith.constant 1 : index
    %c7_61 = arith.constant 7 : index
    %60 = memref.load %arg0[%c1_60, %c7_61] : memref<2x8xi32, #tpu.memory_space<smem>>
    %61 = arith.index_cast %60 : i32 to index
    %c0_62 = arith.constant 0 : index
    %62 = vector.load %arg2[%61, %c0_62] : memref<64x32xf32, #tpu.memory_space<vmem>>, vector<1x32xf32>
    %c15 = arith.constant 15 : index
    %c0_63 = arith.constant 0 : index
    %63 = vector.load %arg31[%c15, %c0_63] : memref<16x32xf32, #tpu.memory_space<vmem>>, vector<1x32xf32>
    tpu.vector_store %arg31[%c15, %c0_63], %62 {strides = array<i32>} : memref<16x32xf32, #tpu.memory_space<vmem>>, vector<1x32xf32>,
    %c0_64 = arith.constant 0 : index
    %c0_65 = arith.constant 0 : index
    %64 = vector.load %arg31[%c0_64, %c0_65] : memref<16x32xf32, #tpu.memory_space<vmem>>, vector<16x32xf32>
    %c0_66 = arith.constant 0 : index
    %c0_67 = arith.constant 0 : index
    %65 = vector.load %arg3[%c0_66, %c0_67] : memref<16x32xf32, #tpu.memory_space<vmem>>, vector<16x32xf32>
    %66 = arith.addf %64, %65 : vector<16x32xf32>
    %c0_68 = arith.constant 0 : index
    %c0_69 = arith.constant 0 : index
    %67 = vector.load %arg4[%c0_68, %c0_69] : memref<1x32xf32, #tpu.memory_space<vmem>>, vector<1x32xf32>
    %c0_70 = arith.constant 0 : index
    %c0_71 = arith.constant 0 : index
    %68 = vector.load %arg5[%c0_70, %c0_71] : memref<1x32xf32, #tpu.memory_space<vmem>>, vector<1x32xf32>
    %cst = arith.constant dense<0.000000e+00> : vector<16xf32>
    %69 = vector.multi_reduction <add>, %66, %cst [1] : vector<16x32xf32> to vector<16xf32>
    %70 = vector.shape_cast %69 : vector<16xf32> to vector<16x1xf32>
    %cst_72 = arith.constant 3.200000e+01 : f32
    %71 = vector.broadcast %cst_72 : f32 to vector<16x1xf32>
    %72 = arith.divf %70, %71 : vector<16x1xf32>
    %73 = vector.broadcast %72 : vector<16x1xf32> to vector<16x32xf32>
    %74 = arith.subf %66, %73 : vector<16x32xf32>
    %75 = arith.mulf %74, %74 : vector<16x32xf32>
    %cst_73 = arith.constant dense<0.000000e+00> : vector<16xf32>
    %76 = vector.multi_reduction <add>, %75, %cst_73 [1] : vector<16x32xf32> to vector<16xf32>
    %77 = vector.shape_cast %76 : vector<16xf32> to vector<16x1xf32>
    %cst_74 = arith.constant 3.200000e+01 : f32
    %78 = vector.broadcast %cst_74 : f32 to vector<16x1xf32>
    %79 = arith.divf %77, %78 : vector<16x1xf32>
    %80 = vector.broadcast %72 : vector<16x1xf32> to vector<16x32xf32>
    %81 = arith.subf %66, %80 : vector<16x32xf32>
    %cst_75 = arith.constant 9.99999996E-13 : f32
    %82 = vector.broadcast %cst_75 : f32 to vector<16x1xf32>
    %83 = arith.addf %79, %82 : vector<16x1xf32>
    %84 = math.rsqrt %83 : vector<16x1xf32>
    %85 = vector.broadcast %84 : vector<16x1xf32> to vector<16x32xf32>
    %86 = arith.mulf %81, %85 : vector<16x32xf32>
    %87 = vector.broadcast %67 : vector<1x32xf32> to vector<16x32xf32>
    %88 = arith.mulf %86, %87 : vector<16x32xf32>
    %89 = vector.broadcast %68 : vector<1x32xf32> to vector<16x32xf32>
    %90 = arith.addf %88, %89 : vector<16x32xf32>
    %c0_76 = arith.constant 0 : index
    %c0_77 = arith.constant 0 : index
    %91 = vector.load %arg1[%c0_76, %c0_77] : memref<2x8xf32, #tpu.memory_space<vmem>>, vector<2x8xf32>
    %cst_78 = arith.constant 1.000000e+00 : f32
    %92 = vector.broadcast %cst_78 : f32 to vector<2x8xf32>
    %93 = arith.subf %92, %91 : vector<2x8xf32>
    %cst_79 = arith.constant -1.000000e+04 : f32
    %94 = vector.broadcast %cst_79 : f32 to vector<2x8xf32>
    %95 = arith.mulf %93, %94 : vector<2x8xf32>
    %96 = vector.extract_strided_slice %90 {offsets = [0, 0], sizes = [8, 32], strides = [1, 1]} : vector<16x32xf32> to vector<8x32xf32>
    %97 = vector.extract_strided_slice %95 {offsets = [0, 0], sizes = [1, 8], strides = [1, 1]} : vector<2x8xf32> to vector<1x8xf32>
    %c0_80 = arith.constant 0 : index
    %c0_81 = arith.constant 0 : index
    %c0_82 = arith.constant 0 : index
    %c0_83 = arith.constant 0 : index
    %98 = vector.load %arg6[%c0_80, %c0_81, %c0_82, %c0_83] : memref<2x2x32x16xf32, #tpu.memory_space<vmem>>, vector<1x1x32x16xf32>
    %99 = vector.shape_cast %98 : vector<1x1x32x16xf32> to vector<32x16xf32>
    %cst_84 = arith.constant dense<0.000000e+00> : vector<8x16xf32>
    %100 = tpu.matmul %96, %99, %cst_84 {dimension_numbers = #tpu.dot_dimension_numbers<[1], [0], [0], [1], [0, 0, 1, 1], [], []>} : vector<8x32xf32>, vector<32x16xf32>, vector<8x16xf32> -> vector<8x16xf32>
    %c0_85 = arith.constant 0 : index
    %c0_86 = arith.constant 0 : index
    %c0_87 = arith.constant 0 : index
    %c0_88 = arith.constant 0 : index
    %101 = vector.load %arg7[%c0_85, %c0_86, %c0_87, %c0_88] : memref<2x2x1x16xf32, #tpu.memory_space<vmem>>, vector<1x1x1x16xf32>
    %102 = vector.shape_cast %101 : vector<1x1x1x16xf32> to vector<1x16xf32>
    %103 = vector.broadcast %102 : vector<1x16xf32> to vector<8x16xf32>
    %104 = arith.addf %100, %103 : vector<8x16xf32>
    %c0_89 = arith.constant 0 : index
    %c0_90 = arith.constant 0 : index
    %c0_91 = arith.constant 0 : index
    %c0_92 = arith.constant 0 : index
    %105 = vector.load %arg8[%c0_89, %c0_90, %c0_91, %c0_92] : memref<2x2x32x16xf32, #tpu.memory_space<vmem>>, vector<1x1x32x16xf32>
    %106 = vector.shape_cast %105 : vector<1x1x32x16xf32> to vector<32x16xf32>
    %cst_93 = arith.constant dense<0.000000e+00> : vector<8x16xf32>
    %107 = tpu.matmul %96, %106, %cst_93 {dimension_numbers = #tpu.dot_dimension_numbers<[1], [0], [0], [1], [0, 0, 1, 1], [], []>} : vector<8x32xf32>, vector<32x16xf32>, vector<8x16xf32> -> vector<8x16xf32>
    %c0_94 = arith.constant 0 : index
    %c0_95 = arith.constant 0 : index
    %c0_96 = arith.constant 0 : index
    %c0_97 = arith.constant 0 : index
    %108 = vector.load %arg9[%c0_94, %c0_95, %c0_96, %c0_97] : memref<2x2x1x16xf32, #tpu.memory_space<vmem>>, vector<1x1x1x16xf32>
    %109 = vector.shape_cast %108 : vector<1x1x1x16xf32> to vector<1x16xf32>
    %110 = vector.broadcast %109 : vector<1x16xf32> to vector<8x16xf32>
    %111 = arith.addf %107, %110 : vector<8x16xf32>
    %c0_98 = arith.constant 0 : index
    %c0_99 = arith.constant 0 : index
    %c0_100 = arith.constant 0 : index
    %c0_101 = arith.constant 0 : index
    %112 = vector.load %arg10[%c0_98, %c0_99, %c0_100, %c0_101] : memref<2x2x32x16xf32, #tpu.memory_space<vmem>>, vector<1x1x32x16xf32>
    %113 = vector.shape_cast %112 : vector<1x1x32x16xf32> to vector<32x16xf32>
    %cst_102 = arith.constant dense<0.000000e+00> : vector<8x16xf32>
    %114 = tpu.matmul %96, %113, %cst_102 {dimension_numbers = #tpu.dot_dimension_numbers<[1], [0], [0], [1], [0, 0, 1, 1], [], []>} : vector<8x32xf32>, vector<32x16xf32>, vector<8x16xf32> -> vector<8x16xf32>
    %c0_103 = arith.constant 0 : index
    %c0_104 = arith.constant 0 : index
    %c0_105 = arith.constant 0 : index
    %c0_106 = arith.constant 0 : index
    %115 = vector.load %arg11[%c0_103, %c0_104, %c0_105, %c0_106] : memref<2x2x1x16xf32, #tpu.memory_space<vmem>>, vector<1x1x1x16xf32>
    %116 = vector.shape_cast %115 : vector<1x1x1x16xf32> to vector<1x16xf32>
    %117 = vector.broadcast %116 : vector<1x16xf32> to vector<8x16xf32>
    %118 = arith.addf %114, %117 : vector<8x16xf32>
    %cst_107 = arith.constant dense<0.000000e+00> : vector<8x8xf32>
    %119 = tpu.matmul %104, %111, %cst_107 {dimension_numbers = #tpu.dot_dimension_numbers<[1], [1], [0], [0], [0, 0, 1, 0], [], []>} : vector<8x16xf32>, vector<8x16xf32>, vector<8x8xf32> -> vector<8x8xf32>
    %120 = vector.broadcast %97 : vector<1x8xf32> to vector<8x8xf32>
    %121 = arith.addf %119, %120 : vector<8x8xf32>
    %cst_108 = arith.constant dense<0xFF800000> : vector<8xf32>
    %122 = vector.multi_reduction <maximumf>, %121, %cst_108 [1] : vector<8x8xf32> to vector<8xf32>
    %123 = vector.shape_cast %122 : vector<8xf32> to vector<8x1xf32>
    %124 = vector.broadcast %123 : vector<8x1xf32> to vector<8x8xf32>
    %125 = arith.subf %121, %124 : vector<8x8xf32>
    %126 = math.exp %125 : vector<8x8xf32>
    %cst_109 = arith.constant dense<0.000000e+00> : vector<8xf32>
    %127 = vector.multi_reduction <add>, %126, %cst_109 [1] : vector<8x8xf32> to vector<8xf32>
    %128 = vector.shape_cast %127 : vector<8xf32> to vector<8x1xf32>
    %129 = vector.broadcast %128 : vector<8x1xf32> to vector<8x8xf32>
    %130 = arith.divf %126, %129 : vector<8x8xf32>
    %c0_110 = arith.constant 0 : index
    %c0_111 = arith.constant 0 : index
    %c0_112 = arith.constant 0 : index
    %c0_113 = arith.constant 0 : index
    %131 = vector.load %arg29[%c0_110, %c0_111, %c0_112, %c0_113] : memref<2x2x8x8xf32, #tpu.memory_space<vmem>>, vector<1x1x8x8xf32>
    %132 = vector.shape_cast %131 : vector<1x1x8x8xf32> to vector<8x8xf32>
    %133 = vector.shape_cast %130 : vector<8x8xf32> to vector<1x1x8x8xf32>
    tpu.vector_store %arg29[%c0_110, %c0_111, %c0_112, %c0_113], %133 {strides = array<i32>} : memref<2x2x8x8xf32, #tpu.memory_space<vmem>>, vector<1x1x8x8xf32>,
    %cst_114 = arith.constant dense<0.000000e+00> : vector<8x16xf32>
    %134 = tpu.matmul %130, %118, %cst_114 {dimension_numbers = #tpu.dot_dimension_numbers<[1], [0], [0], [1], [0, 0, 1, 1], [], []>} : vector<8x8xf32>, vector<8x16xf32>, vector<8x16xf32> -> vector<8x16xf32>
    %c0_115 = arith.constant 0 : index
    %c0_116 = arith.constant 0 : index
    %c0_117 = arith.constant 0 : index
    %c0_118 = arith.constant 0 : index
    %135 = vector.load %arg12[%c0_115, %c0_116, %c0_117, %c0_118] : memref<2x2x16x32xf32, #tpu.memory_space<vmem>>, vector<1x1x16x32xf32>
    %136 = vector.shape_cast %135 : vector<1x1x16x32xf32> to vector<16x32xf32>
    %cst_119 = arith.constant dense<0.000000e+00> : vector<8x32xf32>
    %137 = tpu.matmul %134, %136, %cst_119 {dimension_numbers = #tpu.dot_dimension_numbers<[1], [0], [0], [1], [0, 0, 1, 1], [], []>} : vector<8x16xf32>, vector<16x32xf32>, vector<8x32xf32> -> vector<8x32xf32>
    %c0_120 = arith.constant 0 : index
    %c1_121 = arith.constant 1 : index
    %c0_122 = arith.constant 0 : index
    %c0_123 = arith.constant 0 : index
    %138 = vector.load %arg6[%c0_120, %c1_121, %c0_122, %c0_123] : memref<2x2x32x16xf32, #tpu.memory_space<vmem>>, vector<1x1x32x16xf32>
    %139 = vector.shape_cast %138 : vector<1x1x32x16xf32> to vector<32x16xf32>
    %cst_124 = arith.constant dense<0.000000e+00> : vector<8x16xf32>
    %140 = tpu.matmul %96, %139, %cst_124 {dimension_numbers = #tpu.dot_dimension_numbers<[1], [0], [0], [1], [0, 0, 1, 1], [], []>} : vector<8x32xf32>, vector<32x16xf32>, vector<8x16xf32> -> vector<8x16xf32>
    %c0_125 = arith.constant 0 : index
    %c1_126 = arith.constant 1 : index
    %c0_127 = arith.constant 0 : index
    %c0_128 = arith.constant 0 : index
    %141 = vector.load %arg7[%c0_125, %c1_126, %c0_127, %c0_128] : memref<2x2x1x16xf32, #tpu.memory_space<vmem>>, vector<1x1x1x16xf32>
    %142 = vector.shape_cast %141 : vector<1x1x1x16xf32> to vector<1x16xf32>
    %143 = vector.broadcast %142 : vector<1x16xf32> to vector<8x16xf32>
    %144 = arith.addf %140, %143 : vector<8x16xf32>
    %c0_129 = arith.constant 0 : index
    %c1_130 = arith.constant 1 : index
    %c0_131 = arith.constant 0 : index
    %c0_132 = arith.constant 0 : index
    %145 = vector.load %arg8[%c0_129, %c1_130, %c0_131, %c0_132] : memref<2x2x32x16xf32, #tpu.memory_space<vmem>>, vector<1x1x32x16xf32>
    %146 = vector.shape_cast %145 : vector<1x1x32x16xf32> to vector<32x16xf32>
    %cst_133 = arith.constant dense<0.000000e+00> : vector<8x16xf32>
    %147 = tpu.matmul %96, %146, %cst_133 {dimension_numbers = #tpu.dot_dimension_numbers<[1], [0], [0], [1], [0, 0, 1, 1], [], []>} : vector<8x32xf32>, vector<32x16xf32>, vector<8x16xf32> -> vector<8x16xf32>
    %c0_134 = arith.constant 0 : index
    %c1_135 = arith.constant 1 : index
    %c0_136 = arith.constant 0 : index
    %c0_137 = arith.constant 0 : index
    %148 = vector.load %arg9[%c0_134, %c1_135, %c0_136, %c0_137] : memref<2x2x1x16xf32, #tpu.memory_space<vmem>>, vector<1x1x1x16xf32>
    %149 = vector.shape_cast %148 : vector<1x1x1x16xf32> to vector<1x16xf32>
    %150 = vector.broadcast %149 : vector<1x16xf32> to vector<8x16xf32>
    %151 = arith.addf %147, %150 : vector<8x16xf32>
    %c0_138 = arith.constant 0 : index
    %c1_139 = arith.constant 1 : index
    %c0_140 = arith.constant 0 : index
    %c0_141 = arith.constant 0 : index
    %152 = vector.load %arg10[%c0_138, %c1_139, %c0_140, %c0_141] : memref<2x2x32x16xf32, #tpu.memory_space<vmem>>, vector<1x1x32x16xf32>
    %153 = vector.shape_cast %152 : vector<1x1x32x16xf32> to vector<32x16xf32>
    %cst_142 = arith.constant dense<0.000000e+00> : vector<8x16xf32>
    %154 = tpu.matmul %96, %153, %cst_142 {dimension_numbers = #tpu.dot_dimension_numbers<[1], [0], [0], [1], [0, 0, 1, 1], [], []>} : vector<8x32xf32>, vector<32x16xf32>, vector<8x16xf32> -> vector<8x16xf32>
    %c0_143 = arith.constant 0 : index
    %c1_144 = arith.constant 1 : index
    %c0_145 = arith.constant 0 : index
    %c0_146 = arith.constant 0 : index
    %155 = vector.load %arg11[%c0_143, %c1_144, %c0_145, %c0_146] : memref<2x2x1x16xf32, #tpu.memory_space<vmem>>, vector<1x1x1x16xf32>
    %156 = vector.shape_cast %155 : vector<1x1x1x16xf32> to vector<1x16xf32>
    %157 = vector.broadcast %156 : vector<1x16xf32> to vector<8x16xf32>
    %158 = arith.addf %154, %157 : vector<8x16xf32>
    %cst_147 = arith.constant dense<0.000000e+00> : vector<8x8xf32>
    %159 = tpu.matmul %144, %151, %cst_147 {dimension_numbers = #tpu.dot_dimension_numbers<[1], [1], [0], [0], [0, 0, 1, 0], [], []>} : vector<8x16xf32>, vector<8x16xf32>, vector<8x8xf32> -> vector<8x8xf32>
    %160 = vector.broadcast %97 : vector<1x8xf32> to vector<8x8xf32>
    %161 = arith.addf %159, %160 : vector<8x8xf32>
    %cst_148 = arith.constant dense<0xFF800000> : vector<8xf32>
    %162 = vector.multi_reduction <maximumf>, %161, %cst_148 [1] : vector<8x8xf32> to vector<8xf32>
    %163 = vector.shape_cast %162 : vector<8xf32> to vector<8x1xf32>
    %164 = vector.broadcast %163 : vector<8x1xf32> to vector<8x8xf32>
    %165 = arith.subf %161, %164 : vector<8x8xf32>
    %166 = math.exp %165 : vector<8x8xf32>
    %cst_149 = arith.constant dense<0.000000e+00> : vector<8xf32>
    %167 = vector.multi_reduction <add>, %166, %cst_149 [1] : vector<8x8xf32> to vector<8xf32>
    %168 = vector.shape_cast %167 : vector<8xf32> to vector<8x1xf32>
    %169 = vector.broadcast %168 : vector<8x1xf32> to vector<8x8xf32>
    %170 = arith.divf %166, %169 : vector<8x8xf32>
    %c0_150 = arith.constant 0 : index
    %c1_151 = arith.constant 1 : index
    %c0_152 = arith.constant 0 : index
    %c0_153 = arith.constant 0 : index
    %171 = vector.load %arg29[%c0_150, %c1_151, %c0_152, %c0_153] : memref<2x2x8x8xf32, #tpu.memory_space<vmem>>, vector<1x1x8x8xf32>
    %172 = vector.shape_cast %171 : vector<1x1x8x8xf32> to vector<8x8xf32>
    %173 = vector.shape_cast %170 : vector<8x8xf32> to vector<1x1x8x8xf32>
    tpu.vector_store %arg29[%c0_150, %c1_151, %c0_152, %c0_153], %173 {strides = array<i32>} : memref<2x2x8x8xf32, #tpu.memory_space<vmem>>, vector<1x1x8x8xf32>,
    %cst_154 = arith.constant dense<0.000000e+00> : vector<8x16xf32>
    %174 = tpu.matmul %170, %158, %cst_154 {dimension_numbers = #tpu.dot_dimension_numbers<[1], [0], [0], [1], [0, 0, 1, 1], [], []>} : vector<8x8xf32>, vector<8x16xf32>, vector<8x16xf32> -> vector<8x16xf32>
    %c0_155 = arith.constant 0 : index
    %c1_156 = arith.constant 1 : index
    %c0_157 = arith.constant 0 : index
    %c0_158 = arith.constant 0 : index
    %175 = vector.load %arg12[%c0_155, %c1_156, %c0_157, %c0_158] : memref<2x2x16x32xf32, #tpu.memory_space<vmem>>, vector<1x1x16x32xf32>
    %176 = vector.shape_cast %175 : vector<1x1x16x32xf32> to vector<16x32xf32>
    %cst_159 = arith.constant dense<0.000000e+00> : vector<8x32xf32>
    %177 = tpu.matmul %174, %176, %cst_159 {dimension_numbers = #tpu.dot_dimension_numbers<[1], [0], [0], [1], [0, 0, 1, 1], [], []>} : vector<8x16xf32>, vector<16x32xf32>, vector<8x32xf32> -> vector<8x32xf32>
    %178 = arith.addf %137, %177 : vector<8x32xf32>
    %179 = vector.extract_strided_slice %90 {offsets = [8, 0], sizes = [8, 32], strides = [1, 1]} : vector<16x32xf32> to vector<8x32xf32>
    %180 = vector.extract_strided_slice %95 {offsets = [1, 0], sizes = [1, 8], strides = [1, 1]} : vector<2x8xf32> to vector<1x8xf32>
    %c0_160 = arith.constant 0 : index
    %c0_161 = arith.constant 0 : index
    %c0_162 = arith.constant 0 : index
    %c0_163 = arith.constant 0 : index
    %181 = vector.load %arg6[%c0_160, %c0_161, %c0_162, %c0_163] : memref<2x2x32x16xf32, #tpu.memory_space<vmem>>, vector<1x1x32x16xf32>
    %182 = vector.shape_cast %181 : vector<1x1x32x16xf32> to vector<32x16xf32>
    %cst_164 = arith.constant dense<0.000000e+00> : vector<8x16xf32>
    %183 = tpu.matmul %179, %182, %cst_164 {dimension_numbers = #tpu.dot_dimension_numbers<[1], [0], [0], [1], [0, 0, 1, 1], [], []>} : vector<8x32xf32>, vector<32x16xf32>, vector<8x16xf32> -> vector<8x16xf32>
    %c0_165 = arith.constant 0 : index
    %c0_166 = arith.constant 0 : index
    %c0_167 = arith.constant 0 : index
    %c0_168 = arith.constant 0 : index
    %184 = vector.load %arg7[%c0_165, %c0_166, %c0_167, %c0_168] : memref<2x2x1x16xf32, #tpu.memory_space<vmem>>, vector<1x1x1x16xf32>
    %185 = vector.shape_cast %184 : vector<1x1x1x16xf32> to vector<1x16xf32>
    %186 = vector.broadcast %185 : vector<1x16xf32> to vector<8x16xf32>
    %187 = arith.addf %183, %186 : vector<8x16xf32>
    %c0_169 = arith.constant 0 : index
    %c0_170 = arith.constant 0 : index
    %c0_171 = arith.constant 0 : index
    %c0_172 = arith.constant 0 : index
    %188 = vector.load %arg8[%c0_169, %c0_170, %c0_171, %c0_172] : memref<2x2x32x16xf32, #tpu.memory_space<vmem>>, vector<1x1x32x16xf32>
    %189 = vector.shape_cast %188 : vector<1x1x32x16xf32> to vector<32x16xf32>
    %cst_173 = arith.constant dense<0.000000e+00> : vector<8x16xf32>
    %190 = tpu.matmul %179, %189, %cst_173 {dimension_numbers = #tpu.dot_dimension_numbers<[1], [0], [0], [1], [0, 0, 1, 1], [], []>} : vector<8x32xf32>, vector<32x16xf32>, vector<8x16xf32> -> vector<8x16xf32>
    %c0_174 = arith.constant 0 : index
    %c0_175 = arith.constant 0 : index
    %c0_176 = arith.constant 0 : index
    %c0_177 = arith.constant 0 : index
    %191 = vector.load %arg9[%c0_174, %c0_175, %c0_176, %c0_177] : memref<2x2x1x16xf32, #tpu.memory_space<vmem>>, vector<1x1x1x16xf32>
    %192 = vector.shape_cast %191 : vector<1x1x1x16xf32> to vector<1x16xf32>
    %193 = vector.broadcast %192 : vector<1x16xf32> to vector<8x16xf32>
    %194 = arith.addf %190, %193 : vector<8x16xf32>
    %c0_178 = arith.constant 0 : index
    %c0_179 = arith.constant 0 : index
    %c0_180 = arith.constant 0 : index
    %c0_181 = arith.constant 0 : index
    %195 = vector.load %arg10[%c0_178, %c0_179, %c0_180, %c0_181] : memref<2x2x32x16xf32, #tpu.memory_space<vmem>>, vector<1x1x32x16xf32>
    %196 = vector.shape_cast %195 : vector<1x1x32x16xf32> to vector<32x16xf32>
    %cst_182 = arith.constant dense<0.000000e+00> : vector<8x16xf32>
    %197 = tpu.matmul %179, %196, %cst_182 {dimension_numbers = #tpu.dot_dimension_numbers<[1], [0], [0], [1], [0, 0, 1, 1], [], []>} : vector<8x32xf32>, vector<32x16xf32>, vector<8x16xf32> -> vector<8x16xf32>
    %c0_183 = arith.constant 0 : index
    %c0_184 = arith.constant 0 : index
    %c0_185 = arith.constant 0 : index
    %c0_186 = arith.constant 0 : index
    %198 = vector.load %arg11[%c0_183, %c0_184, %c0_185, %c0_186] : memref<2x2x1x16xf32, #tpu.memory_space<vmem>>, vector<1x1x1x16xf32>
    %199 = vector.shape_cast %198 : vector<1x1x1x16xf32> to vector<1x16xf32>
    %200 = vector.broadcast %199 : vector<1x16xf32> to vector<8x16xf32>
    %201 = arith.addf %197, %200 : vector<8x16xf32>
    %cst_187 = arith.constant dense<0.000000e+00> : vector<8x8xf32>
    %202 = tpu.matmul %187, %194, %cst_187 {dimension_numbers = #tpu.dot_dimension_numbers<[1], [1], [0], [0], [0, 0, 1, 0], [], []>} : vector<8x16xf32>, vector<8x16xf32>, vector<8x8xf32> -> vector<8x8xf32>
    %203 = vector.broadcast %180 : vector<1x8xf32> to vector<8x8xf32>
    %204 = arith.addf %202, %203 : vector<8x8xf32>
    %cst_188 = arith.constant dense<0xFF800000> : vector<8xf32>
    %205 = vector.multi_reduction <maximumf>, %204, %cst_188 [1] : vector<8x8xf32> to vector<8xf32>
    %206 = vector.shape_cast %205 : vector<8xf32> to vector<8x1xf32>
    %207 = vector.broadcast %206 : vector<8x1xf32> to vector<8x8xf32>
    %208 = arith.subf %204, %207 : vector<8x8xf32>
    %209 = math.exp %208 : vector<8x8xf32>
    %cst_189 = arith.constant dense<0.000000e+00> : vector<8xf32>
    %210 = vector.multi_reduction <add>, %209, %cst_189 [1] : vector<8x8xf32> to vector<8xf32>
    %211 = vector.shape_cast %210 : vector<8xf32> to vector<8x1xf32>
    %212 = vector.broadcast %211 : vector<8x1xf32> to vector<8x8xf32>
    %213 = arith.divf %209, %212 : vector<8x8xf32>
    %c1_190 = arith.constant 1 : index
    %c0_191 = arith.constant 0 : index
    %c0_192 = arith.constant 0 : index
    %c0_193 = arith.constant 0 : index
    %214 = vector.load %arg29[%c1_190, %c0_191, %c0_192, %c0_193] : memref<2x2x8x8xf32, #tpu.memory_space<vmem>>, vector<1x1x8x8xf32>
    %215 = vector.shape_cast %214 : vector<1x1x8x8xf32> to vector<8x8xf32>
    %216 = vector.shape_cast %213 : vector<8x8xf32> to vector<1x1x8x8xf32>
    tpu.vector_store %arg29[%c1_190, %c0_191, %c0_192, %c0_193], %216 {strides = array<i32>} : memref<2x2x8x8xf32, #tpu.memory_space<vmem>>, vector<1x1x8x8xf32>,
    %cst_194 = arith.constant dense<0.000000e+00> : vector<8x16xf32>
    %217 = tpu.matmul %213, %201, %cst_194 {dimension_numbers = #tpu.dot_dimension_numbers<[1], [0], [0], [1], [0, 0, 1, 1], [], []>} : vector<8x8xf32>, vector<8x16xf32>, vector<8x16xf32> -> vector<8x16xf32>
    %c0_195 = arith.constant 0 : index
    %c0_196 = arith.constant 0 : index
    %c0_197 = arith.constant 0 : index
    %c0_198 = arith.constant 0 : index
    %218 = vector.load %arg12[%c0_195, %c0_196, %c0_197, %c0_198] : memref<2x2x16x32xf32, #tpu.memory_space<vmem>>, vector<1x1x16x32xf32>
    %219 = vector.shape_cast %218 : vector<1x1x16x32xf32> to vector<16x32xf32>
    %cst_199 = arith.constant dense<0.000000e+00> : vector<8x32xf32>
    %220 = tpu.matmul %217, %219, %cst_199 {dimension_numbers = #tpu.dot_dimension_numbers<[1], [0], [0], [1], [0, 0, 1, 1], [], []>} : vector<8x16xf32>, vector<16x32xf32>, vector<8x32xf32> -> vector<8x32xf32>
    %c0_200 = arith.constant 0 : index
    %c1_201 = arith.constant 1 : index
    %c0_202 = arith.constant 0 : index
    %c0_203 = arith.constant 0 : index
    %221 = vector.load %arg6[%c0_200, %c1_201, %c0_202, %c0_203] : memref<2x2x32x16xf32, #tpu.memory_space<vmem>>, vector<1x1x32x16xf32>
    %222 = vector.shape_cast %221 : vector<1x1x32x16xf32> to vector<32x16xf32>
    %cst_204 = arith.constant dense<0.000000e+00> : vector<8x16xf32>
    %223 = tpu.matmul %179, %222, %cst_204 {dimension_numbers = #tpu.dot_dimension_numbers<[1], [0], [0], [1], [0, 0, 1, 1], [], []>} : vector<8x32xf32>, vector<32x16xf32>, vector<8x16xf32> -> vector<8x16xf32>
    %c0_205 = arith.constant 0 : index
    %c1_206 = arith.constant 1 : index
    %c0_207 = arith.constant 0 : index
    %c0_208 = arith.constant 0 : index
    %224 = vector.load %arg7[%c0_205, %c1_206, %c0_207, %c0_208] : memref<2x2x1x16xf32, #tpu.memory_space<vmem>>, vector<1x1x1x16xf32>
    %225 = vector.shape_cast %224 : vector<1x1x1x16xf32> to vector<1x16xf32>
    %226 = vector.broadcast %225 : vector<1x16xf32> to vector<8x16xf32>
    %227 = arith.addf %223, %226 : vector<8x16xf32>
    %c0_209 = arith.constant 0 : index
    %c1_210 = arith.constant 1 : index
    %c0_211 = arith.constant 0 : index
    %c0_212 = arith.constant 0 : index
    %228 = vector.load %arg8[%c0_209, %c1_210, %c0_211, %c0_212] : memref<2x2x32x16xf32, #tpu.memory_space<vmem>>, vector<1x1x32x16xf32>
    %229 = vector.shape_cast %228 : vector<1x1x32x16xf32> to vector<32x16xf32>
    %cst_213 = arith.constant dense<0.000000e+00> : vector<8x16xf32>
    %230 = tpu.matmul %179, %229, %cst_213 {dimension_numbers = #tpu.dot_dimension_numbers<[1], [0], [0], [1], [0, 0, 1, 1], [], []>} : vector<8x32xf32>, vector<32x16xf32>, vector<8x16xf32> -> vector<8x16xf32>
    %c0_214 = arith.constant 0 : index
    %c1_215 = arith.constant 1 : index
    %c0_216 = arith.constant 0 : index
    %c0_217 = arith.constant 0 : index
    %231 = vector.load %arg9[%c0_214, %c1_215, %c0_216, %c0_217] : memref<2x2x1x16xf32, #tpu.memory_space<vmem>>, vector<1x1x1x16xf32>
    %232 = vector.shape_cast %231 : vector<1x1x1x16xf32> to vector<1x16xf32>
    %233 = vector.broadcast %232 : vector<1x16xf32> to vector<8x16xf32>
    %234 = arith.addf %230, %233 : vector<8x16xf32>
    %c0_218 = arith.constant 0 : index
    %c1_219 = arith.constant 1 : index
    %c0_220 = arith.constant 0 : index
    %c0_221 = arith.constant 0 : index
    %235 = vector.load %arg10[%c0_218, %c1_219, %c0_220, %c0_221] : memref<2x2x32x16xf32, #tpu.memory_space<vmem>>, vector<1x1x32x16xf32>
    %236 = vector.shape_cast %235 : vector<1x1x32x16xf32> to vector<32x16xf32>
    %cst_222 = arith.constant dense<0.000000e+00> : vector<8x16xf32>
    %237 = tpu.matmul %179, %236, %cst_222 {dimension_numbers = #tpu.dot_dimension_numbers<[1], [0], [0], [1], [0, 0, 1, 1], [], []>} : vector<8x32xf32>, vector<32x16xf32>, vector<8x16xf32> -> vector<8x16xf32>
    %c0_223 = arith.constant 0 : index
    %c1_224 = arith.constant 1 : index
    %c0_225 = arith.constant 0 : index
    %c0_226 = arith.constant 0 : index
    %238 = vector.load %arg11[%c0_223, %c1_224, %c0_225, %c0_226] : memref<2x2x1x16xf32, #tpu.memory_space<vmem>>, vector<1x1x1x16xf32>
    %239 = vector.shape_cast %238 : vector<1x1x1x16xf32> to vector<1x16xf32>
    %240 = vector.broadcast %239 : vector<1x16xf32> to vector<8x16xf32>
    %241 = arith.addf %237, %240 : vector<8x16xf32>
    %cst_227 = arith.constant dense<0.000000e+00> : vector<8x8xf32>
    %242 = tpu.matmul %227, %234, %cst_227 {dimension_numbers = #tpu.dot_dimension_numbers<[1], [1], [0], [0], [0, 0, 1, 0], [], []>} : vector<8x16xf32>, vector<8x16xf32>, vector<8x8xf32> -> vector<8x8xf32>
    %243 = vector.broadcast %180 : vector<1x8xf32> to vector<8x8xf32>
    %244 = arith.addf %242, %243 : vector<8x8xf32>
    %cst_228 = arith.constant dense<0xFF800000> : vector<8xf32>
    %245 = vector.multi_reduction <maximumf>, %244, %cst_228 [1] : vector<8x8xf32> to vector<8xf32>
    %246 = vector.shape_cast %245 : vector<8xf32> to vector<8x1xf32>
    %247 = vector.broadcast %246 : vector<8x1xf32> to vector<8x8xf32>
    %248 = arith.subf %244, %247 : vector<8x8xf32>
    %249 = math.exp %248 : vector<8x8xf32>
    %cst_229 = arith.constant dense<0.000000e+00> : vector<8xf32>
    %250 = vector.multi_reduction <add>, %249, %cst_229 [1] : vector<8x8xf32> to vector<8xf32>
    %251 = vector.shape_cast %250 : vector<8xf32> to vector<8x1xf32>
    %252 = vector.broadcast %251 : vector<8x1xf32> to vector<8x8xf32>
    %253 = arith.divf %249, %252 : vector<8x8xf32>
    %c1_230 = arith.constant 1 : index
    %c1_231 = arith.constant 1 : index
    %c0_232 = arith.constant 0 : index
    %c0_233 = arith.constant 0 : index
    %254 = vector.load %arg29[%c1_230, %c1_231, %c0_232, %c0_233] : memref<2x2x8x8xf32, #tpu.memory_space<vmem>>, vector<1x1x8x8xf32>
    %255 = vector.shape_cast %254 : vector<1x1x8x8xf32> to vector<8x8xf32>
    %256 = vector.shape_cast %253 : vector<8x8xf32> to vector<1x1x8x8xf32>
    tpu.vector_store %arg29[%c1_230, %c1_231, %c0_232, %c0_233], %256 {strides = array<i32>} : memref<2x2x8x8xf32, #tpu.memory_space<vmem>>, vector<1x1x8x8xf32>,
    %cst_234 = arith.constant dense<0.000000e+00> : vector<8x16xf32>
    %257 = tpu.matmul %253, %241, %cst_234 {dimension_numbers = #tpu.dot_dimension_numbers<[1], [0], [0], [1], [0, 0, 1, 1], [], []>} : vector<8x8xf32>, vector<8x16xf32>, vector<8x16xf32> -> vector<8x16xf32>
    %c0_235 = arith.constant 0 : index
    %c1_236 = arith.constant 1 : index
    %c0_237 = arith.constant 0 : index
    %c0_238 = arith.constant 0 : index
    %258 = vector.load %arg12[%c0_235, %c1_236, %c0_237, %c0_238] : memref<2x2x16x32xf32, #tpu.memory_space<vmem>>, vector<1x1x16x32xf32>
    %259 = vector.shape_cast %258 : vector<1x1x16x32xf32> to vector<16x32xf32>
    %cst_239 = arith.constant dense<0.000000e+00> : vector<8x32xf32>
    %260 = tpu.matmul %257, %259, %cst_239 {dimension_numbers = #tpu.dot_dimension_numbers<[1], [0], [0], [1], [0, 0, 1, 1], [], []>} : vector<8x16xf32>, vector<16x32xf32>, vector<8x32xf32> -> vector<8x32xf32>
    %261 = arith.addf %220, %260 : vector<8x32xf32>
    %262 = tpu.concatenate %178, %261 in 0 : vector<8x32xf32>, vector<8x32xf32> -> vector<16x32xf32>
    %c0_240 = arith.constant 0 : index
    %c0_241 = arith.constant 0 : index
    %c0_242 = arith.constant 0 : index
    %263 = vector.load %arg13[%c0_240, %c0_241, %c0_242] : memref<2x1x32xf32, #tpu.memory_space<vmem>>, vector<1x1x32xf32>
    %264 = vector.shape_cast %263 : vector<1x1x32xf32> to vector<1x32xf32>
    %265 = vector.broadcast %264 : vector<1x32xf32> to vector<16x32xf32>
    %266 = arith.addf %262, %265 : vector<16x32xf32>
    %267 = arith.addf %266, %90 : vector<16x32xf32>
    %c0_243 = arith.constant 0 : index
    %c0_244 = arith.constant 0 : index
    %c0_245 = arith.constant 0 : index
    %268 = vector.load %arg14[%c0_243, %c0_244, %c0_245] : memref<2x1x32xf32, #tpu.memory_space<vmem>>, vector<1x1x32xf32>
    %269 = vector.shape_cast %268 : vector<1x1x32xf32> to vector<1x32xf32>
    %c0_246 = arith.constant 0 : index
    %c0_247 = arith.constant 0 : index
    %c0_248 = arith.constant 0 : index
    %270 = vector.load %arg15[%c0_246, %c0_247, %c0_248] : memref<2x1x32xf32, #tpu.memory_space<vmem>>, vector<1x1x32xf32>
    %271 = vector.shape_cast %270 : vector<1x1x32xf32> to vector<1x32xf32>
    %cst_249 = arith.constant dense<0.000000e+00> : vector<16xf32>
    %272 = vector.multi_reduction <add>, %267, %cst_249 [1] : vector<16x32xf32> to vector<16xf32>
    %273 = vector.shape_cast %272 : vector<16xf32> to vector<16x1xf32>
    %cst_250 = arith.constant 3.200000e+01 : f32
    %274 = vector.broadcast %cst_250 : f32 to vector<16x1xf32>
    %275 = arith.divf %273, %274 : vector<16x1xf32>
    %276 = vector.broadcast %275 : vector<16x1xf32> to vector<16x32xf32>
    %277 = arith.subf %267, %276 : vector<16x32xf32>
    %278 = arith.mulf %277, %277 : vector<16x32xf32>
    %cst_251 = arith.constant dense<0.000000e+00> : vector<16xf32>
    %279 = vector.multi_reduction <add>, %278, %cst_251 [1] : vector<16x32xf32> to vector<16xf32>
    %280 = vector.shape_cast %279 : vector<16xf32> to vector<16x1xf32>
    %cst_252 = arith.constant 3.200000e+01 : f32
    %281 = vector.broadcast %cst_252 : f32 to vector<16x1xf32>
    %282 = arith.divf %280, %281 : vector<16x1xf32>
    %283 = vector.broadcast %275 : vector<16x1xf32> to vector<16x32xf32>
    %284 = arith.subf %267, %283 : vector<16x32xf32>
    %cst_253 = arith.constant 9.99999996E-13 : f32
    %285 = vector.broadcast %cst_253 : f32 to vector<16x1xf32>
    %286 = arith.addf %282, %285 : vector<16x1xf32>
    %287 = math.rsqrt %286 : vector<16x1xf32>
    %288 = vector.broadcast %287 : vector<16x1xf32> to vector<16x32xf32>
    %289 = arith.mulf %284, %288 : vector<16x32xf32>
    %290 = vector.broadcast %269 : vector<1x32xf32> to vector<16x32xf32>
    %291 = arith.mulf %289, %290 : vector<16x32xf32>
    %292 = vector.broadcast %271 : vector<1x32xf32> to vector<16x32xf32>
    %293 = arith.addf %291, %292 : vector<16x32xf32>
    %c0_254 = arith.constant 0 : index
    %c0_255 = arith.constant 0 : index
    %c0_256 = arith.constant 0 : index
    %294 = vector.load %arg16[%c0_254, %c0_255, %c0_256] : memref<2x32x64xf32, #tpu.memory_space<vmem>>, vector<1x32x64xf32>
    %295 = vector.shape_cast %294 : vector<1x32x64xf32> to vector<32x64xf32>
    %cst_257 = arith.constant dense<0.000000e+00> : vector<16x64xf32>
    %296 = tpu.matmul %293, %295, %cst_257 {dimension_numbers = #tpu.dot_dimension_numbers<[1], [0], [0], [1], [0, 0, 1, 1], [], []>} : vector<16x32xf32>, vector<32x64xf32>, vector<16x64xf32> -> vector<16x64xf32>
    %c0_258 = arith.constant 0 : index
    %c0_259 = arith.constant 0 : index
    %c0_260 = arith.constant 0 : index
    %297 = vector.load %arg17[%c0_258, %c0_259, %c0_260] : memref<2x1x64xf32, #tpu.memory_space<vmem>>, vector<1x1x64xf32>
    %298 = vector.shape_cast %297 : vector<1x1x64xf32> to vector<1x64xf32>
    %299 = vector.broadcast %298 : vector<1x64xf32> to vector<16x64xf32>
    %300 = arith.addf %296, %299 : vector<16x64xf32>
    %301 = arith.mulf %300, %300 : vector<16x64xf32>
    %302 = arith.mulf %300, %301 : vector<16x64xf32>
    %cst_261 = arith.constant 4.471500e-02 : f32
    %303 = vector.broadcast %cst_261 : f32 to vector<16x64xf32>
    %304 = arith.mulf %303, %302 : vector<16x64xf32>
    %305 = arith.addf %300, %304 : vector<16x64xf32>
    %cst_262 = arith.constant 0.797884583 : f32
    %306 = vector.broadcast %cst_262 : f32 to vector<16x64xf32>
    %307 = arith.mulf %306, %305 : vector<16x64xf32>
    %308 = math.tanh %307 : vector<16x64xf32>
    %cst_263 = arith.constant 1.000000e+00 : f32
    %309 = vector.broadcast %cst_263 : f32 to vector<16x64xf32>
    %310 = arith.addf %309, %308 : vector<16x64xf32>
    %cst_264 = arith.constant 5.000000e-01 : f32
    %311 = vector.broadcast %cst_264 : f32 to vector<16x64xf32>
    %312 = arith.mulf %311, %310 : vector<16x64xf32>
    %313 = arith.mulf %300, %312 : vector<16x64xf32>
    %c0_265 = arith.constant 0 : index
    %c0_266 = arith.constant 0 : index
    %c0_267 = arith.constant 0 : index
    %314 = vector.load %arg18[%c0_265, %c0_266, %c0_267] : memref<2x64x32xf32, #tpu.memory_space<vmem>>, vector<1x64x32xf32>
    %315 = vector.shape_cast %314 : vector<1x64x32xf32> to vector<64x32xf32>
    %cst_268 = arith.constant dense<0.000000e+00> : vector<16x32xf32>
    %316 = tpu.matmul %313, %315, %cst_268 {dimension_numbers = #tpu.dot_dimension_numbers<[1], [0], [0], [1], [0, 0, 1, 1], [], []>} : vector<16x64xf32>, vector<64x32xf32>, vector<16x32xf32> -> vector<16x32xf32>
    %c0_269 = arith.constant 0 : index
    %c0_270 = arith.constant 0 : index
    %c0_271 = arith.constant 0 : index
    %317 = vector.load %arg19[%c0_269, %c0_270, %c0_271] : memref<2x1x32xf32, #tpu.memory_space<vmem>>, vector<1x1x32xf32>
    %318 = vector.shape_cast %317 : vector<1x1x32xf32> to vector<1x32xf32>
    %319 = vector.broadcast %318 : vector<1x32xf32> to vector<16x32xf32>
    %320 = arith.addf %316, %319 : vector<16x32xf32>
    %321 = arith.addf %320, %293 : vector<16x32xf32>
    %c0_272 = arith.constant 0 : index
    %c0_273 = arith.constant 0 : index
    %c0_274 = arith.constant 0 : index
    %322 = vector.load %arg20[%c0_272, %c0_273, %c0_274] : memref<2x1x32xf32, #tpu.memory_space<vmem>>, vector<1x1x32xf32>
    %323 = vector.shape_cast %322 : vector<1x1x32xf32> to vector<1x32xf32>
    %c0_275 = arith.constant 0 : index
    %c0_276 = arith.constant 0 : index
    %c0_277 = arith.constant 0 : index
    %324 = vector.load %arg21[%c0_275, %c0_276, %c0_277] : memref<2x1x32xf32, #tpu.memory_space<vmem>>, vector<1x1x32xf32>
    %325 = vector.shape_cast %324 : vector<1x1x32xf32> to vector<1x32xf32>
    %cst_278 = arith.constant dense<0.000000e+00> : vector<16xf32>
    %326 = vector.multi_reduction <add>, %321, %cst_278 [1] : vector<16x32xf32> to vector<16xf32>
    %327 = vector.shape_cast %326 : vector<16xf32> to vector<16x1xf32>
    %cst_279 = arith.constant 3.200000e+01 : f32
    %328 = vector.broadcast %cst_279 : f32 to vector<16x1xf32>
    %329 = arith.divf %327, %328 : vector<16x1xf32>
    %330 = vector.broadcast %329 : vector<16x1xf32> to vector<16x32xf32>
    %331 = arith.subf %321, %330 : vector<16x32xf32>
    %332 = arith.mulf %331, %331 : vector<16x32xf32>
    %cst_280 = arith.constant dense<0.000000e+00> : vector<16xf32>
    %333 = vector.multi_reduction <add>, %332, %cst_280 [1] : vector<16x32xf32> to vector<16xf32>
    %334 = vector.shape_cast %333 : vector<16xf32> to vector<16x1xf32>
    %cst_281 = arith.constant 3.200000e+01 : f32
    %335 = vector.broadcast %cst_281 : f32 to vector<16x1xf32>
    %336 = arith.divf %334, %335 : vector<16x1xf32>
    %337 = vector.broadcast %329 : vector<16x1xf32> to vector<16x32xf32>
    %338 = arith.subf %321, %337 : vector<16x32xf32>
    %cst_282 = arith.constant 9.99999996E-13 : f32
    %339 = vector.broadcast %cst_282 : f32 to vector<16x1xf32>
    %340 = arith.addf %336, %339 : vector<16x1xf32>
    %341 = math.rsqrt %340 : vector<16x1xf32>
    %342 = vector.broadcast %341 : vector<16x1xf32> to vector<16x32xf32>
    %343 = arith.mulf %338, %342 : vector<16x32xf32>
    %344 = vector.broadcast %323 : vector<1x32xf32> to vector<16x32xf32>
    %345 = arith.mulf %343, %344 : vector<16x32xf32>
    %346 = vector.broadcast %325 : vector<1x32xf32> to vector<16x32xf32>
    %347 = arith.addf %345, %346 : vector<16x32xf32>
    %348 = vector.extract_strided_slice %347 {offsets = [0, 0], sizes = [8, 32], strides = [1, 1]} : vector<16x32xf32> to vector<8x32xf32>
    %349 = vector.extract_strided_slice %95 {offsets = [0, 0], sizes = [1, 8], strides = [1, 1]} : vector<2x8xf32> to vector<1x8xf32>
    %c1_283 = arith.constant 1 : index
    %c0_284 = arith.constant 0 : index
    %c0_285 = arith.constant 0 : index
    %c0_286 = arith.constant 0 : index
    %350 = vector.load %arg6[%c1_283, %c0_284, %c0_285, %c0_286] : memref<2x2x32x16xf32, #tpu.memory_space<vmem>>, vector<1x1x32x16xf32>
    %351 = vector.shape_cast %350 : vector<1x1x32x16xf32> to vector<32x16xf32>
    %cst_287 = arith.constant dense<0.000000e+00> : vector<8x16xf32>
    %352 = tpu.matmul %348, %351, %cst_287 {dimension_numbers = #tpu.dot_dimension_numbers<[1], [0], [0], [1], [0, 0, 1, 1], [], []>} : vector<8x32xf32>, vector<32x16xf32>, vector<8x16xf32> -> vector<8x16xf32>
    %c1_288 = arith.constant 1 : index
    %c0_289 = arith.constant 0 : index
    %c0_290 = arith.constant 0 : index
    %c0_291 = arith.constant 0 : index
    %353 = vector.load %arg7[%c1_288, %c0_289, %c0_290, %c0_291] : memref<2x2x1x16xf32, #tpu.memory_space<vmem>>, vector<1x1x1x16xf32>
    %354 = vector.shape_cast %353 : vector<1x1x1x16xf32> to vector<1x16xf32>
    %355 = vector.broadcast %354 : vector<1x16xf32> to vector<8x16xf32>
    %356 = arith.addf %352, %355 : vector<8x16xf32>
    %c1_292 = arith.constant 1 : index
    %c0_293 = arith.constant 0 : index
    %c0_294 = arith.constant 0 : index
    %c0_295 = arith.constant 0 : index
    %357 = vector.load %arg8[%c1_292, %c0_293, %c0_294, %c0_295] : memref<2x2x32x16xf32, #tpu.memory_space<vmem>>, vector<1x1x32x16xf32>
    %358 = vector.shape_cast %357 : vector<1x1x32x16xf32> to vector<32x16xf32>
    %cst_296 = arith.constant dense<0.000000e+00> : vector<8x16xf32>
    %359 = tpu.matmul %348, %358, %cst_296 {dimension_numbers = #tpu.dot_dimension_numbers<[1], [0], [0], [1], [0, 0, 1, 1], [], []>} : vector<8x32xf32>, vector<32x16xf32>, vector<8x16xf32> -> vector<8x16xf32>
    %c1_297 = arith.constant 1 : index
    %c0_298 = arith.constant 0 : index
    %c0_299 = arith.constant 0 : index
    %c0_300 = arith.constant 0 : index
    %360 = vector.load %arg9[%c1_297, %c0_298, %c0_299, %c0_300] : memref<2x2x1x16xf32, #tpu.memory_space<vmem>>, vector<1x1x1x16xf32>
    %361 = vector.shape_cast %360 : vector<1x1x1x16xf32> to vector<1x16xf32>
    %362 = vector.broadcast %361 : vector<1x16xf32> to vector<8x16xf32>
    %363 = arith.addf %359, %362 : vector<8x16xf32>
    %c1_301 = arith.constant 1 : index
    %c0_302 = arith.constant 0 : index
    %c0_303 = arith.constant 0 : index
    %c0_304 = arith.constant 0 : index
    %364 = vector.load %arg10[%c1_301, %c0_302, %c0_303, %c0_304] : memref<2x2x32x16xf32, #tpu.memory_space<vmem>>, vector<1x1x32x16xf32>
    %365 = vector.shape_cast %364 : vector<1x1x32x16xf32> to vector<32x16xf32>
    %cst_305 = arith.constant dense<0.000000e+00> : vector<8x16xf32>
    %366 = tpu.matmul %348, %365, %cst_305 {dimension_numbers = #tpu.dot_dimension_numbers<[1], [0], [0], [1], [0, 0, 1, 1], [], []>} : vector<8x32xf32>, vector<32x16xf32>, vector<8x16xf32> -> vector<8x16xf32>
    %c1_306 = arith.constant 1 : index
    %c0_307 = arith.constant 0 : index
    %c0_308 = arith.constant 0 : index
    %c0_309 = arith.constant 0 : index
    %367 = vector.load %arg11[%c1_306, %c0_307, %c0_308, %c0_309] : memref<2x2x1x16xf32, #tpu.memory_space<vmem>>, vector<1x1x1x16xf32>
    %368 = vector.shape_cast %367 : vector<1x1x1x16xf32> to vector<1x16xf32>
    %369 = vector.broadcast %368 : vector<1x16xf32> to vector<8x16xf32>
    %370 = arith.addf %366, %369 : vector<8x16xf32>
    %cst_310 = arith.constant dense<0.000000e+00> : vector<8x8xf32>
    %371 = tpu.matmul %356, %363, %cst_310 {dimension_numbers = #tpu.dot_dimension_numbers<[1], [1], [0], [0], [0, 0, 1, 0], [], []>} : vector<8x16xf32>, vector<8x16xf32>, vector<8x8xf32> -> vector<8x8xf32>
    %372 = vector.broadcast %349 : vector<1x8xf32> to vector<8x8xf32>
    %373 = arith.addf %371, %372 : vector<8x8xf32>
    %cst_311 = arith.constant dense<0xFF800000> : vector<8xf32>
    %374 = vector.multi_reduction <maximumf>, %373, %cst_311 [1] : vector<8x8xf32> to vector<8xf32>
    %375 = vector.shape_cast %374 : vector<8xf32> to vector<8x1xf32>
    %376 = vector.broadcast %375 : vector<8x1xf32> to vector<8x8xf32>
    %377 = arith.subf %373, %376 : vector<8x8xf32>
    %378 = math.exp %377 : vector<8x8xf32>
    %cst_312 = arith.constant dense<0.000000e+00> : vector<8xf32>
    %379 = vector.multi_reduction <add>, %378, %cst_312 [1] : vector<8x8xf32> to vector<8xf32>
    %380 = vector.shape_cast %379 : vector<8xf32> to vector<8x1xf32>
    %381 = vector.broadcast %380 : vector<8x1xf32> to vector<8x8xf32>
    %382 = arith.divf %378, %381 : vector<8x8xf32>
    %c0_313 = arith.constant 0 : index
    %c0_314 = arith.constant 0 : index
    %c0_315 = arith.constant 0 : index
    %c0_316 = arith.constant 0 : index
    %383 = vector.load %arg30[%c0_313, %c0_314, %c0_315, %c0_316] : memref<2x2x8x8xf32, #tpu.memory_space<vmem>>, vector<1x1x8x8xf32>
    %384 = vector.shape_cast %383 : vector<1x1x8x8xf32> to vector<8x8xf32>
    %385 = vector.shape_cast %382 : vector<8x8xf32> to vector<1x1x8x8xf32>
    tpu.vector_store %arg30[%c0_313, %c0_314, %c0_315, %c0_316], %385 {strides = array<i32>} : memref<2x2x8x8xf32, #tpu.memory_space<vmem>>, vector<1x1x8x8xf32>,
    %cst_317 = arith.constant dense<0.000000e+00> : vector<8x16xf32>
    %386 = tpu.matmul %382, %370, %cst_317 {dimension_numbers = #tpu.dot_dimension_numbers<[1], [0], [0], [1], [0, 0, 1, 1], [], []>} : vector<8x8xf32>, vector<8x16xf32>, vector<8x16xf32> -> vector<8x16xf32>
    %c1_318 = arith.constant 1 : index
    %c0_319 = arith.constant 0 : index
    %c0_320 = arith.constant 0 : index
    %c0_321 = arith.constant 0 : index
    %387 = vector.load %arg12[%c1_318, %c0_319, %c0_320, %c0_321] : memref<2x2x16x32xf32, #tpu.memory_space<vmem>>, vector<1x1x16x32xf32>
    %388 = vector.shape_cast %387 : vector<1x1x16x32xf32> to vector<16x32xf32>
    %cst_322 = arith.constant dense<0.000000e+00> : vector<8x32xf32>
    %389 = tpu.matmul %386, %388, %cst_322 {dimension_numbers = #tpu.dot_dimension_numbers<[1], [0], [0], [1], [0, 0, 1, 1], [], []>} : vector<8x16xf32>, vector<16x32xf32>, vector<8x32xf32> -> vector<8x32xf32>
    %c1_323 = arith.constant 1 : index
    %c1_324 = arith.constant 1 : index
    %c0_325 = arith.constant 0 : index
    %c0_326 = arith.constant 0 : index
    %390 = vector.load %arg6[%c1_323, %c1_324, %c0_325, %c0_326] : memref<2x2x32x16xf32, #tpu.memory_space<vmem>>, vector<1x1x32x16xf32>
    %391 = vector.shape_cast %390 : vector<1x1x32x16xf32> to vector<32x16xf32>
    %cst_327 = arith.constant dense<0.000000e+00> : vector<8x16xf32>
    %392 = tpu.matmul %348, %391, %cst_327 {dimension_numbers = #tpu.dot_dimension_numbers<[1], [0], [0], [1], [0, 0, 1, 1], [], []>} : vector<8x32xf32>, vector<32x16xf32>, vector<8x16xf32> -> vector<8x16xf32>
    %c1_328 = arith.constant 1 : index
    %c1_329 = arith.constant 1 : index
    %c0_330 = arith.constant 0 : index
    %c0_331 = arith.constant 0 : index
    %393 = vector.load %arg7[%c1_328, %c1_329, %c0_330, %c0_331] : memref<2x2x1x16xf32, #tpu.memory_space<vmem>>, vector<1x1x1x16xf32>
    %394 = vector.shape_cast %393 : vector<1x1x1x16xf32> to vector<1x16xf32>
    %395 = vector.broadcast %394 : vector<1x16xf32> to vector<8x16xf32>
    %396 = arith.addf %392, %395 : vector<8x16xf32>
    %c1_332 = arith.constant 1 : index
    %c1_333 = arith.constant 1 : index
    %c0_334 = arith.constant 0 : index
    %c0_335 = arith.constant 0 : index
    %397 = vector.load %arg8[%c1_332, %c1_333, %c0_334, %c0_335] : memref<2x2x32x16xf32, #tpu.memory_space<vmem>>, vector<1x1x32x16xf32>
    %398 = vector.shape_cast %397 : vector<1x1x32x16xf32> to vector<32x16xf32>
    %cst_336 = arith.constant dense<0.000000e+00> : vector<8x16xf32>
    %399 = tpu.matmul %348, %398, %cst_336 {dimension_numbers = #tpu.dot_dimension_numbers<[1], [0], [0], [1], [0, 0, 1, 1], [], []>} : vector<8x32xf32>, vector<32x16xf32>, vector<8x16xf32> -> vector<8x16xf32>
    %c1_337 = arith.constant 1 : index
    %c1_338 = arith.constant 1 : index
    %c0_339 = arith.constant 0 : index
    %c0_340 = arith.constant 0 : index
    %400 = vector.load %arg9[%c1_337, %c1_338, %c0_339, %c0_340] : memref<2x2x1x16xf32, #tpu.memory_space<vmem>>, vector<1x1x1x16xf32>
    %401 = vector.shape_cast %400 : vector<1x1x1x16xf32> to vector<1x16xf32>
    %402 = vector.broadcast %401 : vector<1x16xf32> to vector<8x16xf32>
    %403 = arith.addf %399, %402 : vector<8x16xf32>
    %c1_341 = arith.constant 1 : index
    %c1_342 = arith.constant 1 : index
    %c0_343 = arith.constant 0 : index
    %c0_344 = arith.constant 0 : index
    %404 = vector.load %arg10[%c1_341, %c1_342, %c0_343, %c0_344] : memref<2x2x32x16xf32, #tpu.memory_space<vmem>>, vector<1x1x32x16xf32>
    %405 = vector.shape_cast %404 : vector<1x1x32x16xf32> to vector<32x16xf32>
    %cst_345 = arith.constant dense<0.000000e+00> : vector<8x16xf32>
    %406 = tpu.matmul %348, %405, %cst_345 {dimension_numbers = #tpu.dot_dimension_numbers<[1], [0], [0], [1], [0, 0, 1, 1], [], []>} : vector<8x32xf32>, vector<32x16xf32>, vector<8x16xf32> -> vector<8x16xf32>
    %c1_346 = arith.constant 1 : index
    %c1_347 = arith.constant 1 : index
    %c0_348 = arith.constant 0 : index
    %c0_349 = arith.constant 0 : index
    %407 = vector.load %arg11[%c1_346, %c1_347, %c0_348, %c0_349] : memref<2x2x1x16xf32, #tpu.memory_space<vmem>>, vector<1x1x1x16xf32>
    %408 = vector.shape_cast %407 : vector<1x1x1x16xf32> to vector<1x16xf32>
    %409 = vector.broadcast %408 : vector<1x16xf32> to vector<8x16xf32>
    %410 = arith.addf %406, %409 : vector<8x16xf32>
    %cst_350 = arith.constant dense<0.000000e+00> : vector<8x8xf32>
    %411 = tpu.matmul %396, %403, %cst_350 {dimension_numbers = #tpu.dot_dimension_numbers<[1], [1], [0], [0], [0, 0, 1, 0], [], []>} : vector<8x16xf32>, vector<8x16xf32>, vector<8x8xf32> -> vector<8x8xf32>
    %412 = vector.broadcast %349 : vector<1x8xf32> to vector<8x8xf32>
    %413 = arith.addf %411, %412 : vector<8x8xf32>
    %cst_351 = arith.constant dense<0xFF800000> : vector<8xf32>
    %414 = vector.multi_reduction <maximumf>, %413, %cst_351 [1] : vector<8x8xf32> to vector<8xf32>
    %415 = vector.shape_cast %414 : vector<8xf32> to vector<8x1xf32>
    %416 = vector.broadcast %415 : vector<8x1xf32> to vector<8x8xf32>
    %417 = arith.subf %413, %416 : vector<8x8xf32>
    %418 = math.exp %417 : vector<8x8xf32>
    %cst_352 = arith.constant dense<0.000000e+00> : vector<8xf32>
    %419 = vector.multi_reduction <add>, %418, %cst_352 [1] : vector<8x8xf32> to vector<8xf32>
    %420 = vector.shape_cast %419 : vector<8xf32> to vector<8x1xf32>
    %421 = vector.broadcast %420 : vector<8x1xf32> to vector<8x8xf32>
    %422 = arith.divf %418, %421 : vector<8x8xf32>
    %c0_353 = arith.constant 0 : index
    %c1_354 = arith.constant 1 : index
    %c0_355 = arith.constant 0 : index
    %c0_356 = arith.constant 0 : index
    %423 = vector.load %arg30[%c0_353, %c1_354, %c0_355, %c0_356] : memref<2x2x8x8xf32, #tpu.memory_space<vmem>>, vector<1x1x8x8xf32>
    %424 = vector.shape_cast %423 : vector<1x1x8x8xf32> to vector<8x8xf32>
    %425 = vector.shape_cast %422 : vector<8x8xf32> to vector<1x1x8x8xf32>
    tpu.vector_store %arg30[%c0_353, %c1_354, %c0_355, %c0_356], %425 {strides = array<i32>} : memref<2x2x8x8xf32, #tpu.memory_space<vmem>>, vector<1x1x8x8xf32>,
    %cst_357 = arith.constant dense<0.000000e+00> : vector<8x16xf32>
    %426 = tpu.matmul %422, %410, %cst_357 {dimension_numbers = #tpu.dot_dimension_numbers<[1], [0], [0], [1], [0, 0, 1, 1], [], []>} : vector<8x8xf32>, vector<8x16xf32>, vector<8x16xf32> -> vector<8x16xf32>
    %c1_358 = arith.constant 1 : index
    %c1_359 = arith.constant 1 : index
    %c0_360 = arith.constant 0 : index
    %c0_361 = arith.constant 0 : index
    %427 = vector.load %arg12[%c1_358, %c1_359, %c0_360, %c0_361] : memref<2x2x16x32xf32, #tpu.memory_space<vmem>>, vector<1x1x16x32xf32>
    %428 = vector.shape_cast %427 : vector<1x1x16x32xf32> to vector<16x32xf32>
    %cst_362 = arith.constant dense<0.000000e+00> : vector<8x32xf32>
    %429 = tpu.matmul %426, %428, %cst_362 {dimension_numbers = #tpu.dot_dimension_numbers<[1], [0], [0], [1], [0, 0, 1, 1], [], []>} : vector<8x16xf32>, vector<16x32xf32>, vector<8x32xf32> -> vector<8x32xf32>
    %430 = arith.addf %389, %429 : vector<8x32xf32>
    %431 = vector.extract_strided_slice %347 {offsets = [8, 0], sizes = [8, 32], strides = [1, 1]} : vector<16x32xf32> to vector<8x32xf32>
    %432 = vector.extract_strided_slice %95 {offsets = [1, 0], sizes = [1, 8], strides = [1, 1]} : vector<2x8xf32> to vector<1x8xf32>
    %c1_363 = arith.constant 1 : index
    %c0_364 = arith.constant 0 : index
    %c0_365 = arith.constant 0 : index
    %c0_366 = arith.constant 0 : index
    %433 = vector.load %arg6[%c1_363, %c0_364, %c0_365, %c0_366] : memref<2x2x32x16xf32, #tpu.memory_space<vmem>>, vector<1x1x32x16xf32>
    %434 = vector.shape_cast %433 : vector<1x1x32x16xf32> to vector<32x16xf32>
    %cst_367 = arith.constant dense<0.000000e+00> : vector<8x16xf32>
    %435 = tpu.matmul %431, %434, %cst_367 {dimension_numbers = #tpu.dot_dimension_numbers<[1], [0], [0], [1], [0, 0, 1, 1], [], []>} : vector<8x32xf32>, vector<32x16xf32>, vector<8x16xf32> -> vector<8x16xf32>
    %c1_368 = arith.constant 1 : index
    %c0_369 = arith.constant 0 : index
    %c0_370 = arith.constant 0 : index
    %c0_371 = arith.constant 0 : index
    %436 = vector.load %arg7[%c1_368, %c0_369, %c0_370, %c0_371] : memref<2x2x1x16xf32, #tpu.memory_space<vmem>>, vector<1x1x1x16xf32>
    %437 = vector.shape_cast %436 : vector<1x1x1x16xf32> to vector<1x16xf32>
    %438 = vector.broadcast %437 : vector<1x16xf32> to vector<8x16xf32>
    %439 = arith.addf %435, %438 : vector<8x16xf32>
    %c1_372 = arith.constant 1 : index
    %c0_373 = arith.constant 0 : index
    %c0_374 = arith.constant 0 : index
    %c0_375 = arith.constant 0 : index
    %440 = vector.load %arg8[%c1_372, %c0_373, %c0_374, %c0_375] : memref<2x2x32x16xf32, #tpu.memory_space<vmem>>, vector<1x1x32x16xf32>
    %441 = vector.shape_cast %440 : vector<1x1x32x16xf32> to vector<32x16xf32>
    %cst_376 = arith.constant dense<0.000000e+00> : vector<8x16xf32>
    %442 = tpu.matmul %431, %441, %cst_376 {dimension_numbers = #tpu.dot_dimension_numbers<[1], [0], [0], [1], [0, 0, 1, 1], [], []>} : vector<8x32xf32>, vector<32x16xf32>, vector<8x16xf32> -> vector<8x16xf32>
    %c1_377 = arith.constant 1 : index
    %c0_378 = arith.constant 0 : index
    %c0_379 = arith.constant 0 : index
    %c0_380 = arith.constant 0 : index
    %443 = vector.load %arg9[%c1_377, %c0_378, %c0_379, %c0_380] : memref<2x2x1x16xf32, #tpu.memory_space<vmem>>, vector<1x1x1x16xf32>
    %444 = vector.shape_cast %443 : vector<1x1x1x16xf32> to vector<1x16xf32>
    %445 = vector.broadcast %444 : vector<1x16xf32> to vector<8x16xf32>
    %446 = arith.addf %442, %445 : vector<8x16xf32>
    %c1_381 = arith.constant 1 : index
    %c0_382 = arith.constant 0 : index
    %c0_383 = arith.constant 0 : index
    %c0_384 = arith.constant 0 : index
    %447 = vector.load %arg10[%c1_381, %c0_382, %c0_383, %c0_384] : memref<2x2x32x16xf32, #tpu.memory_space<vmem>>, vector<1x1x32x16xf32>
    %448 = vector.shape_cast %447 : vector<1x1x32x16xf32> to vector<32x16xf32>
    %cst_385 = arith.constant dense<0.000000e+00> : vector<8x16xf32>
    %449 = tpu.matmul %431, %448, %cst_385 {dimension_numbers = #tpu.dot_dimension_numbers<[1], [0], [0], [1], [0, 0, 1, 1], [], []>} : vector<8x32xf32>, vector<32x16xf32>, vector<8x16xf32> -> vector<8x16xf32>
    %c1_386 = arith.constant 1 : index
    %c0_387 = arith.constant 0 : index
    %c0_388 = arith.constant 0 : index
    %c0_389 = arith.constant 0 : index
    %450 = vector.load %arg11[%c1_386, %c0_387, %c0_388, %c0_389] : memref<2x2x1x16xf32, #tpu.memory_space<vmem>>, vector<1x1x1x16xf32>
    %451 = vector.shape_cast %450 : vector<1x1x1x16xf32> to vector<1x16xf32>
    %452 = vector.broadcast %451 : vector<1x16xf32> to vector<8x16xf32>
    %453 = arith.addf %449, %452 : vector<8x16xf32>
    %cst_390 = arith.constant dense<0.000000e+00> : vector<8x8xf32>
    %454 = tpu.matmul %439, %446, %cst_390 {dimension_numbers = #tpu.dot_dimension_numbers<[1], [1], [0], [0], [0, 0, 1, 0], [], []>} : vector<8x16xf32>, vector<8x16xf32>, vector<8x8xf32> -> vector<8x8xf32>
    %455 = vector.broadcast %432 : vector<1x8xf32> to vector<8x8xf32>
    %456 = arith.addf %454, %455 : vector<8x8xf32>
    %cst_391 = arith.constant dense<0xFF800000> : vector<8xf32>
    %457 = vector.multi_reduction <maximumf>, %456, %cst_391 [1] : vector<8x8xf32> to vector<8xf32>
    %458 = vector.shape_cast %457 : vector<8xf32> to vector<8x1xf32>
    %459 = vector.broadcast %458 : vector<8x1xf32> to vector<8x8xf32>
    %460 = arith.subf %456, %459 : vector<8x8xf32>
    %461 = math.exp %460 : vector<8x8xf32>
    %cst_392 = arith.constant dense<0.000000e+00> : vector<8xf32>
    %462 = vector.multi_reduction <add>, %461, %cst_392 [1] : vector<8x8xf32> to vector<8xf32>
    %463 = vector.shape_cast %462 : vector<8xf32> to vector<8x1xf32>
    %464 = vector.broadcast %463 : vector<8x1xf32> to vector<8x8xf32>
    %465 = arith.divf %461, %464 : vector<8x8xf32>
    %c1_393 = arith.constant 1 : index
    %c0_394 = arith.constant 0 : index
    %c0_395 = arith.constant 0 : index
    %c0_396 = arith.constant 0 : index
    %466 = vector.load %arg30[%c1_393, %c0_394, %c0_395, %c0_396] : memref<2x2x8x8xf32, #tpu.memory_space<vmem>>, vector<1x1x8x8xf32>
    %467 = vector.shape_cast %466 : vector<1x1x8x8xf32> to vector<8x8xf32>
    %468 = vector.shape_cast %465 : vector<8x8xf32> to vector<1x1x8x8xf32>
    tpu.vector_store %arg30[%c1_393, %c0_394, %c0_395, %c0_396], %468 {strides = array<i32>} : memref<2x2x8x8xf32, #tpu.memory_space<vmem>>, vector<1x1x8x8xf32>,
    %cst_397 = arith.constant dense<0.000000e+00> : vector<8x16xf32>
    %469 = tpu.matmul %465, %453, %cst_397 {dimension_numbers = #tpu.dot_dimension_numbers<[1], [0], [0], [1], [0, 0, 1, 1], [], []>} : vector<8x8xf32>, vector<8x16xf32>, vector<8x16xf32> -> vector<8x16xf32>
    %c1_398 = arith.constant 1 : index
    %c0_399 = arith.constant 0 : index
    %c0_400 = arith.constant 0 : index
    %c0_401 = arith.constant 0 : index
    %470 = vector.load %arg12[%c1_398, %c0_399, %c0_400, %c0_401] : memref<2x2x16x32xf32, #tpu.memory_space<vmem>>, vector<1x1x16x32xf32>
    %471 = vector.shape_cast %470 : vector<1x1x16x32xf32> to vector<16x32xf32>
    %cst_402 = arith.constant dense<0.000000e+00> : vector<8x32xf32>
    %472 = tpu.matmul %469, %471, %cst_402 {dimension_numbers = #tpu.dot_dimension_numbers<[1], [0], [0], [1], [0, 0, 1, 1], [], []>} : vector<8x16xf32>, vector<16x32xf32>, vector<8x32xf32> -> vector<8x32xf32>
    %c1_403 = arith.constant 1 : index
    %c1_404 = arith.constant 1 : index
    %c0_405 = arith.constant 0 : index
    %c0_406 = arith.constant 0 : index
    %473 = vector.load %arg6[%c1_403, %c1_404, %c0_405, %c0_406] : memref<2x2x32x16xf32, #tpu.memory_space<vmem>>, vector<1x1x32x16xf32>
    %474 = vector.shape_cast %473 : vector<1x1x32x16xf32> to vector<32x16xf32>
    %cst_407 = arith.constant dense<0.000000e+00> : vector<8x16xf32>
    %475 = tpu.matmul %431, %474, %cst_407 {dimension_numbers = #tpu.dot_dimension_numbers<[1], [0], [0], [1], [0, 0, 1, 1], [], []>} : vector<8x32xf32>, vector<32x16xf32>, vector<8x16xf32> -> vector<8x16xf32>
    %c1_408 = arith.constant 1 : index
    %c1_409 = arith.constant 1 : index
    %c0_410 = arith.constant 0 : index
    %c0_411 = arith.constant 0 : index
    %476 = vector.load %arg7[%c1_408, %c1_409, %c0_410, %c0_411] : memref<2x2x1x16xf32, #tpu.memory_space<vmem>>, vector<1x1x1x16xf32>
    %477 = vector.shape_cast %476 : vector<1x1x1x16xf32> to vector<1x16xf32>
    %478 = vector.broadcast %477 : vector<1x16xf32> to vector<8x16xf32>
    %479 = arith.addf %475, %478 : vector<8x16xf32>
    %c1_412 = arith.constant 1 : index
    %c1_413 = arith.constant 1 : index
    %c0_414 = arith.constant 0 : index
    %c0_415 = arith.constant 0 : index
    %480 = vector.load %arg8[%c1_412, %c1_413, %c0_414, %c0_415] : memref<2x2x32x16xf32, #tpu.memory_space<vmem>>, vector<1x1x32x16xf32>
    %481 = vector.shape_cast %480 : vector<1x1x32x16xf32> to vector<32x16xf32>
    %cst_416 = arith.constant dense<0.000000e+00> : vector<8x16xf32>
    %482 = tpu.matmul %431, %481, %cst_416 {dimension_numbers = #tpu.dot_dimension_numbers<[1], [0], [0], [1], [0, 0, 1, 1], [], []>} : vector<8x32xf32>, vector<32x16xf32>, vector<8x16xf32> -> vector<8x16xf32>
    %c1_417 = arith.constant 1 : index
    %c1_418 = arith.constant 1 : index
    %c0_419 = arith.constant 0 : index
    %c0_420 = arith.constant 0 : index
    %483 = vector.load %arg9[%c1_417, %c1_418, %c0_419, %c0_420] : memref<2x2x1x16xf32, #tpu.memory_space<vmem>>, vector<1x1x1x16xf32>
    %484 = vector.shape_cast %483 : vector<1x1x1x16xf32> to vector<1x16xf32>
    %485 = vector.broadcast %484 : vector<1x16xf32> to vector<8x16xf32>
    %486 = arith.addf %482, %485 : vector<8x16xf32>
    %c1_421 = arith.constant 1 : index
    %c1_422 = arith.constant 1 : index
    %c0_423 = arith.constant 0 : index
    %c0_424 = arith.constant 0 : index
    %487 = vector.load %arg10[%c1_421, %c1_422, %c0_423, %c0_424] : memref<2x2x32x16xf32, #tpu.memory_space<vmem>>, vector<1x1x32x16xf32>
    %488 = vector.shape_cast %487 : vector<1x1x32x16xf32> to vector<32x16xf32>
    %cst_425 = arith.constant dense<0.000000e+00> : vector<8x16xf32>
    %489 = tpu.matmul %431, %488, %cst_425 {dimension_numbers = #tpu.dot_dimension_numbers<[1], [0], [0], [1], [0, 0, 1, 1], [], []>} : vector<8x32xf32>, vector<32x16xf32>, vector<8x16xf32> -> vector<8x16xf32>
    %c1_426 = arith.constant 1 : index
    %c1_427 = arith.constant 1 : index
    %c0_428 = arith.constant 0 : index
    %c0_429 = arith.constant 0 : index
    %490 = vector.load %arg11[%c1_426, %c1_427, %c0_428, %c0_429] : memref<2x2x1x16xf32, #tpu.memory_space<vmem>>, vector<1x1x1x16xf32>
    %491 = vector.shape_cast %490 : vector<1x1x1x16xf32> to vector<1x16xf32>
    %492 = vector.broadcast %491 : vector<1x16xf32> to vector<8x16xf32>
    %493 = arith.addf %489, %492 : vector<8x16xf32>
    %cst_430 = arith.constant dense<0.000000e+00> : vector<8x8xf32>
    %494 = tpu.matmul %479, %486, %cst_430 {dimension_numbers = #tpu.dot_dimension_numbers<[1], [1], [0], [0], [0, 0, 1, 0], [], []>} : vector<8x16xf32>, vector<8x16xf32>, vector<8x8xf32> -> vector<8x8xf32>
    %495 = vector.broadcast %432 : vector<1x8xf32> to vector<8x8xf32>
    %496 = arith.addf %494, %495 : vector<8x8xf32>
    %cst_431 = arith.constant dense<0xFF800000> : vector<8xf32>
    %497 = vector.multi_reduction <maximumf>, %496, %cst_431 [1] : vector<8x8xf32> to vector<8xf32>
    %498 = vector.shape_cast %497 : vector<8xf32> to vector<8x1xf32>
    %499 = vector.broadcast %498 : vector<8x1xf32> to vector<8x8xf32>
    %500 = arith.subf %496, %499 : vector<8x8xf32>
    %501 = math.exp %500 : vector<8x8xf32>
    %cst_432 = arith.constant dense<0.000000e+00> : vector<8xf32>
    %502 = vector.multi_reduction <add>, %501, %cst_432 [1] : vector<8x8xf32> to vector<8xf32>
    %503 = vector.shape_cast %502 : vector<8xf32> to vector<8x1xf32>
    %504 = vector.broadcast %503 : vector<8x1xf32> to vector<8x8xf32>
    %505 = arith.divf %501, %504 : vector<8x8xf32>
    %c1_433 = arith.constant 1 : index
    %c1_434 = arith.constant 1 : index
    %c0_435 = arith.constant 0 : index
    %c0_436 = arith.constant 0 : index
    %506 = vector.load %arg30[%c1_433, %c1_434, %c0_435, %c0_436] : memref<2x2x8x8xf32, #tpu.memory_space<vmem>>, vector<1x1x8x8xf32>
    %507 = vector.shape_cast %506 : vector<1x1x8x8xf32> to vector<8x8xf32>
    %508 = vector.shape_cast %505 : vector<8x8xf32> to vector<1x1x8x8xf32>
    tpu.vector_store %arg30[%c1_433, %c1_434, %c0_435, %c0_436], %508 {strides = array<i32>} : memref<2x2x8x8xf32, #tpu.memory_space<vmem>>, vector<1x1x8x8xf32>,
    %cst_437 = arith.constant dense<0.000000e+00> : vector<8x16xf32>
    %509 = tpu.matmul %505, %493, %cst_437 {dimension_numbers = #tpu.dot_dimension_numbers<[1], [0], [0], [1], [0, 0, 1, 1], [], []>} : vector<8x8xf32>, vector<8x16xf32>, vector<8x16xf32> -> vector<8x16xf32>
    %c1_438 = arith.constant 1 : index
    %c1_439 = arith.constant 1 : index
    %c0_440 = arith.constant 0 : index
    %c0_441 = arith.constant 0 : index
    %510 = vector.load %arg12[%c1_438, %c1_439, %c0_440, %c0_441] : memref<2x2x16x32xf32, #tpu.memory_space<vmem>>, vector<1x1x16x32xf32>
    %511 = vector.shape_cast %510 : vector<1x1x16x32xf32> to vector<16x32xf32>
    %cst_442 = arith.constant dense<0.000000e+00> : vector<8x32xf32>
    %512 = tpu.matmul %509, %511, %cst_442 {dimension_numbers = #tpu.dot_dimension_numbers<[1], [0], [0], [1], [0, 0, 1, 1], [], []>} : vector<8x16xf32>, vector<16x32xf32>, vector<8x32xf32> -> vector<8x32xf32>
    %513 = arith.addf %472, %512 : vector<8x32xf32>
    %514 = tpu.concatenate %430, %513 in 0 : vector<8x32xf32>, vector<8x32xf32> -> vector<16x32xf32>
    %c1_443 = arith.constant 1 : index
    %c0_444 = arith.constant 0 : index
    %c0_445 = arith.constant 0 : index
    %515 = vector.load %arg13[%c1_443, %c0_444, %c0_445] : memref<2x1x32xf32, #tpu.memory_space<vmem>>, vector<1x1x32xf32>
    %516 = vector.shape_cast %515 : vector<1x1x32xf32> to vector<1x32xf32>
    %517 = vector.broadcast %516 : vector<1x32xf32> to vector<16x32xf32>
    %518 = arith.addf %514, %517 : vector<16x32xf32>
    %519 = arith.addf %518, %347 : vector<16x32xf32>
    %c1_446 = arith.constant 1 : index
    %c0_447 = arith.constant 0 : index
    %c0_448 = arith.constant 0 : index
    %520 = vector.load %arg14[%c1_446, %c0_447, %c0_448] : memref<2x1x32xf32, #tpu.memory_space<vmem>>, vector<1x1x32xf32>
    %521 = vector.shape_cast %520 : vector<1x1x32xf32> to vector<1x32xf32>
    %c1_449 = arith.constant 1 : index
    %c0_450 = arith.constant 0 : index
    %c0_451 = arith.constant 0 : index
    %522 = vector.load %arg15[%c1_449, %c0_450, %c0_451] : memref<2x1x32xf32, #tpu.memory_space<vmem>>, vector<1x1x32xf32>
    %523 = vector.shape_cast %522 : vector<1x1x32xf32> to vector<1x32xf32>
    %cst_452 = arith.constant dense<0.000000e+00> : vector<16xf32>
    %524 = vector.multi_reduction <add>, %519, %cst_452 [1] : vector<16x32xf32> to vector<16xf32>
    %525 = vector.shape_cast %524 : vector<16xf32> to vector<16x1xf32>
    %cst_453 = arith.constant 3.200000e+01 : f32
    %526 = vector.broadcast %cst_453 : f32 to vector<16x1xf32>
    %527 = arith.divf %525, %526 : vector<16x1xf32>
    %528 = vector.broadcast %527 : vector<16x1xf32> to vector<16x32xf32>
    %529 = arith.subf %519, %528 : vector<16x32xf32>
    %530 = arith.mulf %529, %529 : vector<16x32xf32>
    %cst_454 = arith.constant dense<0.000000e+00> : vector<16xf32>
    %531 = vector.multi_reduction <add>, %530, %cst_454 [1] : vector<16x32xf32> to vector<16xf32>
    %532 = vector.shape_cast %531 : vector<16xf32> to vector<16x1xf32>
    %cst_455 = arith.constant 3.200000e+01 : f32
    %533 = vector.broadcast %cst_455 : f32 to vector<16x1xf32>
    %534 = arith.divf %532, %533 : vector<16x1xf32>
    %535 = vector.broadcast %527 : vector<16x1xf32> to vector<16x32xf32>
    %536 = arith.subf %519, %535 : vector<16x32xf32>
    %cst_456 = arith.constant 9.99999996E-13 : f32
    %537 = vector.broadcast %cst_456 : f32 to vector<16x1xf32>
    %538 = arith.addf %534, %537 : vector<16x1xf32>
    %539 = math.rsqrt %538 : vector<16x1xf32>
    %540 = vector.broadcast %539 : vector<16x1xf32> to vector<16x32xf32>
    %541 = arith.mulf %536, %540 : vector<16x32xf32>
    %542 = vector.broadcast %521 : vector<1x32xf32> to vector<16x32xf32>
    %543 = arith.mulf %541, %542 : vector<16x32xf32>
    %544 = vector.broadcast %523 : vector<1x32xf32> to vector<16x32xf32>
    %545 = arith.addf %543, %544 : vector<16x32xf32>
    %c1_457 = arith.constant 1 : index
    %c0_458 = arith.constant 0 : index
    %c0_459 = arith.constant 0 : index
    %546 = vector.load %arg16[%c1_457, %c0_458, %c0_459] : memref<2x32x64xf32, #tpu.memory_space<vmem>>, vector<1x32x64xf32>
    %547 = vector.shape_cast %546 : vector<1x32x64xf32> to vector<32x64xf32>
    %cst_460 = arith.constant dense<0.000000e+00> : vector<16x64xf32>
    %548 = tpu.matmul %545, %547, %cst_460 {dimension_numbers = #tpu.dot_dimension_numbers<[1], [0], [0], [1], [0, 0, 1, 1], [], []>} : vector<16x32xf32>, vector<32x64xf32>, vector<16x64xf32> -> vector<16x64xf32>
    %c1_461 = arith.constant 1 : index
    %c0_462 = arith.constant 0 : index
    %c0_463 = arith.constant 0 : index
    %549 = vector.load %arg17[%c1_461, %c0_462, %c0_463] : memref<2x1x64xf32, #tpu.memory_space<vmem>>, vector<1x1x64xf32>
    %550 = vector.shape_cast %549 : vector<1x1x64xf32> to vector<1x64xf32>
    %551 = vector.broadcast %550 : vector<1x64xf32> to vector<16x64xf32>
    %552 = arith.addf %548, %551 : vector<16x64xf32>
    %553 = arith.mulf %552, %552 : vector<16x64xf32>
    %554 = arith.mulf %552, %553 : vector<16x64xf32>
    %cst_464 = arith.constant 4.471500e-02 : f32
    %555 = vector.broadcast %cst_464 : f32 to vector<16x64xf32>
    %556 = arith.mulf %555, %554 : vector<16x64xf32>
    %557 = arith.addf %552, %556 : vector<16x64xf32>
    %cst_465 = arith.constant 0.797884583 : f32
    %558 = vector.broadcast %cst_465 : f32 to vector<16x64xf32>
    %559 = arith.mulf %558, %557 : vector<16x64xf32>
    %560 = math.tanh %559 : vector<16x64xf32>
    %cst_466 = arith.constant 1.000000e+00 : f32
    %561 = vector.broadcast %cst_466 : f32 to vector<16x64xf32>
    %562 = arith.addf %561, %560 : vector<16x64xf32>
    %cst_467 = arith.constant 5.000000e-01 : f32
    %563 = vector.broadcast %cst_467 : f32 to vector<16x64xf32>
    %564 = arith.mulf %563, %562 : vector<16x64xf32>
    %565 = arith.mulf %552, %564 : vector<16x64xf32>
    %c1_468 = arith.constant 1 : index
    %c0_469 = arith.constant 0 : index
    %c0_470 = arith.constant 0 : index
    %566 = vector.load %arg18[%c1_468, %c0_469, %c0_470] : memref<2x64x32xf32, #tpu.memory_space<vmem>>, vector<1x64x32xf32>
    %567 = vector.shape_cast %566 : vector<1x64x32xf32> to vector<64x32xf32>
    %cst_471 = arith.constant dense<0.000000e+00> : vector<16x32xf32>
    %568 = tpu.matmul %565, %567, %cst_471 {dimension_numbers = #tpu.dot_dimension_numbers<[1], [0], [0], [1], [0, 0, 1, 1], [], []>} : vector<16x64xf32>, vector<64x32xf32>, vector<16x32xf32> -> vector<16x32xf32>
    %c1_472 = arith.constant 1 : index
    %c0_473 = arith.constant 0 : index
    %c0_474 = arith.constant 0 : index
    %569 = vector.load %arg19[%c1_472, %c0_473, %c0_474] : memref<2x1x32xf32, #tpu.memory_space<vmem>>, vector<1x1x32xf32>
    %570 = vector.shape_cast %569 : vector<1x1x32xf32> to vector<1x32xf32>
    %571 = vector.broadcast %570 : vector<1x32xf32> to vector<16x32xf32>
    %572 = arith.addf %568, %571 : vector<16x32xf32>
    %573 = arith.addf %572, %545 : vector<16x32xf32>
    %c1_475 = arith.constant 1 : index
    %c0_476 = arith.constant 0 : index
    %c0_477 = arith.constant 0 : index
    %574 = vector.load %arg20[%c1_475, %c0_476, %c0_477] : memref<2x1x32xf32, #tpu.memory_space<vmem>>, vector<1x1x32xf32>
    %575 = vector.shape_cast %574 : vector<1x1x32xf32> to vector<1x32xf32>
    %c1_478 = arith.constant 1 : index
    %c0_479 = arith.constant 0 : index
    %c0_480 = arith.constant 0 : index
    %576 = vector.load %arg21[%c1_478, %c0_479, %c0_480] : memref<2x1x32xf32, #tpu.memory_space<vmem>>, vector<1x1x32xf32>
    %577 = vector.shape_cast %576 : vector<1x1x32xf32> to vector<1x32xf32>
    %cst_481 = arith.constant dense<0.000000e+00> : vector<16xf32>
    %578 = vector.multi_reduction <add>, %573, %cst_481 [1] : vector<16x32xf32> to vector<16xf32>
    %579 = vector.shape_cast %578 : vector<16xf32> to vector<16x1xf32>
    %cst_482 = arith.constant 3.200000e+01 : f32
    %580 = vector.broadcast %cst_482 : f32 to vector<16x1xf32>
    %581 = arith.divf %579, %580 : vector<16x1xf32>
    %582 = vector.broadcast %581 : vector<16x1xf32> to vector<16x32xf32>
    %583 = arith.subf %573, %582 : vector<16x32xf32>
    %584 = arith.mulf %583, %583 : vector<16x32xf32>
    %cst_483 = arith.constant dense<0.000000e+00> : vector<16xf32>
    %585 = vector.multi_reduction <add>, %584, %cst_483 [1] : vector<16x32xf32> to vector<16xf32>
    %586 = vector.shape_cast %585 : vector<16xf32> to vector<16x1xf32>
    %cst_484 = arith.constant 3.200000e+01 : f32
    %587 = vector.broadcast %cst_484 : f32 to vector<16x1xf32>
    %588 = arith.divf %586, %587 : vector<16x1xf32>
    %589 = vector.broadcast %581 : vector<16x1xf32> to vector<16x32xf32>
    %590 = arith.subf %573, %589 : vector<16x32xf32>
    %cst_485 = arith.constant 9.99999996E-13 : f32
    %591 = vector.broadcast %cst_485 : f32 to vector<16x1xf32>
    %592 = arith.addf %588, %591 : vector<16x1xf32>
    %593 = math.rsqrt %592 : vector<16x1xf32>
    %594 = vector.broadcast %593 : vector<16x1xf32> to vector<16x32xf32>
    %595 = arith.mulf %590, %594 : vector<16x32xf32>
    %596 = vector.broadcast %575 : vector<1x32xf32> to vector<16x32xf32>
    %597 = arith.mulf %595, %596 : vector<16x32xf32>
    %598 = vector.broadcast %577 : vector<1x32xf32> to vector<16x32xf32>
    %599 = arith.addf %597, %598 : vector<16x32xf32>
    %600 = vector.extract_strided_slice %599 {offsets = [0, 0], sizes = [8, 32], strides = [1, 1]} : vector<16x32xf32> to vector<8x32xf32>
    %c0_486 = arith.constant 0 : index
    %c0_487 = arith.constant 0 : index
    %c0_488 = arith.constant 0 : index
    %601 = vector.load %arg26[%c0_486, %c0_487, %c0_488] : memref<2x8x32xf32, #tpu.memory_space<vmem>>, vector<1x8x32xf32>
    %602 = vector.shape_cast %601 : vector<1x8x32xf32> to vector<8x32xf32>
    %603 = vector.shape_cast %600 : vector<8x32xf32> to vector<1x8x32xf32>
    tpu.vector_store %arg26[%c0_486, %c0_487, %c0_488], %603 {strides = array<i32>} : memref<2x8x32xf32, #tpu.memory_space<vmem>>, vector<1x8x32xf32>,
    %604 = vector.extract_strided_slice %599 {offsets = [8, 0], sizes = [8, 32], strides = [1, 1]} : vector<16x32xf32> to vector<8x32xf32>
    %c1_489 = arith.constant 1 : index
    %c0_490 = arith.constant 0 : index
    %c0_491 = arith.constant 0 : index
    %605 = vector.load %arg26[%c1_489, %c0_490, %c0_491] : memref<2x8x32xf32, #tpu.memory_space<vmem>>, vector<1x8x32xf32>
    %606 = vector.shape_cast %605 : vector<1x8x32xf32> to vector<8x32xf32>
    %607 = vector.shape_cast %604 : vector<8x32xf32> to vector<1x8x32xf32>
    tpu.vector_store %arg26[%c1_489, %c0_490, %c0_491], %607 {strides = array<i32>} : memref<2x8x32xf32, #tpu.memory_space<vmem>>, vector<1x8x32xf32>,
    %c0_492 = arith.constant 0 : index
    %c0_493 = arith.constant 0 : index
    %608 = vector.load %arg31[%c0_492, %c0_493] : memref<16x32xf32, #tpu.memory_space<vmem>>, vector<16x32xf32>
    tpu.vector_store %arg31[%c0_492, %c0_493], %599 {strides = array<i32>} : memref<16x32xf32, #tpu.memory_space<vmem>>, vector<16x32xf32>,
    %c0_494 = arith.constant 0 : index
    %c0_495 = arith.constant 0 : index
    %609 = tpu.strided_load %arg31[%c0_494, %c0_495] {strides = array<i32: 8, 1>} : memref<16x32xf32, #tpu.memory_space<vmem>>, vector<2x32xf32>
    %c0_496 = arith.constant 0 : index
    %c0_497 = arith.constant 0 : index
    %610 = vector.load %arg22[%c0_496, %c0_497] : memref<32x32xf32, #tpu.memory_space<vmem>>, vector<32x32xf32>
    %cst_498 = arith.constant dense<0.000000e+00> : vector<2x32xf32>
    %611 = tpu.matmul %609, %610, %cst_498 {dimension_numbers = #tpu.dot_dimension_numbers<[1], [0], [0], [1], [0, 0, 1, 1], [], []>} : vector<2x32xf32>, vector<32x32xf32>, vector<2x32xf32> -> vector<2x32xf32>
    %c0_499 = arith.constant 0 : index
    %c0_500 = arith.constant 0 : index
    %612 = vector.load %arg23[%c0_499, %c0_500] : memref<1x32xf32, #tpu.memory_space<vmem>>, vector<1x32xf32>
    %613 = vector.broadcast %612 : vector<1x32xf32> to vector<2x32xf32>
    %614 = arith.addf %611, %613 : vector<2x32xf32>
    %615 = math.tanh %614 : vector<2x32xf32>
    %c0_501 = arith.constant 0 : index
    %c0_502 = arith.constant 0 : index
    %616 = vector.load %arg27[%c0_501, %c0_502] : memref<2x32xf32, #tpu.memory_space<vmem>>, vector<2x32xf32>
    tpu.vector_store %arg27[%c0_501, %c0_502], %615 {strides = array<i32>} : memref<2x32xf32, #tpu.memory_space<vmem>>, vector<2x32xf32>,
    %c0_503 = arith.constant 0 : index
    %c0_504 = arith.constant 0 : index
    %617 = vector.load %arg24[%c0_503, %c0_504] : memref<32x3xf32, #tpu.memory_space<vmem>>, vector<32x3xf32>
    %cst_505 = arith.constant dense<0.000000e+00> : vector<2x3xf32>
    %618 = tpu.matmul %615, %617, %cst_505 {dimension_numbers = #tpu.dot_dimension_numbers<[1], [0], [0], [1], [0, 0, 1, 1], [], []>} : vector<2x32xf32>, vector<32x3xf32>, vector<2x3xf32> -> vector<2x3xf32>
    %c0_506 = arith.constant 0 : index
    %c0_507 = arith.constant 0 : index
    %619 = vector.load %arg25[%c0_506, %c0_507] : memref<1x3xf32, #tpu.memory_space<vmem>>, vector<1x3xf32>
    %620 = vector.broadcast %619 : vector<1x3xf32> to vector<2x3xf32>
    %621 = arith.addf %618, %620 : vector<2x3xf32>
    %c0_508 = arith.constant 0 : index
    %c0_509 = arith.constant 0 : index
    %622 = vector.load %arg28[%c0_508, %c0_509] : memref<2x3xf32, #tpu.memory_space<vmem>>, vector<2x3xf32>
    tpu.vector_store %arg28[%c0_508, %c0_509], %621 {strides = array<i32>} : memref<2x3xf32, #tpu.memory_space<vmem>>, vector<2x3xf32>,
    return
  }
}

</mosaic_0001>

<llo_original>
// kernel: _lambda_.1
$region0: #{_lambda_.1}
  #allocation0 [shape = 'u32[]', space=smem, size = 0x4, offset = 0x4, fixed_abs, tag = 'smem constant byte address 0x4 - core index']
  #allocation1 [shape = 'u32[72,128]{1,0:T(1,128)}', space=vmem, size = 0x9000, scoped, tag = 'internal scratch']
  #allocation2 [shape = 'f32[16,32]{1,0:T(8,128)}', space=vmem, size = 0x2000, scoped, tag = 'scratch operand']
  %s0 = inlined_call_operand.smem [shape: u32[31], index: -1, kind: input, shape index: {}]
  %s1 = sld [smem:[%s0]]
  %s2 = scalar_lea.smem %s0, 1
  %s3 = sld [smem:[%s2]]
  %s4 = scalar_lea.smem %s0, 2
  %s5 = sld [smem:[%s4]]
  %s6 = scalar_lea.smem %s0, 3
  %s7 = sld [smem:[%s6]]
  %s8 = scalar_lea.smem %s0, 4
  %s9 = sld [smem:[%s8]]
  %s10 = scalar_lea.smem %s0, 5
  %s11 = sld [smem:[%s10]]
  %s12 = scalar_lea.smem %s0, 6
  %s13 = sld [smem:[%s12]]
  %s14 = scalar_lea.smem %s0, 7
  %s15 = sld [smem:[%s14]]
  %s16 = scalar_lea.smem %s0, 8
  %s17 = sld [smem:[%s16]]
  %s18 = scalar_lea.smem %s0, 9
  %s19 = sld [smem:[%s18]]
  %s20 = scalar_lea.smem %s0, 10
  %s21 = sld [smem:[%s20]]
  %s22 = scalar_lea.smem %s0, 11
  %s23 = sld [smem:[%s22]]
  %s24 = scalar_lea.smem %s0, 12
  %s25 = sld [smem:[%s24]]
  %s26 = scalar_lea.smem %s0, 13
  %s27 = sld [smem:[%s26]]
  %s28 = scalar_lea.smem %s0, 14
  %s29 = sld [smem:[%s28]]
  %s30 = scalar_lea.smem %s0, 15
  %s31 = sld [smem:[%s30]]
  %s32 = scalar_lea.smem %s0, 16
  %s33 = sld [smem:[%s32]]
  %s34 = scalar_lea.smem %s0, 17
  %s35 = sld [smem:[%s34]]
  %s36 = scalar_lea.smem %s0, 18
  %s37 = sld [smem:[%s36]]
  %s38 = scalar_lea.smem %s0, 19
  %s39 = sld [smem:[%s38]]
  %s40 = scalar_lea.smem %s0, 20
  %s41 = sld [smem:[%s40]]
  %s42 = scalar_lea.smem %s0, 21
  %s43 = sld [smem:[%s42]]
  %s44 = scalar_lea.smem %s0, 22
  %s45 = sld [smem:[%s44]]
  %s46 = scalar_lea.smem %s0, 23
  %s47 = sld [smem:[%s46]]
  %s48 = scalar_lea.smem %s0, 24
  %s49 = sld [smem:[%s48]]
  %s50 = scalar_lea.smem %s0, 25
  %s51 = sld [smem:[%s50]]
  %s52 = scalar_lea.smem %s0, 26
  %s53 = sld [smem:[%s52]]
  %s54 = scalar_lea.smem %s0, 27
  %s55 = sld [smem:[%s54]]
  %s56 = scalar_lea.smem %s0, 28
  %s57 = sld [smem:[%s56]]
  %s58 = scalar_lea.smem %s0, 29
  %s59 = sld [smem:[%s58]]
  %s60 = scalar_lea.smem %s0, 30
  %s61 = sld [smem:[%s60]]
  %62 = xla_tuple %s53, %s55, %s57, %s59, %s61
  %s63 = sld [smem:[#allocation0]]
  $region150: #{_lambda_.1} parent=0
    _
  %s65 = ssub.s32 1, %s63
  %s66 = scalar_select 0, %s65, %s63
  $region1: #{_lambda_.1} parent=0
    #allocation3 [shape = 'u8[1024]{0}', space=smem, size = 0x400, scoped, tag = 'input window, operand 0, single buffered']
    #allocation4 [shape = 's32[1]{0}', space=sflag, size = 0x4, scoped, tag = 'scoped memory for _lambda_.1']
    #allocation5 [shape = 's32[1]{0}', space=sflag, size = 0x4, scoped, tag = 'scoped memory for _lambda_.1']
    #allocation6 [shape = 'u8[8192]{0}', space=vmem, size = 0x2000, scoped, tag = 'output window, operand 0, single buffered']
    #allocation7 [shape = 'u8[1024]{0}', space=vmem, size = 0x400, scoped, tag = 'output window, operand 1, single buffered']
    #allocation8 [shape = 's32[1]{0}', space=sflag, size = 0x4, scoped, tag = 'scoped memory for _lambda_.1']
    #allocation9 [shape = 'u8[1024]{0}', space=vmem, size = 0x400, scoped, tag = 'output window, operand 2, single buffered']
    #allocation10 [shape = 'u8[16384]{0}', space=vmem, size = 0x4000, scoped, tag = 'output window, operand 3, single buffered']
    #allocation11 [shape = 's32[1]{0}', space=sflag, size = 0x4, scoped, tag = 'scoped memory for _lambda_.1']
    #allocation12 [shape = 'u8[16384]{0}', space=vmem, size = 0x4000, scoped, tag = 'output window, operand 4, single buffered']
    %67 = vsyncpa [#allocation5], 0
    %68 = vsyncpa [#allocation4], 0
    %69 = vsyncpa [#allocation8], 0
    %70 = vsyncpa [#allocation11], 0
    // Predicated region
    $region2: #{_lambda_.1} parent=1 // pred_check
      _
    $region3: #{_lambda_.1} parent=1 // pred_check_branch
      %72 = sbr.rel (0) target = $region5
    $region4: #{_lambda_.1} parent=1 // pred_region
      %74 = vsyncadd [#allocation5], 0
      %s76 = sshll.u32 %s1, 4
      %s77 = int_to_ptr.vmem [resolvable:$true] %s76
      %79 = dma.vmem_to_smem %s77, 32, [#allocation3], [#allocation5]
    $region5: #{_lambda_.1} parent=1 // pred_fallthru
      _
    // Predicated region
    $region6: #{_lambda_.1} parent=1 // pred_check
      _
    $region7: #{_lambda_.1} parent=1 // pred_check_branch
      %81 = sbr.rel (0) target = $region9
    $region8: #{_lambda_.1} parent=1 // pred_region
      _
    $region9: #{_lambda_.1} parent=1 // pred_fallthru
      _
    // Predicated region
    $region10: #{_lambda_.1} parent=1 // pred_check
      _
    $region11: #{_lambda_.1} parent=1 // pred_check_branch
      %83 = sbr.rel (0) target = $region13
    $region12: #{_lambda_.1} parent=1 // pred_region
      _
    $region13: #{_lambda_.1} parent=1 // pred_fallthru
      _
    // Predicated region
    $region14: #{_lambda_.1} parent=1 // pred_check
      _
    $region15: #{_lambda_.1} parent=1 // pred_check_branch
      %85 = sbr.rel (0) target = $region17
    $region16: #{_lambda_.1} parent=1 // pred_region
      _
    $region17: #{_lambda_.1} parent=1 // pred_fallthru
      _
    // Predicated region
    $region18: #{_lambda_.1} parent=1 // pred_check
      _
    $region19: #{_lambda_.1} parent=1 // pred_check_branch
      %87 = sbr.rel (0) target = $region21
    $region20: #{_lambda_.1} parent=1 // pred_region
      _
    $region21: #{_lambda_.1} parent=1 // pred_fallthru
      _
    // Predicated region
    $region22: #{_lambda_.1} parent=1 // pred_check
      _
    $region23: #{_lambda_.1} parent=1 // pred_check_branch
      %89 = sbr.rel (0) target = $region25
    $region24: #{_lambda_.1} parent=1 // pred_region
      _
    $region25: #{_lambda_.1} parent=1 // pred_fallthru
      _
    // Predicated region
    $region26: #{_lambda_.1} parent=1 // pred_check
      _
    $region27: #{_lambda_.1} parent=1 // pred_check_branch
      %91 = sbr.rel (0) target = $region29
    $region28: #{_lambda_.1} parent=1 // pred_region
      _
    $region29: #{_lambda_.1} parent=1 // pred_fallthru
      _
    // Predicated region
    $region30: #{_lambda_.1} parent=1 // pred_check
      _
    $region31: #{_lambda_.1} parent=1 // pred_check_branch
      %93 = sbr.rel (0) target = $region33
    $region32: #{_lambda_.1} parent=1 // pred_region
      _
    $region33: #{_lambda_.1} parent=1 // pred_fallthru
      _
    // Predicated region
    $region34: #{_lambda_.1} parent=1 // pred_check
      _
    $region35: #{_lambda_.1} parent=1 // pred_check_branch
      %95 = sbr.rel (0) target = $region37
    $region36: #{_lambda_.1} parent=1 // pred_region
      _
    $region37: #{_lambda_.1} parent=1 // pred_fallthru
      _
    // Predicated region
    $region38: #{_lambda_.1} parent=1 // pred_check
      _
    $region39: #{_lambda_.1} parent=1 // pred_check_branch
      %97 = sbr.rel (0) target = $region41
    $region40: #{_lambda_.1} parent=1 // pred_region
      _
    $region41: #{_lambda_.1} parent=1 // pred_fallthru
      _
    // Predicated region
    $region42: #{_lambda_.1} parent=1 // pred_check
      _
    $region43: #{_lambda_.1} parent=1 // pred_check_branch
      %99 = sbr.rel (0) target = $region45
    $region44: #{_lambda_.1} parent=1 // pred_region
      _
    $region45: #{_lambda_.1} parent=1 // pred_fallthru
      _
    // Predicated region
    $region46: #{_lambda_.1} parent=1 // pred_check
      _
    $region47: #{_lambda_.1} parent=1 // pred_check_branch
      %101 = sbr.rel (0) target = $region49
    $region48: #{_lambda_.1} parent=1 // pred_region
      _
    $region49: #{_lambda_.1} parent=1 // pred_fallthru
      _
    // Predicated region
    $region50: #{_lambda_.1} parent=1 // pred_check
      _
    $region51: #{_lambda_.1} parent=1 // pred_check_branch
      %103 = sbr.rel (0) target = $region53
    $region52: #{_lambda_.1} parent=1 // pred_region
      _
    $region53: #{_lambda_.1} parent=1 // pred_fallthru
      _
    // Predicated region
    $region54: #{_lambda_.1} parent=1 // pred_check
      _
    $region55: #{_lambda_.1} parent=1 // pred_check_branch
      %105 = sbr.rel (0) target = $region57
    $region56: #{_lambda_.1} parent=1 // pred_region
      _
    $region57: #{_lambda_.1} parent=1 // pred_fallthru
      _
    // Predicated region
    $region58: #{_lambda_.1} parent=1 // pred_check
      _
    $region59: #{_lambda_.1} parent=1 // pred_check_branch
      %107 = sbr.rel (0) target = $region61
    $region60: #{_lambda_.1} parent=1 // pred_region
      _
    $region61: #{_lambda_.1} parent=1 // pred_fallthru
      _
    // Predicated region
    $region62: #{_lambda_.1} parent=1 // pred_check
      _
    $region63: #{_lambda_.1} parent=1 // pred_check_branch
      %109 = sbr.rel (0) target = $region65
    $region64: #{_lambda_.1} parent=1 // pred_region
      _
    $region65: #{_lambda_.1} parent=1 // pred_fallthru
      _
    // Predicated region
    $region66: #{_lambda_.1} parent=1 // pred_check
      _
    $region67: #{_lambda_.1} parent=1 // pred_check_branch
      %111 = sbr.rel (0) target = $region69
    $region68: #{_lambda_.1} parent=1 // pred_region
      _
    $region69: #{_lambda_.1} parent=1 // pred_fallthru
      _
    // Predicated region
    $region70: #{_lambda_.1} parent=1 // pred_check
      _
    $region71: #{_lambda_.1} parent=1 // pred_check_branch
      %113 = sbr.rel (0) target = $region73
    $region72: #{_lambda_.1} parent=1 // pred_region
      _
    $region73: #{_lambda_.1} parent=1 // pred_fallthru
      _
    // Predicated region
    $region74: #{_lambda_.1} parent=1 // pred_check
      _
    $region75: #{_lambda_.1} parent=1 // pred_check_branch
      %115 = sbr.rel (0) target = $region77
    $region76: #{_lambda_.1} parent=1 // pred_region
      _
    $region77: #{_lambda_.1} parent=1 // pred_fallthru
      _
    // Predicated region
    $region78: #{_lambda_.1} parent=1 // pred_check
      _
    $region79: #{_lambda_.1} parent=1 // pred_check_branch
      %117 = sbr.rel (0) target = $region81
    $region80: #{_lambda_.1} parent=1 // pred_region
      _
    $region81: #{_lambda_.1} parent=1 // pred_fallthru
      _
    // Predicated region
    $region82: #{_lambda_.1} parent=1 // pred_check
      _
    $region83: #{_lambda_.1} parent=1 // pred_check_branch
      %119 = sbr.rel (0) target = $region85
    $region84: #{_lambda_.1} parent=1 // pred_region
      _
    $region85: #{_lambda_.1} parent=1 // pred_fallthru
      _
    // Predicated region
    $region86: #{_lambda_.1} parent=1 // pred_check
      _
    $region87: #{_lambda_.1} parent=1 // pred_check_branch
      %121 = sbr.rel (0) target = $region89
    $region88: #{_lambda_.1} parent=1 // pred_region
      _
    $region89: #{_lambda_.1} parent=1 // pred_fallthru
      _
    // Predicated region
    $region90: #{_lambda_.1} parent=1 // pred_check
      _
    $region91: #{_lambda_.1} parent=1 // pred_check_branch
      %123 = sbr.rel (0) target = $region93
    $region92: #{_lambda_.1} parent=1 // pred_region
      _
    $region93: #{_lambda_.1} parent=1 // pred_fallthru
      _
    // Predicated region
    $region94: #{_lambda_.1} parent=1 // pred_check
      _
    $region95: #{_lambda_.1} parent=1 // pred_check_branch
      %125 = sbr.rel (0) target = $region97
    $region96: #{_lambda_.1} parent=1 // pred_region
      _
    $region97: #{_lambda_.1} parent=1 // pred_fallthru
      _
    // Predicated region
    $region98: #{_lambda_.1} parent=1 // pred_check
      _
    $region99: #{_lambda_.1} parent=1 // pred_check_branch
      %127 = sbr.rel (0) target = $region101
    $region100: #{_lambda_.1} parent=1 // pred_region
      _
    $region101: #{_lambda_.1} parent=1 // pred_fallthru
      _
    // Predicated region
    $region102: #{_lambda_.1} parent=1 // pred_check
      _
    $region103: #{_lambda_.1} parent=1 // pred_check_branch
      %129 = sbr.rel (0) target = $region105
    $region104: #{_lambda_.1} parent=1 // pred_region
      _
    $region105: #{_lambda_.1} parent=1 // pred_fallthru
      _
    // Predicated region
    $region106: #{_lambda_.1} parent=1 // pred_check
      _
    $region107: #{_lambda_.1} parent=1 // pred_check_branch
      %131 = sbr.rel (0) target = $region109
    $region108: #{_lambda_.1} parent=1 // pred_region
      %133 = dma.done [#allocation5], 32
    $region109: #{_lambda_.1} parent=1 // pred_fallthru
      _
    %134 = sfence
    %s135 = sld [smem:[#allocation3]]
    %s136 = scalar_lea.vmem %s5, %s135
    %v137 = vld [vmem:[%s136] sm:$0x1]
    %vm138 = vcmask 253952
    %139 = vst.msk [vmem:[#allocation2] sm:$0x1] %vm138, %v137
    %s140 = sld [smem:[#allocation3 + $0x1]]
    %s141 = scalar_lea.vmem %s5, %s140
    %v142 = vld [vmem:[%s141] sm:$0x1]
    %143 = vst.msk [vmem:[#allocation2 + $0x1] sm:$0x1] %vm138, %v142
    %s144 = sld [smem:[#allocation3 + $0x2]]
    %s145 = scalar_lea.vmem %s5, %s144
    %v146 = vld [vmem:[%s145] sm:$0x1]
    %147 = vst.msk [vmem:[#allocation2 + $0x2] sm:$0x1] %vm138, %v146
    %s148 = sld [smem:[#allocation3 + $0x3]]
    %s149 = scalar_lea.vmem %s5, %s148
    %v150 = vld [vmem:[%s149] sm:$0x1]
    %151 = vst.msk [vmem:[#allocation2 + $0x3] sm:$0x1] %vm138, %v150
    %s152 = sld [smem:[#allocation3 + $0x4]]
    %s153 = scalar_lea.vmem %s5, %s152
    %v154 = vld [vmem:[%s153] sm:$0x1]
    %155 = vst.msk [vmem:[#allocation2 + $0x4] sm:$0x1] %vm138, %v154
    %s156 = sld [smem:[#allocation3 + $0x5]]
    %s157 = scalar_lea.vmem %s5, %s156
    %v158 = vld [vmem:[%s157] sm:$0x1]
    %159 = vst.msk [vmem:[#allocation2 + $0x5] sm:$0x1] %vm138, %v158
    %s160 = sld [smem:[#allocation3 + $0x6]]
    %s161 = scalar_lea.vmem %s5, %s160
    %v162 = vld [vmem:[%s161] sm:$0x1]
    %163 = vst.msk [vmem:[#allocation2 + $0x6] sm:$0x1] %vm138, %v162
    %s164 = sld [smem:[#allocation3 + $0x7]]
    %s165 = scalar_lea.vmem %s5, %s164
    %v166 = vld [vmem:[%s165] sm:$0x1]
    %167 = vst.msk [vmem:[#allocation2 + $0x7] sm:$0x1] %vm138, %v166
    %s168 = sld [smem:[#allocation3 + $0x80]]
    %s169 = scalar_lea.vmem %s5, %s168
    %v170 = vld [vmem:[%s169] sm:$0x1]
    %171 = vst.msk [vmem:[#allocation2 + $0x8] sm:$0x1] %vm138, %v170
    %s172 = sld [smem:[#allocation3 + $0x81]]
    %s173 = scalar_lea.vmem %s5, %s172
    %v174 = vld [vmem:[%s173] sm:$0x1]
    %175 = vst.msk [vmem:[#allocation2 + $0x9] sm:$0x1] %vm138, %v174
    %s176 = sld [smem:[#allocation3 + $0x82]]
    %s177 = scalar_lea.vmem %s5, %s176
    %v178 = vld [vmem:[%s177] sm:$0x1]
    %179 = vst.msk [vmem:[#allocation2 + $0xa] sm:$0x1] %vm138, %v178
    %s180 = sld [smem:[#allocation3 + $0x83]]
    %s181 = scalar_lea.vmem %s5, %s180
    %v182 = vld [vmem:[%s181] sm:$0x1]
    %183 = vst.msk [vmem:[#allocation2 + $0xb] sm:$0x1] %vm138, %v182
    %s184 = sld [smem:[#allocation3 + $0x84]]
    %s185 = scalar_lea.vmem %s5, %s184
    %v186 = vld [vmem:[%s185] sm:$0x1]
    %187 = vst.msk [vmem:[#allocation2 + $0xc] sm:$0x1] %vm138, %v186
    %s188 = sld [smem:[#allocation3 + $0x85]]
    %s189 = scalar_lea.vmem %s5, %s188
    %v190 = vld [vmem:[%s189] sm:$0x1]
    %191 = vst.msk [vmem:[#allocation2 + $0xd] sm:$0x1] %vm138, %v190
    %s192 = sld [smem:[#allocation3 + $0x86]]
    %s193 = scalar_lea.vmem %s5, %s192
    %v194 = vld [vmem:[%s193] sm:$0x1]
    %195 = vst.msk [vmem:[#allocation2 + $0xe] sm:$0x1] %vm138, %v194
    %s196 = sld [smem:[#allocation3 + $0x87]]
    %s197 = scalar_lea.vmem %s5, %s196
    %v198 = vld [vmem:[%s197] sm:$0x1]
    %199 = vst.msk [vmem:[#allocation2 + $0xf] sm:$0x1] %vm138, %v198
    %v200 = vld [vmem:[#allocation2] sm:$0xff]
    %v201 = vld [vmem:[#allocation2 + $0x8] sm:$0xff]
    %v202 = vld [vmem:[%s7] sm:$0xff]
    %v203 = vld [vmem:[%s7 + $0x8] sm:$0xff]
    %v204 = vadd.f32 %v200, %v202
    %v205 = vadd.f32 %v201, %v203
    %v206 = vld [vmem:[%s9] sm:$0x1]
    %v207 = vld [vmem:[%s11] sm:$0x1]
    %vm208 = vcmask 261120
    %v209 = vsel %vm208, %v204, 0.0
    %210 = vadd.xlane.f32.xlu0 %v209
    %v211 = vpop.xlane.xlu0 %210
    %v212 = vsel %vm208, %v205, 0.0
    %213 = vadd.xlane.f32.xlu0 %v212
    %v214 = vpop.xlane.xlu0 %213
    %v215 = vrcp.pop 32.0
    %v216 = vmul.f32 32.0, %v215
    %v217 = vsub.f32 1.0, %v216
    %v218 = vmul.f32 %v215, %v217
    %v219 = vadd.f32 %v215, %v218
    %vm220 = vweird.f32 %v215
    %v221 = vsel %vm220, %v215, %v219
    %v222 = vmul.f32 %v211, %v221
    %v223 = vmul.f32 %v214, %v221
    %v224 = vsub.f32 %v204, %v222
    %v225 = vsub.f32 %v205, %v223
    %v226 = vmul.f32 %v224, %v224
    %v227 = vmul.f32 %v225, %v225
    %v228 = vsel %vm208, %v226, 0.0
    %229 = vadd.xlane.f32.xlu0 %v228
    %v230 = vpop.xlane.xlu0 %229
    %v231 = vsel %vm208, %v227, 0.0
    %232 = vadd.xlane.f32.xlu0 %v231
    %v233 = vpop.xlane.xlu0 %232
    %v234 = vmul.f32 %v230, %v221
    %v235 = vmul.f32 %v233, %v221
    %v236 = vadd.f32 %v234, 1e-12
    %v237 = vadd.f32 %v235, 1e-12
    %v238 = vrsqrt.pop %v236
    %v239 = vmul.f32 %v238, %v236
    %v240 = vmul.f32 %v239, %v238
    %v241 = vmul.f32 0.5, %v240
    %v242 = vsub.f32 1.5, %v241
    %v243 = vmul.f32 %v238, %v242
    %vm244 = vweird.f32 %v236
    %vm245 = vweird.f32 %v238
    %vm246 = vmor %vm244, %vm245
    %v247 = vsel %vm246, %v238, %v243
    %v248 = vrsqrt.pop %v237
    %v249 = vmul.f32 %v248, %v237
    %v250 = vmul.f32 %v249, %v248
    %v251 = vmul.f32 0.5, %v250
    %v252 = vsub.f32 1.5, %v251
    %v253 = vmul.f32 %v248, %v252
    %vm254 = vweird.f32 %v237
    %vm255 = vweird.f32 %v248
    %vm256 = vmor %vm254, %vm255
    %v257 = vsel %vm256, %v248, %v253
    %v258 = vmul.f32 %v224, %v247
    %v259 = vmul.f32 %v225, %v257
    %v261 = vperm.slane %v206, 0
    %v263 = vmul.f32 %v258, %v261
    %v264 = vmul.f32 %v259, %v261
    %v266 = vperm.slane %v207, 0
    %v268 = vadd.f32 %v263, %v266
    %v269 = vadd.f32 %v264, %v266
    %v270 = vld [vmem:[%s3] sm:$0x3]
    %v271 = vsub.f32 1.0, %v270
    %v272 = vmul.f32 %v271, -10000.0
    %v273 = vld [vmem:[%s13] sm:$0xff]
    %v274 = vld [vmem:[%s13 + $0x8] sm:$0xff]
    %v275 = vld [vmem:[%s13 + $0x10] sm:$0xff]
    %v276 = vld [vmem:[%s13 + $0x18] sm:$0xff]
    %v277 = vld [vmem:[%s15] sm:$0x1]
    %v279 = vperm.slane %v277, 0
    %v282 = vsel %vm208, %v268, 0
    %284 = vmatpush.msra.mxu0 0.0
    %285 = vmatpush.msra.mxu0 0.0
    %286 = vmatpush.msra.mxu0 0.0
    %287 = vmatpush.msra.mxu0 0.0
    %288 = vmatpush.msra.mxu0 0.0
    %289 = vmatpush.msra.mxu0 0.0
    %290 = vmatpush.msra.mxu0 0.0
    %291 = vmatpush.msra.mxu0 0.0
    %292 = vmatpush.msra.mxu0 0.0
    %293 = vmatpush.msra.mxu0 0.0
    %294 = vmatpush.msra.mxu0 0.0
    %295 = vmatpush.msra.mxu0 0.0
    %296 = vmatpush.msra.mxu0 %v276
    %297 = vmatpush.msra.mxu0 %v275
    %298 = vmatpush.msra.mxu0 %v274
    %299 = vmatpush.msra.mxu0 %v273
    %300 = vmatmul.f32.gmra.mxu0 %v282
    %v301 = vpop.f32.mrf.mxu0
    %v302 = vadd.f32 %v279, %v301
    %303 = vdwg.mxu0
    %v304 = vld [vmem:[%s17] sm:$0xff]
    %v305 = vld [vmem:[%s17 + $0x8] sm:$0xff]
    %v306 = vld [vmem:[%s17 + $0x10] sm:$0xff]
    %v307 = vld [vmem:[%s17 + $0x18] sm:$0xff]
    %v308 = vld [vmem:[%s19] sm:$0x1]
    %v310 = vperm.slane %v308, 0
    %312 = vmatpush.msra.mxu0 0.0
    %313 = vmatpush.msra.mxu0 0.0
    %314 = vmatpush.msra.mxu0 0.0
    %315 = vmatpush.msra.mxu0 0.0
    %316 = vmatpush.msra.mxu0 0.0
    %317 = vmatpush.msra.mxu0 0.0
    %318 = vmatpush.msra.mxu0 0.0
    %319 = vmatpush.msra.mxu0 0.0
    %320 = vmatpush.msra.mxu0 0.0
    %321 = vmatpush.msra.mxu0 0.0
    %322 = vmatpush.msra.mxu0 0.0
    %323 = vmatpush.msra.mxu0 0.0
    %324 = vmatpush.msra.mxu0 %v307
    %325 = vmatpush.msra.mxu0 %v306
    %326 = vmatpush.msra.mxu0 %v305
    %327 = vmatpush.msra.mxu0 %v304
    %328 = vmatmul.f32.gmra.mxu0 %v282
    %v329 = vpop.f32.mrf.mxu0
    %v330 = vadd.f32 %v310, %v329
    %331 = vdwg.mxu0
    %v332 = vld [vmem:[%s21] sm:$0xff]
    %v333 = vld [vmem:[%s21 + $0x8] sm:$0xff]
    %v334 = vld [vmem:[%s21 + $0x10] sm:$0xff]
    %v335 = vld [vmem:[%s21 + $0x18] sm:$0xff]
    %v336 = vld [vmem:[%s23] sm:$0x1]
    %v338 = vperm.slane %v336, 0
    %340 = vmatpush.msra.mxu0 0.0
    %341 = vmatpush.msra.mxu0 0.0
    %342 = vmatpush.msra.mxu0 0.0
    %343 = vmatpush.msra.mxu0 0.0
    %344 = vmatpush.msra.mxu0 0.0
    %345 = vmatpush.msra.mxu0 0.0
    %346 = vmatpush.msra.mxu0 0.0
    %347 = vmatpush.msra.mxu0 0.0
    %348 = vmatpush.msra.mxu0 0.0
    %349 = vmatpush.msra.mxu0 0.0
    %350 = vmatpush.msra.mxu0 0.0
    %351 = vmatpush.msra.mxu0 0.0
    %352 = vmatpush.msra.mxu0 %v335
    %353 = vmatpush.msra.mxu0 %v334
    %354 = vmatpush.msra.mxu0 %v333
    %355 = vmatpush.msra.mxu0 %v332
    %356 = vmatmul.f32.gmra.mxu0 %v282
    %v357 = vpop.f32.mrf.mxu0
    %v358 = vadd.f32 %v338, %v357
    %359 = vdwg.mxu0
    %v360 = vperm.slane %v272, 0
    %vm361 = vcmask 130048
    %v363 = vsel %vm361, %v302, 0
    %v366 = vsel %vm361, %v330, 0
    %368 = vmatpush.xpose.msra.mxu0 0.0
    %369 = vmatpush.xpose.msra.mxu0 0.0
    %370 = vmatpush.xpose.msra.mxu0 0.0
    %371 = vmatpush.xpose.msra.mxu0 0.0
    %372 = vmatpush.xpose.msra.mxu0 0.0
    %373 = vmatpush.xpose.msra.mxu0 0.0
    %374 = vmatpush.xpose.msra.mxu0 0.0
    %375 = vmatpush.xpose.msra.mxu0 0.0
    %376 = vmatpush.xpose.msra.mxu0 0.0
    %377 = vmatpush.xpose.msra.mxu0 0.0
    %378 = vmatpush.xpose.msra.mxu0 0.0
    %379 = vmatpush.xpose.msra.mxu0 0.0
    %380 = vmatpush.xpose.msra.mxu0 0.0
    %381 = vmatpush.xpose.msra.mxu0 0.0
    %382 = vmatpush.xpose.msra.mxu0 0.0
    %383 = vmatpush.xpose.msra.mxu0 %v366
    %384 = vmatmul.f32.gmra.mxu0 %v363
    %v385 = vpop.f32.mrf.mxu0
    %v386 = vadd.f32 %v360, %v385
    %387 = vdwg.mxu0
    %vm388 = vcmask 64512
    %v389 = vsel %vm388, %v386, -inf
    %390 = vmax.xlane.f32.xlu0 %v389
    %v391 = vpop.xlane.xlu0 %390
    %v392 = vsub.f32 %v386, %v391
    %v393 = vmul.f32 %v392, 1.442695
    %v394 = vpow.pop %v393
    %v395 = vsel %vm388, %v394, 0.0
    %396 = vadd.xlane.f32.xlu0 %v395
    %v397 = vpop.xlane.xlu0 %396
    %v398 = vrcp.pop %v397
    %v399 = vmul.f32 %v397, %v398
    %v400 = vsub.f32 1.0, %v399
    %v401 = vmul.f32 %v398, %v400
    %v402 = vadd.f32 %v398, %v401
    %vm403 = vweird.f32 %v397
    %vm404 = vweird.f32 %v398
    %vm405 = vmor %vm403, %vm404
    %v406 = vsel %vm405, %v398, %v402
    %v407 = vand.u32 2147483647, %v397
    %vm408 = vcmp.eq.f32.partialorder %v407, 8.507059e+37
    %v409 = vand.u32 %v397, 2147483648
    %v410 = vor.u32 1.1754944e-38, %v409
    %v411 = vsel %vm408, %v410, %v406
    %v412 = vmul.f32 %v394, %v411
    %413 = vst.msk [vmem:[#allocation10] sm:$0xff] %vm388, %v412
    %v415 = vsel %vm388, %v412, 0
    %417 = vmatpush.msra.mxu0 0.0
    %418 = vmatpush.msra.mxu0 0.0
    %419 = vmatpush.msra.mxu0 0.0
    %420 = vmatpush.msra.mxu0 0.0
    %421 = vmatpush.msra.mxu0 0.0
    %422 = vmatpush.msra.mxu0 0.0
    %423 = vmatpush.msra.mxu0 0.0
    %424 = vmatpush.msra.mxu0 0.0
    %425 = vmatpush.msra.mxu0 0.0
    %426 = vmatpush.msra.mxu0 0.0
    %427 = vmatpush.msra.mxu0 0.0
    %428 = vmatpush.msra.mxu0 0.0
    %429 = vmatpush.msra.mxu0 0.0
    %430 = vmatpush.msra.mxu0 0.0
    %431 = vmatpush.msra.mxu0 0.0
    %432 = vmatpush.msra.mxu0 %v358
    %433 = vmatmul.f32.gmra.mxu0 %v415
    %v434 = vpop.f32.mrf.mxu0
    %v435 = vadd.f32 0.0, %v434
    %436 = vdwg.mxu0
    %v437 = vld [vmem:[%s25] sm:$0xff]
    %v438 = vld [vmem:[%s25 + $0x8] sm:$0xff]
    %s439 = scalar_lea.vmem %s13, 32
    %v440 = vld [vmem:[%s439] sm:$0xff]
    %v441 = vld [vmem:[%s439 + $0x8] sm:$0xff]
    %v442 = vld [vmem:[%s439 + $0x10] sm:$0xff]
    %v443 = vld [vmem:[%s439 + $0x18] sm:$0xff]
    %s444 = scalar_lea.vmem %s15, 1
    %v445 = vld [vmem:[%s444] sm:$0x1]
    %v447 = vperm.slane %v445, 0
    %449 = vmatpush.msra.mxu0 0.0
    %450 = vmatpush.msra.mxu0 0.0
    %451 = vmatpush.msra.mxu0 0.0
    %452 = vmatpush.msra.mxu0 0.0
    %453 = vmatpush.msra.mxu0 0.0
    %454 = vmatpush.msra.mxu0 0.0
    %455 = vmatpush.msra.mxu0 0.0
    %456 = vmatpush.msra.mxu0 0.0
    %457 = vmatpush.msra.mxu0 0.0
    %458 = vmatpush.msra.mxu0 0.0
    %459 = vmatpush.msra.mxu0 0.0
    %460 = vmatpush.msra.mxu0 0.0
    %461 = vmatpush.msra.mxu0 %v443
    %462 = vmatpush.msra.mxu0 %v442
    %463 = vmatpush.msra.mxu0 %v441
    %464 = vmatpush.msra.mxu0 %v440
    %465 = vmatmul.f32.gmra.mxu0 %v282
    %v466 = vpop.f32.mrf.mxu0
    %v467 = vadd.f32 %v447, %v466
    %468 = vdwg.mxu0
    %s469 = scalar_lea.vmem %s17, 32
    %v470 = vld [vmem:[%s469] sm:$0xff]
    %v471 = vld [vmem:[%s469 + $0x8] sm:$0xff]
    %v472 = vld [vmem:[%s469 + $0x10] sm:$0xff]
    %v473 = vld [vmem:[%s469 + $0x18] sm:$0xff]
    %s474 = scalar_lea.vmem %s19, 1
    %v475 = vld [vmem:[%s474] sm:$0x1]
    %v477 = vperm.slane %v475, 0
    %479 = vmatpush.msra.mxu0 0.0
    %480 = vmatpush.msra.mxu0 0.0
    %481 = vmatpush.msra.mxu0 0.0
    %482 = vmatpush.msra.mxu0 0.0
    %483 = vmatpush.msra.mxu0 0.0
    %484 = vmatpush.msra.mxu0 0.0
    %485 = vmatpush.msra.mxu0 0.0
    %486 = vmatpush.msra.mxu0 0.0
    %487 = vmatpush.msra.mxu0 0.0
    %488 = vmatpush.msra.mxu0 0.0
    %489 = vmatpush.msra.mxu0 0.0
    %490 = vmatpush.msra.mxu0 0.0
    %491 = vmatpush.msra.mxu0 %v473
    %492 = vmatpush.msra.mxu0 %v472
    %493 = vmatpush.msra.mxu0 %v471
    %494 = vmatpush.msra.mxu0 %v470
    %495 = vmatmul.f32.gmra.mxu0 %v282
    %v496 = vpop.f32.mrf.mxu0
    %v497 = vadd.f32 %v477, %v496
    %498 = vdwg.mxu0
    %s499 = scalar_lea.vmem %s21, 32
    %v500 = vld [vmem:[%s499] sm:$0xff]
    %v501 = vld [vmem:[%s499 + $0x8] sm:$0xff]
    %v502 = vld [vmem:[%s499 + $0x10] sm:$0xff]
    %v503 = vld [vmem:[%s499 + $0x18] sm:$0xff]
    %s504 = scalar_lea.vmem %s23, 1
    %v505 = vld [vmem:[%s504] sm:$0x1]
    %v507 = vperm.slane %v505, 0
    %509 = vmatpush.msra.mxu0 0.0
    %510 = vmatpush.msra.mxu0 0.0
    %511 = vmatpush.msra.mxu0 0.0
    %512 = vmatpush.msra.mxu0 0.0
    %513 = vmatpush.msra.mxu0 0.0
    %514 = vmatpush.msra.mxu0 0.0
    %515 = vmatpush.msra.mxu0 0.0
    %516 = vmatpush.msra.mxu0 0.0
    %517 = vmatpush.msra.mxu0 0.0
    %518 = vmatpush.msra.mxu0 0.0
    %519 = vmatpush.msra.mxu0 0.0
    %520 = vmatpush.msra.mxu0 0.0
    %521 = vmatpush.msra.mxu0 %v503
    %522 = vmatpush.msra.mxu0 %v502
    %523 = vmatpush.msra.mxu0 %v501
    %524 = vmatpush.msra.mxu0 %v500
    %525 = vmatmul.f32.gmra.mxu0 %v282
    %v526 = vpop.f32.mrf.mxu0
    %v527 = vadd.f32 %v507, %v526
    %528 = vdwg.mxu0
    %v530 = vsel %vm361, %v467, 0
    %v533 = vsel %vm361, %v497, 0
    %535 = vmatpush.xpose.msra.mxu0 0.0
    %536 = vmatpush.xpose.msra.mxu0 0.0
    %537 = vmatpush.xpose.msra.mxu0 0.0
    %538 = vmatpush.xpose.msra.mxu0 0.0
    %539 = vmatpush.xpose.msra.mxu0 0.0
    %540 = vmatpush.xpose.msra.mxu0 0.0
    %541 = vmatpush.xpose.msra.mxu0 0.0
    %542 = vmatpush.xpose.msra.mxu0 0.0
    %543 = vmatpush.xpose.msra.mxu0 0.0
    %544 = vmatpush.xpose.msra.mxu0 0.0
    %545 = vmatpush.xpose.msra.mxu0 0.0
    %546 = vmatpush.xpose.msra.mxu0 0.0
    %547 = vmatpush.xpose.msra.mxu0 0.0
    %548 = vmatpush.xpose.msra.mxu0 0.0
    %549 = vmatpush.xpose.msra.mxu0 0.0
    %550 = vmatpush.xpose.msra.mxu0 %v533
    %551 = vmatmul.f32.gmra.mxu0 %v530
    %v552 = vpop.f32.mrf.mxu0
    %v553 = vadd.f32 %v360, %v552
    %554 = vdwg.mxu0
    %v555 = vsel %vm388, %v553, -inf
    %556 = vmax.xlane.f32.xlu0 %v555
    %v557 = vpop.xlane.xlu0 %556
    %v558 = vsub.f32 %v553, %v557
    %v559 = vmul.f32 %v558, 1.442695
    %v560 = vpow.pop %v559
    %v561 = vsel %vm388, %v560, 0.0
    %562 = vadd.xlane.f32.xlu0 %v561
    %v563 = vpop.xlane.xlu0 %562
    %v564 = vrcp.pop %v563
    %v565 = vmul.f32 %v563, %v564
    %v566 = vsub.f32 1.0, %v565
    %v567 = vmul.f32 %v564, %v566
    %v568 = vadd.f32 %v564, %v567
    %vm569 = vweird.f32 %v563
    %vm570 = vweird.f32 %v564
    %vm571 = vmor %vm569, %vm570
    %v572 = vsel %vm571, %v564, %v568
    %v573 = vand.u32 2147483647, %v563
    %vm574 = vcmp.eq.f32.partialorder %v573, 8.507059e+37
    %v575 = vand.u32 %v563, 2147483648
    %v576 = vor.u32 1.1754944e-38, %v575
    %v577 = vsel %vm574, %v576, %v572
    %v578 = vmul.f32 %v560, %v577
    %s579 = scalar_lea.vmem [#allocation10], 8
    %580 = vst.msk [vmem:[%s579] sm:$0xff] %vm388, %v578
    %v582 = vsel %vm388, %v578, 0
    %584 = vmatpush.msra.mxu0 0.0
    %585 = vmatpush.msra.mxu0 0.0
    %586 = vmatpush.msra.mxu0 0.0
    %587 = vmatpush.msra.mxu0 0.0
    %588 = vmatpush.msra.mxu0 0.0
    %589 = vmatpush.msra.mxu0 0.0
    %590 = vmatpush.msra.mxu0 0.0
    %591 = vmatpush.msra.mxu0 0.0
    %592 = vmatpush.msra.mxu0 0.0
    %593 = vmatpush.msra.mxu0 0.0
    %594 = vmatpush.msra.mxu0 0.0
    %595 = vmatpush.msra.mxu0 0.0
    %596 = vmatpush.msra.mxu0 0.0
    %597 = vmatpush.msra.mxu0 0.0
    %598 = vmatpush.msra.mxu0 0.0
    %599 = vmatpush.msra.mxu0 %v527
    %600 = vmatmul.f32.gmra.mxu0 %v582
    %v601 = vpop.f32.mrf.mxu0
    %v602 = vadd.f32 0.0, %v601
    %603 = vdwg.mxu0
    %s604 = scalar_lea.vmem %s25, 16
    %v605 = vld [vmem:[%s604] sm:$0xff]
    %v606 = vld [vmem:[%s604 + $0x8] sm:$0xff]
    %v608 = vsel %vm361, %v602, 0
    %610 = vmatpush.msra.mxu0 0.0
    %611 = vmatpush.msra.mxu0 0.0
    %612 = vmatpush.msra.mxu0 0.0
    %613 = vmatpush.msra.mxu0 0.0
    %614 = vmatpush.msra.mxu0 0.0
    %615 = vmatpush.msra.mxu0 0.0
    %616 = vmatpush.msra.mxu0 0.0
    %617 = vmatpush.msra.mxu0 0.0
    %618 = vmatpush.msra.mxu0 0.0
    %619 = vmatpush.msra.mxu0 0.0
    %620 = vmatpush.msra.mxu0 0.0
    %621 = vmatpush.msra.mxu0 0.0
    %622 = vmatpush.msra.mxu0 0.0
    %623 = vmatpush.msra.mxu0 0.0
    %624 = vmatpush.msra.mxu0 %v606
    %625 = vmatpush.msra.mxu0 %v605
    %626 = vmatmul.f32.gmra.mxu0 %v608
    %v627 = vpop.f32.mrf.mxu0
    %v628 = vadd.f32 0.0, %v627
    %629 = vdwg.mxu0
    %v631 = vsel %vm361, %v435, 0
    %633 = vmatpush.msra.mxu0 0.0
    %634 = vmatpush.msra.mxu0 0.0
    %635 = vmatpush.msra.mxu0 0.0
    %636 = vmatpush.msra.mxu0 0.0
    %637 = vmatpush.msra.mxu0 0.0
    %638 = vmatpush.msra.mxu0 0.0
    %639 = vmatpush.msra.mxu0 0.0
    %640 = vmatpush.msra.mxu0 0.0
    %641 = vmatpush.msra.mxu0 0.0
    %642 = vmatpush.msra.mxu0 0.0
    %643 = vmatpush.msra.mxu0 0.0
    %644 = vmatpush.msra.mxu0 0.0
    %645 = vmatpush.msra.mxu0 0.0
    %646 = vmatpush.msra.mxu0 0.0
    %647 = vmatpush.msra.mxu0 %v438
    %648 = vmatpush.msra.mxu0 %v437
    %649 = vmatmul.f32.gmra.mxu0 %v631
    %v650 = vpop.f32.mrf.mxu0
    %v651 = vadd.f32 %v628, %v650
    %652 = vdwg.mxu0
    %v653 = vld [vmem:[%s13] sm:$0xff]
    %v654 = vld [vmem:[%s13 + $0x8] sm:$0xff]
    %v655 = vld [vmem:[%s13 + $0x10] sm:$0xff]
    %v656 = vld [vmem:[%s13 + $0x18] sm:$0xff]
    %v657 = vld [vmem:[%s15] sm:$0x1]
    %v659 = vperm.slane %v657, 0
    %v662 = vsel %vm208, %v269, 0
    %664 = vmatpush.msra.mxu0 0.0
    %665 = vmatpush.msra.mxu0 0.0
    %666 = vmatpush.msra.mxu0 0.0
    %667 = vmatpush.msra.mxu0 0.0
    %668 = vmatpush.msra.mxu0 0.0
    %669 = vmatpush.msra.mxu0 0.0
    %670 = vmatpush.msra.mxu0 0.0
    %671 = vmatpush.msra.mxu0 0.0
    %672 = vmatpush.msra.mxu0 0.0
    %673 = vmatpush.msra.mxu0 0.0
    %674 = vmatpush.msra.mxu0 0.0
    %675 = vmatpush.msra.mxu0 0.0
    %676 = vmatpush.msra.mxu0 %v656
    %677 = vmatpush.msra.mxu0 %v655
    %678 = vmatpush.msra.mxu0 %v654
    %679 = vmatpush.msra.mxu0 %v653
    %680 = vmatmul.f32.gmra.mxu0 %v662
    %v681 = vpop.f32.mrf.mxu0
    %v682 = vadd.f32 %v659, %v681
    %683 = vdwg.mxu0
    %v684 = vld [vmem:[%s17] sm:$0xff]
    %v685 = vld [vmem:[%s17 + $0x8] sm:$0xff]
    %v686 = vld [vmem:[%s17 + $0x10] sm:$0xff]
    %v687 = vld [vmem:[%s17 + $0x18] sm:$0xff]
    %v688 = vld [vmem:[%s19] sm:$0x1]
    %v690 = vperm.slane %v688, 0
    %692 = vmatpush.msra.mxu0 0.0
    %693 = vmatpush.msra.mxu0 0.0
    %694 = vmatpush.msra.mxu0 0.0
    %695 = vmatpush.msra.mxu0 0.0
    %696 = vmatpush.msra.mxu0 0.0
    %697 = vmatpush.msra.mxu0 0.0
    %698 = vmatpush.msra.mxu0 0.0
    %699 = vmatpush.msra.mxu0 0.0
    %700 = vmatpush.msra.mxu0 0.0
    %701 = vmatpush.msra.mxu0 0.0
    %702 = vmatpush.msra.mxu0 0.0
    %703 = vmatpush.msra.mxu0 0.0
    %704 = vmatpush.msra.mxu0 %v687
    %705 = vmatpush.msra.mxu0 %v686
    %706 = vmatpush.msra.mxu0 %v685
    %707 = vmatpush.msra.mxu0 %v684
    %708 = vmatmul.f32.gmra.mxu0 %v662
    %v709 = vpop.f32.mrf.mxu0
    %v710 = vadd.f32 %v690, %v709
    %711 = vdwg.mxu0
    %v712 = vld [vmem:[%s21] sm:$0xff]
    %v713 = vld [vmem:[%s21 + $0x8] sm:$0xff]
    %v714 = vld [vmem:[%s21 + $0x10] sm:$0xff]
    %v715 = vld [vmem:[%s21 + $0x18] sm:$0xff]
    %v716 = vld [vmem:[%s23] sm:$0x1]
    %v718 = vperm.slane %v716, 0
    %720 = vmatpush.msra.mxu0 0.0
    %721 = vmatpush.msra.mxu0 0.0
    %722 = vmatpush.msra.mxu0 0.0
    %723 = vmatpush.msra.mxu0 0.0
    %724 = vmatpush.msra.mxu0 0.0
    %725 = vmatpush.msra.mxu0 0.0
    %726 = vmatpush.msra.mxu0 0.0
    %727 = vmatpush.msra.mxu0 0.0
    %728 = vmatpush.msra.mxu0 0.0
    %729 = vmatpush.msra.mxu0 0.0
    %730 = vmatpush.msra.mxu0 0.0
    %731 = vmatpush.msra.mxu0 0.0
    %732 = vmatpush.msra.mxu0 %v715
    %733 = vmatpush.msra.mxu0 %v714
    %734 = vmatpush.msra.mxu0 %v713
    %735 = vmatpush.msra.mxu0 %v712
    %736 = vmatmul.f32.gmra.mxu0 %v662
    %v737 = vpop.f32.mrf.mxu0
    %v738 = vadd.f32 %v718, %v737
    %739 = vdwg.mxu0
    %v740 = vperm.slane %v272, 1
    %v742 = vsel %vm361, %v682, 0
    %v745 = vsel %vm361, %v710, 0
    %747 = vmatpush.xpose.msra.mxu0 0.0
    %748 = vmatpush.xpose.msra.mxu0 0.0
    %749 = vmatpush.xpose.msra.mxu0 0.0
    %750 = vmatpush.xpose.msra.mxu0 0.0
    %751 = vmatpush.xpose.msra.mxu0 0.0
    %752 = vmatpush.xpose.msra.mxu0 0.0
    %753 = vmatpush.xpose.msra.mxu0 0.0
    %754 = vmatpush.xpose.msra.mxu0 0.0
    %755 = vmatpush.xpose.msra.mxu0 0.0
    %756 = vmatpush.xpose.msra.mxu0 0.0
    %757 = vmatpush.xpose.msra.mxu0 0.0
    %758 = vmatpush.xpose.msra.mxu0 0.0
    %759 = vmatpush.xpose.msra.mxu0 0.0
    %760 = vmatpush.xpose.msra.mxu0 0.0
    %761 = vmatpush.xpose.msra.mxu0 0.0
    %762 = vmatpush.xpose.msra.mxu0 %v745
    %763 = vmatmul.f32.gmra.mxu0 %v742
    %v764 = vpop.f32.mrf.mxu0
    %v765 = vadd.f32 %v740, %v764
    %766 = vdwg.mxu0
    %v767 = vsel %vm388, %v765, -inf
    %768 = vmax.xlane.f32.xlu0 %v767
    %v769 = vpop.xlane.xlu0 %768
    %v770 = vsub.f32 %v765, %v769
    %v771 = vmul.f32 %v770, 1.442695
    %v772 = vpow.pop %v771
    %v773 = vsel %vm388, %v772, 0.0
    %774 = vadd.xlane.f32.xlu0 %v773
    %v775 = vpop.xlane.xlu0 %774
    %v776 = vrcp.pop %v775
    %v777 = vmul.f32 %v775, %v776
    %v778 = vsub.f32 1.0, %v777
    %v779 = vmul.f32 %v776, %v778
    %v780 = vadd.f32 %v776, %v779
    %vm781 = vweird.f32 %v775
    %vm782 = vweird.f32 %v776
    %vm783 = vmor %vm781, %vm782
    %v784 = vsel %vm783, %v776, %v780
    %v785 = vand.u32 2147483647, %v775
    %vm786 = vcmp.eq.f32.partialorder %v785, 8.507059e+37
    %v787 = vand.u32 %v775, 2147483648
    %v788 = vor.u32 1.1754944e-38, %v787
    %v789 = vsel %vm786, %v788, %v784
    %v790 = vmul.f32 %v772, %v789
    %s791 = scalar_lea.vmem [#allocation10], 16
    %792 = vst.msk [vmem:[%s791] sm:$0xff] %vm388, %v790
    %v794 = vsel %vm388, %v790, 0
    %796 = vmatpush.msra.mxu0 0.0
    %797 = vmatpush.msra.mxu0 0.0
    %798 = vmatpush.msra.mxu0 0.0
    %799 = vmatpush.msra.mxu0 0.0
    %800 = vmatpush.msra.mxu0 0.0
    %801 = vmatpush.msra.mxu0 0.0
    %802 = vmatpush.msra.mxu0 0.0
    %803 = vmatpush.msra.mxu0 0.0
    %804 = vmatpush.msra.mxu0 0.0
    %805 = vmatpush.msra.mxu0 0.0
    %806 = vmatpush.msra.mxu0 0.0
    %807 = vmatpush.msra.mxu0 0.0
    %808 = vmatpush.msra.mxu0 0.0
    %809 = vmatpush.msra.mxu0 0.0
    %810 = vmatpush.msra.mxu0 0.0
    %811 = vmatpush.msra.mxu0 %v738
    %812 = vmatmul.f32.gmra.mxu0 %v794
    %v813 = vpop.f32.mrf.mxu0
    %v814 = vadd.f32 0.0, %v813
    %815 = vdwg.mxu0
    %v816 = vld [vmem:[%s25] sm:$0xff]
    %v817 = vld [vmem:[%s25 + $0x8] sm:$0xff]
    %v818 = vld [vmem:[%s439] sm:$0xff]
    %v819 = vld [vmem:[%s439 + $0x8] sm:$0xff]
    %v820 = vld [vmem:[%s439 + $0x10] sm:$0xff]
    %v821 = vld [vmem:[%s439 + $0x18] sm:$0xff]
    %v822 = vld [vmem:[%s444] sm:$0x1]
    %v824 = vperm.slane %v822, 0
    %826 = vmatpush.msra.mxu0 0.0
    %827 = vmatpush.msra.mxu0 0.0
    %828 = vmatpush.msra.mxu0 0.0
    %829 = vmatpush.msra.mxu0 0.0
    %830 = vmatpush.msra.mxu0 0.0
    %831 = vmatpush.msra.mxu0 0.0
    %832 = vmatpush.msra.mxu0 0.0
    %833 = vmatpush.msra.mxu0 0.0
    %834 = vmatpush.msra.mxu0 0.0
    %835 = vmatpush.msra.mxu0 0.0
    %836 = vmatpush.msra.mxu0 0.0
    %837 = vmatpush.msra.mxu0 0.0
    %838 = vmatpush.msra.mxu0 %v821
    %839 = vmatpush.msra.mxu0 %v820
    %840 = vmatpush.msra.mxu0 %v819
    %841 = vmatpush.msra.mxu0 %v818
    %842 = vmatmul.f32.gmra.mxu0 %v662
    %v843 = vpop.f32.mrf.mxu0
    %v844 = vadd.f32 %v824, %v843
    %845 = vdwg.mxu0
    %v846 = vld [vmem:[%s469] sm:$0xff]
    %v847 = vld [vmem:[%s469 + $0x8] sm:$0xff]
    %v848 = vld [vmem:[%s469 + $0x10] sm:$0xff]
    %v849 = vld [vmem:[%s469 + $0x18] sm:$0xff]
    %v850 = vld [vmem:[%s474] sm:$0x1]
    %v852 = vperm.slane %v850, 0
    %854 = vmatpush.msra.mxu0 0.0
    %855 = vmatpush.msra.mxu0 0.0
    %856 = vmatpush.msra.mxu0 0.0
    %857 = vmatpush.msra.mxu0 0.0
    %858 = vmatpush.msra.mxu0 0.0
    %859 = vmatpush.msra.mxu0 0.0
    %860 = vmatpush.msra.mxu0 0.0
    %861 = vmatpush.msra.mxu0 0.0
    %862 = vmatpush.msra.mxu0 0.0
    %863 = vmatpush.msra.mxu0 0.0
    %864 = vmatpush.msra.mxu0 0.0
    %865 = vmatpush.msra.mxu0 0.0
    %866 = vmatpush.msra.mxu0 %v849
    %867 = vmatpush.msra.mxu0 %v848
    %868 = vmatpush.msra.mxu0 %v847
    %869 = vmatpush.msra.mxu0 %v846
    %870 = vmatmul.f32.gmra.mxu0 %v662
    %v871 = vpop.f32.mrf.mxu0
    %v872 = vadd.f32 %v852, %v871
    %873 = vdwg.mxu0
    %v874 = vld [vmem:[%s499] sm:$0xff]
    %v875 = vld [vmem:[%s499 + $0x8] sm:$0xff]
    %v876 = vld [vmem:[%s499 + $0x10] sm:$0xff]
    %v877 = vld [vmem:[%s499 + $0x18] sm:$0xff]
    %v878 = vld [vmem:[%s504] sm:$0x1]
    %v880 = vperm.slane %v878, 0
    %882 = vmatpush.msra.mxu0 0.0
    %883 = vmatpush.msra.mxu0 0.0
    %884 = vmatpush.msra.mxu0 0.0
    %885 = vmatpush.msra.mxu0 0.0
    %886 = vmatpush.msra.mxu0 0.0
    %887 = vmatpush.msra.mxu0 0.0
    %888 = vmatpush.msra.mxu0 0.0
    %889 = vmatpush.msra.mxu0 0.0
    %890 = vmatpush.msra.mxu0 0.0
    %891 = vmatpush.msra.mxu0 0.0
    %892 = vmatpush.msra.mxu0 0.0
    %893 = vmatpush.msra.mxu0 0.0
    %894 = vmatpush.msra.mxu0 %v877
    %895 = vmatpush.msra.mxu0 %v876
    %896 = vmatpush.msra.mxu0 %v875
    %897 = vmatpush.msra.mxu0 %v874
    %898 = vmatmul.f32.gmra.mxu0 %v662
    %v899 = vpop.f32.mrf.mxu0
    %v900 = vadd.f32 %v880, %v899
    %901 = vdwg.mxu0
    %v903 = vsel %vm361, %v844, 0
    %v906 = vsel %vm361, %v872, 0
    %908 = vmatpush.xpose.msra.mxu0 0.0
    %909 = vmatpush.xpose.msra.mxu0 0.0
    %910 = vmatpush.xpose.msra.mxu0 0.0
    %911 = vmatpush.xpose.msra.mxu0 0.0
    %912 = vmatpush.xpose.msra.mxu0 0.0
    %913 = vmatpush.xpose.msra.mxu0 0.0
    %914 = vmatpush.xpose.msra.mxu0 0.0
    %915 = vmatpush.xpose.msra.mxu0 0.0
    %916 = vmatpush.xpose.msra.mxu0 0.0
    %917 = vmatpush.xpose.msra.mxu0 0.0
    %918 = vmatpush.xpose.msra.mxu0 0.0
    %919 = vmatpush.xpose.msra.mxu0 0.0
    %920 = vmatpush.xpose.msra.mxu0 0.0
    %921 = vmatpush.xpose.msra.mxu0 0.0
    %922 = vmatpush.xpose.msra.mxu0 0.0
    %923 = vmatpush.xpose.msra.mxu0 %v906
    %924 = vmatmul.f32.gmra.mxu0 %v903
    %v925 = vpop.f32.mrf.mxu0
    %v926 = vadd.f32 %v740, %v925
    %927 = vdwg.mxu0
    %v928 = vsel %vm388, %v926, -inf
    %929 = vmax.xlane.f32.xlu0 %v928
    %v930 = vpop.xlane.xlu0 %929
    %v931 = vsub.f32 %v926, %v930
    %v932 = vmul.f32 %v931, 1.442695
    %v933 = vpow.pop %v932
    %v934 = vsel %vm388, %v933, 0.0
    %935 = vadd.xlane.f32.xlu0 %v934
    %v936 = vpop.xlane.xlu0 %935
    %v937 = vrcp.pop %v936
    %v938 = vmul.f32 %v936, %v937
    %v939 = vsub.f32 1.0, %v938
    %v940 = vmul.f32 %v937, %v939
    %v941 = vadd.f32 %v937, %v940
    %vm942 = vweird.f32 %v936
    %vm943 = vweird.f32 %v937
    %vm944 = vmor %vm942, %vm943
    %v945 = vsel %vm944, %v937, %v941
    %v946 = vand.u32 2147483647, %v936
    %vm947 = vcmp.eq.f32.partialorder %v946, 8.507059e+37
    %v948 = vand.u32 %v936, 2147483648
    %v949 = vor.u32 1.1754944e-38, %v948
    %v950 = vsel %vm947, %v949, %v945
    %v951 = vmul.f32 %v933, %v950
    %s952 = scalar_lea.vmem [#allocation10], 24
    %953 = vst.msk [vmem:[%s952] sm:$0xff] %vm388, %v951
    %v955 = vsel %vm388, %v951, 0
    %957 = vmatpush.msra.mxu0 0.0
    %958 = vmatpush.msra.mxu0 0.0
    %959 = vmatpush.msra.mxu0 0.0
    %960 = vmatpush.msra.mxu0 0.0
    %961 = vmatpush.msra.mxu0 0.0
    %962 = vmatpush.msra.mxu0 0.0
    %963 = vmatpush.msra.mxu0 0.0
    %964 = vmatpush.msra.mxu0 0.0
    %965 = vmatpush.msra.mxu0 0.0
    %966 = vmatpush.msra.mxu0 0.0
    %967 = vmatpush.msra.mxu0 0.0
    %968 = vmatpush.msra.mxu0 0.0
    %969 = vmatpush.msra.mxu0 0.0
    %970 = vmatpush.msra.mxu0 0.0
    %971 = vmatpush.msra.mxu0 0.0
    %972 = vmatpush.msra.mxu0 %v900
    %973 = vmatmul.f32.gmra.mxu0 %v955
    %v974 = vpop.f32.mrf.mxu0
    %v975 = vadd.f32 0.0, %v974
    %976 = vdwg.mxu0
    %v977 = vld [vmem:[%s604] sm:$0xff]
    %v978 = vld [vmem:[%s604 + $0x8] sm:$0xff]
    %v980 = vsel %vm361, %v975, 0
    %982 = vmatpush.msra.mxu0 0.0
    %983 = vmatpush.msra.mxu0 0.0
    %984 = vmatpush.msra.mxu0 0.0
    %985 = vmatpush.msra.mxu0 0.0
    %986 = vmatpush.msra.mxu0 0.0
    %987 = vmatpush.msra.mxu0 0.0
    %988 = vmatpush.msra.mxu0 0.0
    %989 = vmatpush.msra.mxu0 0.0
    %990 = vmatpush.msra.mxu0 0.0
    %991 = vmatpush.msra.mxu0 0.0
    %992 = vmatpush.msra.mxu0 0.0
    %993 = vmatpush.msra.mxu0 0.0
    %994 = vmatpush.msra.mxu0 0.0
    %995 = vmatpush.msra.mxu0 0.0
    %996 = vmatpush.msra.mxu0 %v978
    %997 = vmatpush.msra.mxu0 %v977
    %998 = vmatmul.f32.gmra.mxu0 %v980
    %v999 = vpop.f32.mrf.mxu0
    %v1000 = vadd.f32 0.0, %v999
    %1001 = vdwg.mxu0
    %v1003 = vsel %vm361, %v814, 0
    %1005 = vmatpush.msra.mxu0 0.0
    %1006 = vmatpush.msra.mxu0 0.0
    %1007 = vmatpush.msra.mxu0 0.0
    %1008 = vmatpush.msra.mxu0 0.0
    %1009 = vmatpush.msra.mxu0 0.0
    %1010 = vmatpush.msra.mxu0 0.0
    %1011 = vmatpush.msra.mxu0 0.0
    %1012 = vmatpush.msra.mxu0 0.0
    %1013 = vmatpush.msra.mxu0 0.0
    %1014 = vmatpush.msra.mxu0 0.0
    %1015 = vmatpush.msra.mxu0 0.0
    %1016 = vmatpush.msra.mxu0 0.0
    %1017 = vmatpush.msra.mxu0 0.0
    %1018 = vmatpush.msra.mxu0 0.0
    %1019 = vmatpush.msra.mxu0 %v817
    %1020 = vmatpush.msra.mxu0 %v816
    %1021 = vmatmul.f32.gmra.mxu0 %v1003
    %v1022 = vpop.f32.mrf.mxu0
    %v1023 = vadd.f32 %v1000, %v1022
    %1024 = vdwg.mxu0
    %v1025 = vld [vmem:[%s27] sm:$0x1]
    %v1027 = vperm.slane %v1025, 0
    %v1029 = vadd.f32 %v651, %v1027
    %v1030 = vadd.f32 %v1023, %v1027
    %v1031 = vadd.f32 %v1029, %v268
    %v1032 = vadd.f32 %v1030, %v269
    %v1033 = vld [vmem:[%s29] sm:$0x1]
    %v1034 = vld [vmem:[%s31] sm:$0x1]
    %v1035 = vsel %vm208, %v1031, 0.0
    %1036 = vadd.xlane.f32.xlu0 %v1035
    %v1037 = vpop.xlane.xlu0 %1036
    %v1038 = vsel %vm208, %v1032, 0.0
    %1039 = vadd.xlane.f32.xlu0 %v1038
    %v1040 = vpop.xlane.xlu0 %1039
    %v1041 = vmul.f32 %v1037, %v221
    %v1042 = vmul.f32 %v1040, %v221
    %v1043 = vsub.f32 %v1031, %v1041
    %v1044 = vsub.f32 %v1032, %v1042
    %v1045 = vmul.f32 %v1043, %v1043
    %v1046 = vmul.f32 %v1044, %v1044
    %v1047 = vsel %vm208, %v1045, 0.0
    %1048 = vadd.xlane.f32.xlu0 %v1047
    %v1049 = vpop.xlane.xlu0 %1048
    %v1050 = vsel %vm208, %v1046, 0.0
    %1051 = vadd.xlane.f32.xlu0 %v1050
    %v1052 = vpop.xlane.xlu0 %1051
    %v1053 = vmul.f32 %v1049, %v221
    %v1054 = vmul.f32 %v1052, %v221
    %v1055 = vadd.f32 %v1053, 1e-12
    %v1056 = vadd.f32 %v1054, 1e-12
    %v1057 = vrsqrt.pop %v1055
    %v1058 = vmul.f32 %v1057, %v1055
    %v1059 = vmul.f32 %v1058, %v1057
    %v1060 = vmul.f32 0.5, %v1059
    %v1061 = vsub.f32 1.5, %v1060
    %v1062 = vmul.f32 %v1057, %v1061
    %vm1063 = vweird.f32 %v1055
    %vm1064 = vweird.f32 %v1057
    %vm1065 = vmor %vm1063, %vm1064
    %v1066 = vsel %vm1065, %v1057, %v1062
    %v1067 = vrsqrt.pop %v1056
    %v1068 = vmul.f32 %v1067, %v1056
    %v1069 = vmul.f32 %v1068, %v1067
    %v1070 = vmul.f32 0.5, %v1069
    %v1071 = vsub.f32 1.5, %v1070
    %v1072 = vmul.f32 %v1067, %v1071
    %vm1073 = vweird.f32 %v1056
    %vm1074 = vweird.f32 %v1067
    %vm1075 = vmor %vm1073, %vm1074
    %v1076 = vsel %vm1075, %v1067, %v1072
    %v1077 = vmul.f32 %v1043, %v1066
    %v1078 = vmul.f32 %v1044, %v1076
    %v1080 = vperm.slane %v1033, 0
    %v1082 = vmul.f32 %v1077, %v1080
    %v1083 = vmul.f32 %v1078, %v1080
    %v1085 = vperm.slane %v1034, 0
    %v1087 = vadd.f32 %v1082, %v1085
    %v1088 = vadd.f32 %v1083, %v1085
    %v1089 = vld [vmem:[%s33] sm:$0xff]
    %v1090 = vld [vmem:[%s33 + $0x8] sm:$0xff]
    %v1091 = vld [vmem:[%s33 + $0x10] sm:$0xff]
    %v1092 = vld [vmem:[%s33 + $0x18] sm:$0xff]
    %v1093 = vld [vmem:[%s35] sm:$0x1]
    %v1095 = vperm.slane %v1093, 0
    %v1098 = vsel %vm208, %v1087, 0
    %v1101 = vsel %vm208, %v1088, 0
    %1103 = vmatpush.msra.mxu0 0.0
    %1104 = vmatpush.msra.mxu0 0.0
    %1105 = vmatpush.msra.mxu0 0.0
    %1106 = vmatpush.msra.mxu0 0.0
    %1107 = vmatpush.msra.mxu0 0.0
    %1108 = vmatpush.msra.mxu0 0.0
    %1109 = vmatpush.msra.mxu0 0.0
    %1110 = vmatpush.msra.mxu0 0.0
    %1111 = vmatpush.msra.mxu0 0.0
    %1112 = vmatpush.msra.mxu0 0.0
    %1113 = vmatpush.msra.mxu0 0.0
    %1114 = vmatpush.msra.mxu0 0.0
    %1115 = vmatpush.msra.mxu0 %v1092
    %1116 = vmatpush.msra.mxu0 %v1091
    %1117 = vmatpush.msra.mxu0 %v1090
    %1118 = vmatpush.msra.mxu0 %v1089
    %1119 = vmatmul.f32.gmra.mxu0 %v1098
    %v1120 = vpop.f32.mrf.mxu0
    %v1121 = vadd.f32 %v1095, %v1120
    %1122 = vmatmul.f32.gmra.mxu0 %v1101
    %v1123 = vpop.f32.mrf.mxu0
    %v1124 = vadd.f32 %v1095, %v1123
    %1125 = vdwg.mxu0
    %v1126 = vmul.f32 %v1121, %v1121
    %v1127 = vmul.f32 %v1124, %v1124
    %v1128 = vmul.f32 %v1121, %v1126
    %v1129 = vmul.f32 %v1124, %v1127
    %v1130 = vmul.f32 %v1128, 0.044715
    %v1131 = vmul.f32 %v1129, 0.044715
    %v1132 = vadd.f32 %v1121, %v1130
    %v1133 = vadd.f32 %v1124, %v1131
    %v1134 = vmul.f32 %v1132, 0.7978846
    %v1135 = vmul.f32 %v1133, 0.7978846
    %v1136 = vtanh.pop %v1134
    %v1137 = vtanh.pop %v1135
    %v1138 = vadd.f32 %v1136, 1.0
    %v1139 = vadd.f32 %v1137, 1.0
    %v1140 = vmul.f32 %v1138, 0.5
    %v1141 = vmul.f32 %v1139, 0.5
    %v1142 = vmul.f32 %v1121, %v1140
    %v1143 = vmul.f32 %v1124, %v1141
    %v1144 = vld [vmem:[%s37] sm:$0xff]
    %v1145 = vld [vmem:[%s37 + $0x8] sm:$0xff]
    %v1146 = vld [vmem:[%s37 + $0x10] sm:$0xff]
    %v1147 = vld [vmem:[%s37 + $0x18] sm:$0xff]
    %v1148 = vld [vmem:[%s37 + $0x20] sm:$0xff]
    %v1149 = vld [vmem:[%s37 + $0x28] sm:$0xff]
    %v1150 = vld [vmem:[%s37 + $0x30] sm:$0xff]
    %v1151 = vld [vmem:[%s37 + $0x38] sm:$0xff]
    %v1152 = vld [vmem:[%s39] sm:$0x1]
    %v1154 = vperm.slane %v1152, 0
    %vm1156 = vcmask 523264
    %v1158 = vsel %vm1156, %v1142, 0
    %v1161 = vsel %vm1156, %v1143, 0
    %1163 = vmatpush.msra.mxu0 0.0
    %1164 = vmatpush.msra.mxu0 0.0
    %1165 = vmatpush.msra.mxu0 0.0
    %1166 = vmatpush.msra.mxu0 0.0
    %1167 = vmatpush.msra.mxu0 0.0
    %1168 = vmatpush.msra.mxu0 0.0
    %1169 = vmatpush.msra.mxu0 0.0
    %1170 = vmatpush.msra.mxu0 0.0
    %1171 = vmatpush.msra.mxu0 %v1151
    %1172 = vmatpush.msra.mxu0 %v1150
    %1173 = vmatpush.msra.mxu0 %v1149
    %1174 = vmatpush.msra.mxu0 %v1148
    %1175 = vmatpush.msra.mxu0 %v1147
    %1176 = vmatpush.msra.mxu0 %v1146
    %1177 = vmatpush.msra.mxu0 %v1145
    %1178 = vmatpush.msra.mxu0 %v1144
    %1179 = vmatmul.f32.gmra.mxu0 %v1158
    %v1180 = vpop.f32.mrf.mxu0
    %v1181 = vadd.f32 %v1154, %v1180
    %1182 = vmatmul.f32.gmra.mxu0 %v1161
    %v1183 = vpop.f32.mrf.mxu0
    %v1184 = vadd.f32 %v1154, %v1183
    %1185 = vdwg.mxu0
    %v1186 = vadd.f32 %v1181, %v1087
    %v1187 = vadd.f32 %v1184, %v1088
    %v1188 = vld [vmem:[%s41] sm:$0x1]
    %v1189 = vld [vmem:[%s43] sm:$0x1]
    %v1190 = vsel %vm208, %v1186, 0.0
    %1191 = vadd.xlane.f32.xlu0 %v1190
    %v1192 = vpop.xlane.xlu0 %1191
    %v1193 = vsel %vm208, %v1187, 0.0
    %1194 = vadd.xlane.f32.xlu0 %v1193
    %v1195 = vpop.xlane.xlu0 %1194
    %v1196 = vmul.f32 %v1192, %v221
    %v1197 = vmul.f32 %v1195, %v221
    %v1198 = vsub.f32 %v1186, %v1196
    %v1199 = vsub.f32 %v1187, %v1197
    %v1200 = vmul.f32 %v1198, %v1198
    %v1201 = vmul.f32 %v1199, %v1199
    %v1202 = vsel %vm208, %v1200, 0.0
    %1203 = vadd.xlane.f32.xlu0 %v1202
    %v1204 = vpop.xlane.xlu0 %1203
    %v1205 = vsel %vm208, %v1201, 0.0
    %1206 = vadd.xlane.f32.xlu0 %v1205
    %v1207 = vpop.xlane.xlu0 %1206
    %v1208 = vmul.f32 %v1204, %v221
    %v1209 = vmul.f32 %v1207, %v221
    %v1210 = vadd.f32 %v1208, 1e-12
    %v1211 = vadd.f32 %v1209, 1e-12
    %v1212 = vrsqrt.pop %v1210
    %v1213 = vmul.f32 %v1212, %v1210
    %v1214 = vmul.f32 %v1213, %v1212
    %v1215 = vmul.f32 0.5, %v1214
    %v1216 = vsub.f32 1.5, %v1215
    %v1217 = vmul.f32 %v1212, %v1216
    %vm1218 = vweird.f32 %v1210
    %vm1219 = vweird.f32 %v1212
    %vm1220 = vmor %vm1218, %vm1219
    %v1221 = vsel %vm1220, %v1212, %v1217
    %v1222 = vrsqrt.pop %v1211
    %v1223 = vmul.f32 %v1222, %v1211
    %v1224 = vmul.f32 %v1223, %v1222
    %v1225 = vmul.f32 0.5, %v1224
    %v1226 = vsub.f32 1.5, %v1225
    %v1227 = vmul.f32 %v1222, %v1226
    %vm1228 = vweird.f32 %v1211
    %vm1229 = vweird.f32 %v1222
    %vm1230 = vmor %vm1228, %vm1229
    %v1231 = vsel %vm1230, %v1222, %v1227
    %v1232 = vmul.f32 %v1198, %v1221
    %v1233 = vmul.f32 %v1199, %v1231
    %v1235 = vperm.slane %v1188, 0
    %v1237 = vmul.f32 %v1232, %v1235
    %v1238 = vmul.f32 %v1233, %v1235
    %v1240 = vperm.slane %v1189, 0
    %v1242 = vadd.f32 %v1237, %v1240
    %v1243 = vadd.f32 %v1238, %v1240
    %s1244 = scalar_lea.vmem %s13, 64
    %v1245 = vld [vmem:[%s1244] sm:$0xff]
    %v1246 = vld [vmem:[%s1244 + $0x8] sm:$0xff]
    %v1247 = vld [vmem:[%s1244 + $0x10] sm:$0xff]
    %v1248 = vld [vmem:[%s1244 + $0x18] sm:$0xff]
    %s1249 = scalar_lea.vmem %s15, 2
    %v1250 = vld [vmem:[%s1249] sm:$0x1]
    %v1252 = vperm.slane %v1250, 0
    %v1255 = vsel %vm208, %v1242, 0
    %1257 = vmatpush.msra.mxu0 0.0
    %1258 = vmatpush.msra.mxu0 0.0
    %1259 = vmatpush.msra.mxu0 0.0
    %1260 = vmatpush.msra.mxu0 0.0
    %1261 = vmatpush.msra.mxu0 0.0
    %1262 = vmatpush.msra.mxu0 0.0
    %1263 = vmatpush.msra.mxu0 0.0
    %1264 = vmatpush.msra.mxu0 0.0
    %1265 = vmatpush.msra.mxu0 0.0
    %1266 = vmatpush.msra.mxu0 0.0
    %1267 = vmatpush.msra.mxu0 0.0
    %1268 = vmatpush.msra.mxu0 0.0
    %1269 = vmatpush.msra.mxu0 %v1248
    %1270 = vmatpush.msra.mxu0 %v1247
    %1271 = vmatpush.msra.mxu0 %v1246
    %1272 = vmatpush.msra.mxu0 %v1245
    %1273 = vmatmul.f32.gmra.mxu0 %v1255
    %v1274 = vpop.f32.mrf.mxu0
    %v1275 = vadd.f32 %v1252, %v1274
    %1276 = vdwg.mxu0
    %s1277 = scalar_lea.vmem %s17, 64
    %v1278 = vld [vmem:[%s1277] sm:$0xff]
    %v1279 = vld [vmem:[%s1277 + $0x8] sm:$0xff]
    %v1280 = vld [vmem:[%s1277 + $0x10] sm:$0xff]
    %v1281 = vld [vmem:[%s1277 + $0x18] sm:$0xff]
    %s1282 = scalar_lea.vmem %s19, 2
    %v1283 = vld [vmem:[%s1282] sm:$0x1]
    %v1285 = vperm.slane %v1283, 0
    %1287 = vmatpush.msra.mxu0 0.0
    %1288 = vmatpush.msra.mxu0 0.0
    %1289 = vmatpush.msra.mxu0 0.0
    %1290 = vmatpush.msra.mxu0 0.0
    %1291 = vmatpush.msra.mxu0 0.0
    %1292 = vmatpush.msra.mxu0 0.0
    %1293 = vmatpush.msra.mxu0 0.0
    %1294 = vmatpush.msra.mxu0 0.0
    %1295 = vmatpush.msra.mxu0 0.0
    %1296 = vmatpush.msra.mxu0 0.0
    %1297 = vmatpush.msra.mxu0 0.0
    %1298 = vmatpush.msra.mxu0 0.0
    %1299 = vmatpush.msra.mxu0 %v1281
    %1300 = vmatpush.msra.mxu0 %v1280
    %1301 = vmatpush.msra.mxu0 %v1279
    %1302 = vmatpush.msra.mxu0 %v1278
    %1303 = vmatmul.f32.gmra.mxu0 %v1255
    %v1304 = vpop.f32.mrf.mxu0
    %v1305 = vadd.f32 %v1285, %v1304
    %1306 = vdwg.mxu0
    %s1307 = scalar_lea.vmem %s21, 64
    %v1308 = vld [vmem:[%s1307] sm:$0xff]
    %v1309 = vld [vmem:[%s1307 + $0x8] sm:$0xff]
    %v1310 = vld [vmem:[%s1307 + $0x10] sm:$0xff]
    %v1311 = vld [vmem:[%s1307 + $0x18] sm:$0xff]
    %s1312 = scalar_lea.vmem %s23, 2
    %v1313 = vld [vmem:[%s1312] sm:$0x1]
    %v1315 = vperm.slane %v1313, 0
    %1317 = vmatpush.msra.mxu0 0.0
    %1318 = vmatpush.msra.mxu0 0.0
    %1319 = vmatpush.msra.mxu0 0.0
    %1320 = vmatpush.msra.mxu0 0.0
    %1321 = vmatpush.msra.mxu0 0.0
    %1322 = vmatpush.msra.mxu0 0.0
    %1323 = vmatpush.msra.mxu0 0.0
    %1324 = vmatpush.msra.mxu0 0.0
    %1325 = vmatpush.msra.mxu0 0.0
    %1326 = vmatpush.msra.mxu0 0.0
    %1327 = vmatpush.msra.mxu0 0.0
    %1328 = vmatpush.msra.mxu0 0.0
    %1329 = vmatpush.msra.mxu0 %v1311
    %1330 = vmatpush.msra.mxu0 %v1310
    %1331 = vmatpush.msra.mxu0 %v1309
    %1332 = vmatpush.msra.mxu0 %v1308
    %1333 = vmatmul.f32.gmra.mxu0 %v1255
    %v1334 = vpop.f32.mrf.mxu0
    %v1335 = vadd.f32 %v1315, %v1334
    %1336 = vdwg.mxu0
    %v1338 = vsel %vm361, %v1275, 0
    %v1341 = vsel %vm361, %v1305, 0
    %1343 = vmatpush.xpose.msra.mxu0 0.0
    %1344 = vmatpush.xpose.msra.mxu0 0.0
    %1345 = vmatpush.xpose.msra.mxu0 0.0
    %1346 = vmatpush.xpose.msra.mxu0 0.0
    %1347 = vmatpush.xpose.msra.mxu0 0.0
    %1348 = vmatpush.xpose.msra.mxu0 0.0
    %1349 = vmatpush.xpose.msra.mxu0 0.0
    %1350 = vmatpush.xpose.msra.mxu0 0.0
    %1351 = vmatpush.xpose.msra.mxu0 0.0
    %1352 = vmatpush.xpose.msra.mxu0 0.0
    %1353 = vmatpush.xpose.msra.mxu0 0.0
    %1354 = vmatpush.xpose.msra.mxu0 0.0
    %1355 = vmatpush.xpose.msra.mxu0 0.0
    %1356 = vmatpush.xpose.msra.mxu0 0.0
    %1357 = vmatpush.xpose.msra.mxu0 0.0
    %1358 = vmatpush.xpose.msra.mxu0 %v1341
    %1359 = vmatmul.f32.gmra.mxu0 %v1338
    %v1360 = vpop.f32.mrf.mxu0
    %v1361 = vadd.f32 %v360, %v1360
    %1362 = vdwg.mxu0
    %v1363 = vsel %vm388, %v1361, -inf
    %1364 = vmax.xlane.f32.xlu0 %v1363
    %v1365 = vpop.xlane.xlu0 %1364
    %v1366 = vsub.f32 %v1361, %v1365
    %v1367 = vmul.f32 %v1366, 1.442695
    %v1368 = vpow.pop %v1367
    %v1369 = vsel %vm388, %v1368, 0.0
    %1370 = vadd.xlane.f32.xlu0 %v1369
    %v1371 = vpop.xlane.xlu0 %1370
    %v1372 = vrcp.pop %v1371
    %v1373 = vmul.f32 %v1371, %v1372
    %v1374 = vsub.f32 1.0, %v1373
    %v1375 = vmul.f32 %v1372, %v1374
    %v1376 = vadd.f32 %v1372, %v1375
    %vm1377 = vweird.f32 %v1371
    %vm1378 = vweird.f32 %v1372
    %vm1379 = vmor %vm1377, %vm1378
    %v1380 = vsel %vm1379, %v1372, %v1376
    %v1381 = vand.u32 2147483647, %v1371
    %vm1382 = vcmp.eq.f32.partialorder %v1381, 8.507059e+37
    %v1383 = vand.u32 %v1371, 2147483648
    %v1384 = vor.u32 1.1754944e-38, %v1383
    %v1385 = vsel %vm1382, %v1384, %v1380
    %v1386 = vmul.f32 %v1368, %v1385
    %1387 = vst.msk [vmem:[#allocation12] sm:$0xff] %vm388, %v1386
    %v1389 = vsel %vm388, %v1386, 0
    %1391 = vmatpush.msra.mxu0 0.0
    %1392 = vmatpush.msra.mxu0 0.0
    %1393 = vmatpush.msra.mxu0 0.0
    %1394 = vmatpush.msra.mxu0 0.0
    %1395 = vmatpush.msra.mxu0 0.0
    %1396 = vmatpush.msra.mxu0 0.0
    %1397 = vmatpush.msra.mxu0 0.0
    %1398 = vmatpush.msra.mxu0 0.0
    %1399 = vmatpush.msra.mxu0 0.0
    %1400 = vmatpush.msra.mxu0 0.0
    %1401 = vmatpush.msra.mxu0 0.0
    %1402 = vmatpush.msra.mxu0 0.0
    %1403 = vmatpush.msra.mxu0 0.0
    %1404 = vmatpush.msra.mxu0 0.0
    %1405 = vmatpush.msra.mxu0 0.0
    %1406 = vmatpush.msra.mxu0 %v1335
    %1407 = vmatmul.f32.gmra.mxu0 %v1389
    %v1408 = vpop.f32.mrf.mxu0
    %v1409 = vadd.f32 0.0, %v1408
    %1410 = vdwg.mxu0
    %s1411 = scalar_lea.vmem %s25, 32
    %v1412 = vld [vmem:[%s1411] sm:$0xff]
    %v1413 = vld [vmem:[%s1411 + $0x8] sm:$0xff]
    %s1414 = scalar_lea.vmem %s13, 96
    %v1415 = vld [vmem:[%s1414] sm:$0xff]
    %v1416 = vld [vmem:[%s1414 + $0x8] sm:$0xff]
    %v1417 = vld [vmem:[%s1414 + $0x10] sm:$0xff]
    %v1418 = vld [vmem:[%s1414 + $0x18] sm:$0xff]
    %s1419 = scalar_lea.vmem %s15, 3
    %v1420 = vld [vmem:[%s1419] sm:$0x1]
    %v1422 = vperm.slane %v1420, 0
    %1424 = vmatpush.msra.mxu0 0.0
    %1425 = vmatpush.msra.mxu0 0.0
    %1426 = vmatpush.msra.mxu0 0.0
    %1427 = vmatpush.msra.mxu0 0.0
    %1428 = vmatpush.msra.mxu0 0.0
    %1429 = vmatpush.msra.mxu0 0.0
    %1430 = vmatpush.msra.mxu0 0.0
    %1431 = vmatpush.msra.mxu0 0.0
    %1432 = vmatpush.msra.mxu0 0.0
    %1433 = vmatpush.msra.mxu0 0.0
    %1434 = vmatpush.msra.mxu0 0.0
    %1435 = vmatpush.msra.mxu0 0.0
    %1436 = vmatpush.msra.mxu0 %v1418
    %1437 = vmatpush.msra.mxu0 %v1417
    %1438 = vmatpush.msra.mxu0 %v1416
    %1439 = vmatpush.msra.mxu0 %v1415
    %1440 = vmatmul.f32.gmra.mxu0 %v1255
    %v1441 = vpop.f32.mrf.mxu0
    %v1442 = vadd.f32 %v1422, %v1441
    %1443 = vdwg.mxu0
    %s1444 = scalar_lea.vmem %s17, 96
    %v1445 = vld [vmem:[%s1444] sm:$0xff]
    %v1446 = vld [vmem:[%s1444 + $0x8] sm:$0xff]
    %v1447 = vld [vmem:[%s1444 + $0x10] sm:$0xff]
    %v1448 = vld [vmem:[%s1444 + $0x18] sm:$0xff]
    %s1449 = scalar_lea.vmem %s19, 3
    %v1450 = vld [vmem:[%s1449] sm:$0x1]
    %v1452 = vperm.slane %v1450, 0
    %1454 = vmatpush.msra.mxu0 0.0
    %1455 = vmatpush.msra.mxu0 0.0
    %1456 = vmatpush.msra.mxu0 0.0
    %1457 = vmatpush.msra.mxu0 0.0
    %1458 = vmatpush.msra.mxu0 0.0
    %1459 = vmatpush.msra.mxu0 0.0
    %1460 = vmatpush.msra.mxu0 0.0
    %1461 = vmatpush.msra.mxu0 0.0
    %1462 = vmatpush.msra.mxu0 0.0
    %1463 = vmatpush.msra.mxu0 0.0
    %1464 = vmatpush.msra.mxu0 0.0
    %1465 = vmatpush.msra.mxu0 0.0
    %1466 = vmatpush.msra.mxu0 %v1448
    %1467 = vmatpush.msra.mxu0 %v1447
    %1468 = vmatpush.msra.mxu0 %v1446
    %1469 = vmatpush.msra.mxu0 %v1445
    %1470 = vmatmul.f32.gmra.mxu0 %v1255
    %v1471 = vpop.f32.mrf.mxu0
    %v1472 = vadd.f32 %v1452, %v1471
    %1473 = vdwg.mxu0
    %s1474 = scalar_lea.vmem %s21, 96
    %v1475 = vld [vmem:[%s1474] sm:$0xff]
    %v1476 = vld [vmem:[%s1474 + $0x8] sm:$0xff]
    %v1477 = vld [vmem:[%s1474 + $0x10] sm:$0xff]
    %v1478 = vld [vmem:[%s1474 + $0x18] sm:$0xff]
    %s1479 = scalar_lea.vmem %s23, 3
    %v1480 = vld [vmem:[%s1479] sm:$0x1]
    %v1482 = vperm.slane %v1480, 0
    %1484 = vmatpush.msra.mxu0 0.0
    %1485 = vmatpush.msra.mxu0 0.0
    %1486 = vmatpush.msra.mxu0 0.0
    %1487 = vmatpush.msra.mxu0 0.0
    %1488 = vmatpush.msra.mxu0 0.0
    %1489 = vmatpush.msra.mxu0 0.0
    %1490 = vmatpush.msra.mxu0 0.0
    %1491 = vmatpush.msra.mxu0 0.0
    %1492 = vmatpush.msra.mxu0 0.0
    %1493 = vmatpush.msra.mxu0 0.0
    %1494 = vmatpush.msra.mxu0 0.0
    %1495 = vmatpush.msra.mxu0 0.0
    %1496 = vmatpush.msra.mxu0 %v1478
    %1497 = vmatpush.msra.mxu0 %v1477
    %1498 = vmatpush.msra.mxu0 %v1476
    %1499 = vmatpush.msra.mxu0 %v1475
    %1500 = vmatmul.f32.gmra.mxu0 %v1255
    %v1501 = vpop.f32.mrf.mxu0
    %v1502 = vadd.f32 %v1482, %v1501
    %1503 = vdwg.mxu0
    %v1505 = vsel %vm361, %v1442, 0
    %v1508 = vsel %vm361, %v1472, 0
    %1510 = vmatpush.xpose.msra.mxu0 0.0
    %1511 = vmatpush.xpose.msra.mxu0 0.0
    %1512 = vmatpush.xpose.msra.mxu0 0.0
    %1513 = vmatpush.xpose.msra.mxu0 0.0
    %1514 = vmatpush.xpose.msra.mxu0 0.0
    %1515 = vmatpush.xpose.msra.mxu0 0.0
    %1516 = vmatpush.xpose.msra.mxu0 0.0
    %1517 = vmatpush.xpose.msra.mxu0 0.0
    %1518 = vmatpush.xpose.msra.mxu0 0.0
    %1519 = vmatpush.xpose.msra.mxu0 0.0
    %1520 = vmatpush.xpose.msra.mxu0 0.0
    %1521 = vmatpush.xpose.msra.mxu0 0.0
    %1522 = vmatpush.xpose.msra.mxu0 0.0
    %1523 = vmatpush.xpose.msra.mxu0 0.0
    %1524 = vmatpush.xpose.msra.mxu0 0.0
    %1525 = vmatpush.xpose.msra.mxu0 %v1508
    %1526 = vmatmul.f32.gmra.mxu0 %v1505
    %v1527 = vpop.f32.mrf.mxu0
    %v1528 = vadd.f32 %v360, %v1527
    %1529 = vdwg.mxu0
    %v1530 = vsel %vm388, %v1528, -inf
    %1531 = vmax.xlane.f32.xlu0 %v1530
    %v1532 = vpop.xlane.xlu0 %1531
    %v1533 = vsub.f32 %v1528, %v1532
    %v1534 = vmul.f32 %v1533, 1.442695
    %v1535 = vpow.pop %v1534
    %v1536 = vsel %vm388, %v1535, 0.0
    %1537 = vadd.xlane.f32.xlu0 %v1536
    %v1538 = vpop.xlane.xlu0 %1537
    %v1539 = vrcp.pop %v1538
    %v1540 = vmul.f32 %v1538, %v1539
    %v1541 = vsub.f32 1.0, %v1540
    %v1542 = vmul.f32 %v1539, %v1541
    %v1543 = vadd.f32 %v1539, %v1542
    %vm1544 = vweird.f32 %v1538
    %vm1545 = vweird.f32 %v1539
    %vm1546 = vmor %vm1544, %vm1545
    %v1547 = vsel %vm1546, %v1539, %v1543
    %v1548 = vand.u32 2147483647, %v1538
    %vm1549 = vcmp.eq.f32.partialorder %v1548, 8.507059e+37
    %v1550 = vand.u32 %v1538, 2147483648
    %v1551 = vor.u32 1.1754944e-38, %v1550
    %v1552 = vsel %vm1549, %v1551, %v1547
    %v1553 = vmul.f32 %v1535, %v1552
    %s1554 = scalar_lea.vmem [#allocation12], 8
    %1555 = vst.msk [vmem:[%s1554] sm:$0xff] %vm388, %v1553
    %v1557 = vsel %vm388, %v1553, 0
    %1559 = vmatpush.msra.mxu0 0.0
    %1560 = vmatpush.msra.mxu0 0.0
    %1561 = vmatpush.msra.mxu0 0.0
    %1562 = vmatpush.msra.mxu0 0.0
    %1563 = vmatpush.msra.mxu0 0.0
    %1564 = vmatpush.msra.mxu0 0.0
    %1565 = vmatpush.msra.mxu0 0.0
    %1566 = vmatpush.msra.mxu0 0.0
    %1567 = vmatpush.msra.mxu0 0.0
    %1568 = vmatpush.msra.mxu0 0.0
    %1569 = vmatpush.msra.mxu0 0.0
    %1570 = vmatpush.msra.mxu0 0.0
    %1571 = vmatpush.msra.mxu0 0.0
    %1572 = vmatpush.msra.mxu0 0.0
    %1573 = vmatpush.msra.mxu0 0.0
    %1574 = vmatpush.msra.mxu0 %v1502
    %1575 = vmatmul.f32.gmra.mxu0 %v1557
    %v1576 = vpop.f32.mrf.mxu0
    %v1577 = vadd.f32 0.0, %v1576
    %1578 = vdwg.mxu0
    %s1579 = scalar_lea.vmem %s25, 48
    %v1580 = vld [vmem:[%s1579] sm:$0xff]
    %v1581 = vld [vmem:[%s1579 + $0x8] sm:$0xff]
    %v1583 = vsel %vm361, %v1577, 0
    %1585 = vmatpush.msra.mxu0 0.0
    %1586 = vmatpush.msra.mxu0 0.0
    %1587 = vmatpush.msra.mxu0 0.0
    %1588 = vmatpush.msra.mxu0 0.0
    %1589 = vmatpush.msra.mxu0 0.0
    %1590 = vmatpush.msra.mxu0 0.0
    %1591 = vmatpush.msra.mxu0 0.0
    %1592 = vmatpush.msra.mxu0 0.0
    %1593 = vmatpush.msra.mxu0 0.0
    %1594 = vmatpush.msra.mxu0 0.0
    %1595 = vmatpush.msra.mxu0 0.0
    %1596 = vmatpush.msra.mxu0 0.0
    %1597 = vmatpush.msra.mxu0 0.0
    %1598 = vmatpush.msra.mxu0 0.0
    %1599 = vmatpush.msra.mxu0 %v1581
    %1600 = vmatpush.msra.mxu0 %v1580
    %1601 = vmatmul.f32.gmra.mxu0 %v1583
    %v1602 = vpop.f32.mrf.mxu0
    %v1603 = vadd.f32 0.0, %v1602
    %1604 = vdwg.mxu0
    %v1606 = vsel %vm361, %v1409, 0
    %1608 = vmatpush.msra.mxu0 0.0
    %1609 = vmatpush.msra.mxu0 0.0
    %1610 = vmatpush.msra.mxu0 0.0
    %1611 = vmatpush.msra.mxu0 0.0
    %1612 = vmatpush.msra.mxu0 0.0
    %1613 = vmatpush.msra.mxu0 0.0
    %1614 = vmatpush.msra.mxu0 0.0
    %1615 = vmatpush.msra.mxu0 0.0
    %1616 = vmatpush.msra.mxu0 0.0
    %1617 = vmatpush.msra.mxu0 0.0
    %1618 = vmatpush.msra.mxu0 0.0
    %1619 = vmatpush.msra.mxu0 0.0
    %1620 = vmatpush.msra.mxu0 0.0
    %1621 = vmatpush.msra.mxu0 0.0
    %1622 = vmatpush.msra.mxu0 %v1413
    %1623 = vmatpush.msra.mxu0 %v1412
    %1624 = vmatmul.f32.gmra.mxu0 %v1606
    %v1625 = vpop.f32.mrf.mxu0
    %v1626 = vadd.f32 %v1603, %v1625
    %1627 = vdwg.mxu0
    %v1628 = vld [vmem:[%s1244] sm:$0xff]
    %v1629 = vld [vmem:[%s1244 + $0x8] sm:$0xff]
    %v1630 = vld [vmem:[%s1244 + $0x10] sm:$0xff]
    %v1631 = vld [vmem:[%s1244 + $0x18] sm:$0xff]
    %v1632 = vld [vmem:[%s1249] sm:$0x1]
    %v1634 = vperm.slane %v1632, 0
    %v1637 = vsel %vm208, %v1243, 0
    %1639 = vmatpush.msra.mxu0 0.0
    %1640 = vmatpush.msra.mxu0 0.0
    %1641 = vmatpush.msra.mxu0 0.0
    %1642 = vmatpush.msra.mxu0 0.0
    %1643 = vmatpush.msra.mxu0 0.0
    %1644 = vmatpush.msra.mxu0 0.0
    %1645 = vmatpush.msra.mxu0 0.0
    %1646 = vmatpush.msra.mxu0 0.0
    %1647 = vmatpush.msra.mxu0 0.0
    %1648 = vmatpush.msra.mxu0 0.0
    %1649 = vmatpush.msra.mxu0 0.0
    %1650 = vmatpush.msra.mxu0 0.0
    %1651 = vmatpush.msra.mxu0 %v1631
    %1652 = vmatpush.msra.mxu0 %v1630
    %1653 = vmatpush.msra.mxu0 %v1629
    %1654 = vmatpush.msra.mxu0 %v1628
    %1655 = vmatmul.f32.gmra.mxu0 %v1637
    %v1656 = vpop.f32.mrf.mxu0
    %v1657 = vadd.f32 %v1634, %v1656
    %1658 = vdwg.mxu0
    %v1659 = vld [vmem:[%s1277] sm:$0xff]
    %v1660 = vld [vmem:[%s1277 + $0x8] sm:$0xff]
    %v1661 = vld [vmem:[%s1277 + $0x10] sm:$0xff]
    %v1662 = vld [vmem:[%s1277 + $0x18] sm:$0xff]
    %v1663 = vld [vmem:[%s1282] sm:$0x1]
    %v1665 = vperm.slane %v1663, 0
    %1667 = vmatpush.msra.mxu0 0.0
    %1668 = vmatpush.msra.mxu0 0.0
    %1669 = vmatpush.msra.mxu0 0.0
    %1670 = vmatpush.msra.mxu0 0.0
    %1671 = vmatpush.msra.mxu0 0.0
    %1672 = vmatpush.msra.mxu0 0.0
    %1673 = vmatpush.msra.mxu0 0.0
    %1674 = vmatpush.msra.mxu0 0.0
    %1675 = vmatpush.msra.mxu0 0.0
    %1676 = vmatpush.msra.mxu0 0.0
    %1677 = vmatpush.msra.mxu0 0.0
    %1678 = vmatpush.msra.mxu0 0.0
    %1679 = vmatpush.msra.mxu0 %v1662
    %1680 = vmatpush.msra.mxu0 %v1661
    %1681 = vmatpush.msra.mxu0 %v1660
    %1682 = vmatpush.msra.mxu0 %v1659
    %1683 = vmatmul.f32.gmra.mxu0 %v1637
    %v1684 = vpop.f32.mrf.mxu0
    %v1685 = vadd.f32 %v1665, %v1684
    %1686 = vdwg.mxu0
    %v1687 = vld [vmem:[%s1307] sm:$0xff]
    %v1688 = vld [vmem:[%s1307 + $0x8] sm:$0xff]
    %v1689 = vld [vmem:[%s1307 + $0x10] sm:$0xff]
    %v1690 = vld [vmem:[%s1307 + $0x18] sm:$0xff]
    %v1691 = vld [vmem:[%s1312] sm:$0x1]
    %v1693 = vperm.slane %v1691, 0
    %1695 = vmatpush.msra.mxu0 0.0
    %1696 = vmatpush.msra.mxu0 0.0
    %1697 = vmatpush.msra.mxu0 0.0
    %1698 = vmatpush.msra.mxu0 0.0
    %1699 = vmatpush.msra.mxu0 0.0
    %1700 = vmatpush.msra.mxu0 0.0
    %1701 = vmatpush.msra.mxu0 0.0
    %1702 = vmatpush.msra.mxu0 0.0
    %1703 = vmatpush.msra.mxu0 0.0
    %1704 = vmatpush.msra.mxu0 0.0
    %1705 = vmatpush.msra.mxu0 0.0
    %1706 = vmatpush.msra.mxu0 0.0
    %1707 = vmatpush.msra.mxu0 %v1690
    %1708 = vmatpush.msra.mxu0 %v1689
    %1709 = vmatpush.msra.mxu0 %v1688
    %1710 = vmatpush.msra.mxu0 %v1687
    %1711 = vmatmul.f32.gmra.mxu0 %v1637
    %v1712 = vpop.f32.mrf.mxu0
    %v1713 = vadd.f32 %v1693, %v1712
    %1714 = vdwg.mxu0
    %v1716 = vsel %vm361, %v1657, 0
    %v1719 = vsel %vm361, %v1685, 0
    %1721 = vmatpush.xpose.msra.mxu0 0.0
    %1722 = vmatpush.xpose.msra.mxu0 0.0
    %1723 = vmatpush.xpose.msra.mxu0 0.0
    %1724 = vmatpush.xpose.msra.mxu0 0.0
    %1725 = vmatpush.xpose.msra.mxu0 0.0
    %1726 = vmatpush.xpose.msra.mxu0 0.0
    %1727 = vmatpush.xpose.msra.mxu0 0.0
    %1728 = vmatpush.xpose.msra.mxu0 0.0
    %1729 = vmatpush.xpose.msra.mxu0 0.0
    %1730 = vmatpush.xpose.msra.mxu0 0.0
    %1731 = vmatpush.xpose.msra.mxu0 0.0
    %1732 = vmatpush.xpose.msra.mxu0 0.0
    %1733 = vmatpush.xpose.msra.mxu0 0.0
    %1734 = vmatpush.xpose.msra.mxu0 0.0
    %1735 = vmatpush.xpose.msra.mxu0 0.0
    %1736 = vmatpush.xpose.msra.mxu0 %v1719
    %1737 = vmatmul.f32.gmra.mxu0 %v1716
    %v1738 = vpop.f32.mrf.mxu0
    %v1739 = vadd.f32 %v740, %v1738
    %1740 = vdwg.mxu0
    %v1741 = vsel %vm388, %v1739, -inf
    %1742 = vmax.xlane.f32.xlu0 %v1741
    %v1743 = vpop.xlane.xlu0 %1742
    %v1744 = vsub.f32 %v1739, %v1743
    %v1745 = vmul.f32 %v1744, 1.442695
    %v1746 = vpow.pop %v1745
    %v1747 = vsel %vm388, %v1746, 0.0
    %1748 = vadd.xlane.f32.xlu0 %v1747
    %v1749 = vpop.xlane.xlu0 %1748
    %v1750 = vrcp.pop %v1749
    %v1751 = vmul.f32 %v1749, %v1750
    %v1752 = vsub.f32 1.0, %v1751
    %v1753 = vmul.f32 %v1750, %v1752
    %v1754 = vadd.f32 %v1750, %v1753
    %vm1755 = vweird.f32 %v1749
    %vm1756 = vweird.f32 %v1750
    %vm1757 = vmor %vm1755, %vm1756
    %v1758 = vsel %vm1757, %v1750, %v1754
    %v1759 = vand.u32 2147483647, %v1749
    %vm1760 = vcmp.eq.f32.partialorder %v1759, 8.507059e+37
    %v1761 = vand.u32 %v1749, 2147483648
    %v1762 = vor.u32 1.1754944e-38, %v1761
    %v1763 = vsel %vm1760, %v1762, %v1758
    %v1764 = vmul.f32 %v1746, %v1763
    %s1765 = scalar_lea.vmem [#allocation12], 16
    %1766 = vst.msk [vmem:[%s1765] sm:$0xff] %vm388, %v1764
    %v1768 = vsel %vm388, %v1764, 0
    %1770 = vmatpush.msra.mxu0 0.0
    %1771 = vmatpush.msra.mxu0 0.0
    %1772 = vmatpush.msra.mxu0 0.0
    %1773 = vmatpush.msra.mxu0 0.0
    %1774 = vmatpush.msra.mxu0 0.0
    %1775 = vmatpush.msra.mxu0 0.0
    %1776 = vmatpush.msra.mxu0 0.0
    %1777 = vmatpush.msra.mxu0 0.0
    %1778 = vmatpush.msra.mxu0 0.0
    %1779 = vmatpush.msra.mxu0 0.0
    %1780 = vmatpush.msra.mxu0 0.0
    %1781 = vmatpush.msra.mxu0 0.0
    %1782 = vmatpush.msra.mxu0 0.0
    %1783 = vmatpush.msra.mxu0 0.0
    %1784 = vmatpush.msra.mxu0 0.0
    %1785 = vmatpush.msra.mxu0 %v1713
    %1786 = vmatmul.f32.gmra.mxu0 %v1768
    %v1787 = vpop.f32.mrf.mxu0
    %v1788 = vadd.f32 0.0, %v1787
    %1789 = vdwg.mxu0
    %v1790 = vld [vmem:[%s1411] sm:$0xff]
    %v1791 = vld [vmem:[%s1411 + $0x8] sm:$0xff]
    %v1792 = vld [vmem:[%s1414] sm:$0xff]
    %v1793 = vld [vmem:[%s1414 + $0x8] sm:$0xff]
    %v1794 = vld [vmem:[%s1414 + $0x10] sm:$0xff]
    %v1795 = vld [vmem:[%s1414 + $0x18] sm:$0xff]
    %v1796 = vld [vmem:[%s1419] sm:$0x1]
    %v1798 = vperm.slane %v1796, 0
    %1800 = vmatpush.msra.mxu0 0.0
    %1801 = vmatpush.msra.mxu0 0.0
    %1802 = vmatpush.msra.mxu0 0.0
    %1803 = vmatpush.msra.mxu0 0.0
    %1804 = vmatpush.msra.mxu0 0.0
    %1805 = vmatpush.msra.mxu0 0.0
    %1806 = vmatpush.msra.mxu0 0.0
    %1807 = vmatpush.msra.mxu0 0.0
    %1808 = vmatpush.msra.mxu0 0.0
    %1809 = vmatpush.msra.mxu0 0.0
    %1810 = vmatpush.msra.mxu0 0.0
    %1811 = vmatpush.msra.mxu0 0.0
    %1812 = vmatpush.msra.mxu0 %v1795
    %1813 = vmatpush.msra.mxu0 %v1794
    %1814 = vmatpush.msra.mxu0 %v1793
    %1815 = vmatpush.msra.mxu0 %v1792
    %1816 = vmatmul.f32.gmra.mxu0 %v1637
    %v1817 = vpop.f32.mrf.mxu0
    %v1818 = vadd.f32 %v1798, %v1817
    %1819 = vdwg.mxu0
    %v1820 = vld [vmem:[%s1444] sm:$0xff]
    %v1821 = vld [vmem:[%s1444 + $0x8] sm:$0xff]
    %v1822 = vld [vmem:[%s1444 + $0x10] sm:$0xff]
    %v1823 = vld [vmem:[%s1444 + $0x18] sm:$0xff]
    %v1824 = vld [vmem:[%s1449] sm:$0x1]
    %v1826 = vperm.slane %v1824, 0
    %1828 = vmatpush.msra.mxu0 0.0
    %1829 = vmatpush.msra.mxu0 0.0
    %1830 = vmatpush.msra.mxu0 0.0
    %1831 = vmatpush.msra.mxu0 0.0
    %1832 = vmatpush.msra.mxu0 0.0
    %1833 = vmatpush.msra.mxu0 0.0
    %1834 = vmatpush.msra.mxu0 0.0
    %1835 = vmatpush.msra.mxu0 0.0
    %1836 = vmatpush.msra.mxu0 0.0
    %1837 = vmatpush.msra.mxu0 0.0
    %1838 = vmatpush.msra.mxu0 0.0
    %1839 = vmatpush.msra.mxu0 0.0
    %1840 = vmatpush.msra.mxu0 %v1823
    %1841 = vmatpush.msra.mxu0 %v1822
    %1842 = vmatpush.msra.mxu0 %v1821
    %1843 = vmatpush.msra.mxu0 %v1820
    %1844 = vmatmul.f32.gmra.mxu0 %v1637
    %v1845 = vpop.f32.mrf.mxu0
    %v1846 = vadd.f32 %v1826, %v1845
    %1847 = vdwg.mxu0
    %v1848 = vld [vmem:[%s1474] sm:$0xff]
    %v1849 = vld [vmem:[%s1474 + $0x8] sm:$0xff]
    %v1850 = vld [vmem:[%s1474 + $0x10] sm:$0xff]
    %v1851 = vld [vmem:[%s1474 + $0x18] sm:$0xff]
    %v1852 = vld [vmem:[%s1479] sm:$0x1]
    %v1854 = vperm.slane %v1852, 0
    %1856 = vmatpush.msra.mxu0 0.0
    %1857 = vmatpush.msra.mxu0 0.0
    %1858 = vmatpush.msra.mxu0 0.0
    %1859 = vmatpush.msra.mxu0 0.0
    %1860 = vmatpush.msra.mxu0 0.0
    %1861 = vmatpush.msra.mxu0 0.0
    %1862 = vmatpush.msra.mxu0 0.0
    %1863 = vmatpush.msra.mxu0 0.0
    %1864 = vmatpush.msra.mxu0 0.0
    %1865 = vmatpush.msra.mxu0 0.0
    %1866 = vmatpush.msra.mxu0 0.0
    %1867 = vmatpush.msra.mxu0 0.0
    %1868 = vmatpush.msra.mxu0 %v1851
    %1869 = vmatpush.msra.mxu0 %v1850
    %1870 = vmatpush.msra.mxu0 %v1849
    %1871 = vmatpush.msra.mxu0 %v1848
    %1872 = vmatmul.f32.gmra.mxu0 %v1637
    %v1873 = vpop.f32.mrf.mxu0
    %v1874 = vadd.f32 %v1854, %v1873
    %1875 = vdwg.mxu0
    %v1877 = vsel %vm361, %v1818, 0
    %v1880 = vsel %vm361, %v1846, 0
    %1882 = vmatpush.xpose.msra.mxu0 0.0
    %1883 = vmatpush.xpose.msra.mxu0 0.0
    %1884 = vmatpush.xpose.msra.mxu0 0.0
    %1885 = vmatpush.xpose.msra.mxu0 0.0
    %1886 = vmatpush.xpose.msra.mxu0 0.0
    %1887 = vmatpush.xpose.msra.mxu0 0.0
    %1888 = vmatpush.xpose.msra.mxu0 0.0
    %1889 = vmatpush.xpose.msra.mxu0 0.0
    %1890 = vmatpush.xpose.msra.mxu0 0.0
    %1891 = vmatpush.xpose.msra.mxu0 0.0
    %1892 = vmatpush.xpose.msra.mxu0 0.0
    %1893 = vmatpush.xpose.msra.mxu0 0.0
    %1894 = vmatpush.xpose.msra.mxu0 0.0
    %1895 = vmatpush.xpose.msra.mxu0 0.0
    %1896 = vmatpush.xpose.msra.mxu0 0.0
    %1897 = vmatpush.xpose.msra.mxu0 %v1880
    %1898 = vmatmul.f32.gmra.mxu0 %v1877
    %v1899 = vpop.f32.mrf.mxu0
    %v1900 = vadd.f32 %v740, %v1899
    %1901 = vdwg.mxu0
    %v1902 = vsel %vm388, %v1900, -inf
    %1903 = vmax.xlane.f32.xlu0 %v1902
    %v1904 = vpop.xlane.xlu0 %1903
    %v1905 = vsub.f32 %v1900, %v1904
    %v1906 = vmul.f32 %v1905, 1.442695
    %v1907 = vpow.pop %v1906
    %v1908 = vsel %vm388, %v1907, 0.0
    %1909 = vadd.xlane.f32.xlu0 %v1908
    %v1910 = vpop.xlane.xlu0 %1909
    %v1911 = vrcp.pop %v1910
    %v1912 = vmul.f32 %v1910, %v1911
    %v1913 = vsub.f32 1.0, %v1912
    %v1914 = vmul.f32 %v1911, %v1913
    %v1915 = vadd.f32 %v1911, %v1914
    %vm1916 = vweird.f32 %v1910
    %vm1917 = vweird.f32 %v1911
    %vm1918 = vmor %vm1916, %vm1917
    %v1919 = vsel %vm1918, %v1911, %v1915
    %v1920 = vand.u32 2147483647, %v1910
    %vm1921 = vcmp.eq.f32.partialorder %v1920, 8.507059e+37
    %v1922 = vand.u32 %v1910, 2147483648
    %v1923 = vor.u32 1.1754944e-38, %v1922
    %v1924 = vsel %vm1921, %v1923, %v1919
    %v1925 = vmul.f32 %v1907, %v1924
    %s1926 = scalar_lea.vmem [#allocation12], 24
    %1927 = vst.msk [vmem:[%s1926] sm:$0xff] %vm388, %v1925
    %v1929 = vsel %vm388, %v1925, 0
    %1931 = vmatpush.msra.mxu0 0.0
    %1932 = vmatpush.msra.mxu0 0.0
    %1933 = vmatpush.msra.mxu0 0.0
    %1934 = vmatpush.msra.mxu0 0.0
    %1935 = vmatpush.msra.mxu0 0.0
    %1936 = vmatpush.msra.mxu0 0.0
    %1937 = vmatpush.msra.mxu0 0.0
    %1938 = vmatpush.msra.mxu0 0.0
    %1939 = vmatpush.msra.mxu0 0.0
    %1940 = vmatpush.msra.mxu0 0.0
    %1941 = vmatpush.msra.mxu0 0.0
    %1942 = vmatpush.msra.mxu0 0.0
    %1943 = vmatpush.msra.mxu0 0.0
    %1944 = vmatpush.msra.mxu0 0.0
    %1945 = vmatpush.msra.mxu0 0.0
    %1946 = vmatpush.msra.mxu0 %v1874
    %1947 = vmatmul.f32.gmra.mxu0 %v1929
    %v1948 = vpop.f32.mrf.mxu0
    %v1949 = vadd.f32 0.0, %v1948
    %1950 = vdwg.mxu0
    %v1951 = vld [vmem:[%s1579] sm:$0xff]
    %v1952 = vld [vmem:[%s1579 + $0x8] sm:$0xff]
    %v1954 = vsel %vm361, %v1949, 0
    %1956 = vmatpush.msra.mxu0 0.0
    %1957 = vmatpush.msra.mxu0 0.0
    %1958 = vmatpush.msra.mxu0 0.0
    %1959 = vmatpush.msra.mxu0 0.0
    %1960 = vmatpush.msra.mxu0 0.0
    %1961 = vmatpush.msra.mxu0 0.0
    %1962 = vmatpush.msra.mxu0 0.0
    %1963 = vmatpush.msra.mxu0 0.0
    %1964 = vmatpush.msra.mxu0 0.0
    %1965 = vmatpush.msra.mxu0 0.0
    %1966 = vmatpush.msra.mxu0 0.0
    %1967 = vmatpush.msra.mxu0 0.0
    %1968 = vmatpush.msra.mxu0 0.0
    %1969 = vmatpush.msra.mxu0 0.0
    %1970 = vmatpush.msra.mxu0 %v1952
    %1971 = vmatpush.msra.mxu0 %v1951
    %1972 = vmatmul.f32.gmra.mxu0 %v1954
    %v1973 = vpop.f32.mrf.mxu0
    %v1974 = vadd.f32 0.0, %v1973
    %1975 = vdwg.mxu0
    %v1977 = vsel %vm361, %v1788, 0
    %1979 = vmatpush.msra.mxu0 0.0
    %1980 = vmatpush.msra.mxu0 0.0
    %1981 = vmatpush.msra.mxu0 0.0
    %1982 = vmatpush.msra.mxu0 0.0
    %1983 = vmatpush.msra.mxu0 0.0
    %1984 = vmatpush.msra.mxu0 0.0
    %1985 = vmatpush.msra.mxu0 0.0
    %1986 = vmatpush.msra.mxu0 0.0
    %1987 = vmatpush.msra.mxu0 0.0
    %1988 = vmatpush.msra.mxu0 0.0
    %1989 = vmatpush.msra.mxu0 0.0
    %1990 = vmatpush.msra.mxu0 0.0
    %1991 = vmatpush.msra.mxu0 0.0
    %1992 = vmatpush.msra.mxu0 0.0
    %1993 = vmatpush.msra.mxu0 %v1791
    %1994 = vmatpush.msra.mxu0 %v1790
    %1995 = vmatmul.f32.gmra.mxu0 %v1977
    %v1996 = vpop.f32.mrf.mxu0
    %v1997 = vadd.f32 %v1974, %v1996
    %1998 = vdwg.mxu0
    %s1999 = scalar_lea.vmem %s27, 1
    %v2000 = vld [vmem:[%s1999] sm:$0x1]
    %v2002 = vperm.slane %v2000, 0
    %v2004 = vadd.f32 %v1626, %v2002
    %v2005 = vadd.f32 %v1997, %v2002
    %v2006 = vadd.f32 %v2004, %v1242
    %v2007 = vadd.f32 %v2005, %v1243
    %s2008 = scalar_lea.vmem %s29, 1
    %v2009 = vld [vmem:[%s2008] sm:$0x1]
    %s2010 = scalar_lea.vmem %s31, 1
    %v2011 = vld [vmem:[%s2010] sm:$0x1]
    %v2012 = vsel %vm208, %v2006, 0.0
    %2013 = vadd.xlane.f32.xlu0 %v2012
    %v2014 = vpop.xlane.xlu0 %2013
    %v2015 = vsel %vm208, %v2007, 0.0
    %2016 = vadd.xlane.f32.xlu0 %v2015
    %v2017 = vpop.xlane.xlu0 %2016
    %v2018 = vmul.f32 %v2014, %v221
    %v2019 = vmul.f32 %v2017, %v221
    %v2020 = vsub.f32 %v2006, %v2018
    %v2021 = vsub.f32 %v2007, %v2019
    %v2022 = vmul.f32 %v2020, %v2020
    %v2023 = vmul.f32 %v2021, %v2021
    %v2024 = vsel %vm208, %v2022, 0.0
    %2025 = vadd.xlane.f32.xlu0 %v2024
    %v2026 = vpop.xlane.xlu0 %2025
    %v2027 = vsel %vm208, %v2023, 0.0
    %2028 = vadd.xlane.f32.xlu0 %v2027
    %v2029 = vpop.xlane.xlu0 %2028
    %v2030 = vmul.f32 %v2026, %v221
    %v2031 = vmul.f32 %v2029, %v221
    %v2032 = vadd.f32 %v2030, 1e-12
    %v2033 = vadd.f32 %v2031, 1e-12
    %v2034 = vrsqrt.pop %v2032
    %v2035 = vmul.f32 %v2034, %v2032
    %v2036 = vmul.f32 %v2035, %v2034
    %v2037 = vmul.f32 0.5, %v2036
    %v2038 = vsub.f32 1.5, %v2037
    %v2039 = vmul.f32 %v2034, %v2038
    %vm2040 = vweird.f32 %v2032
    %vm2041 = vweird.f32 %v2034
    %vm2042 = vmor %vm2040, %vm2041
    %v2043 = vsel %vm2042, %v2034, %v2039
    %v2044 = vrsqrt.pop %v2033
    %v2045 = vmul.f32 %v2044, %v2033
    %v2046 = vmul.f32 %v2045, %v2044
    %v2047 = vmul.f32 0.5, %v2046
    %v2048 = vsub.f32 1.5, %v2047
    %v2049 = vmul.f32 %v2044, %v2048
    %vm2050 = vweird.f32 %v2033
    %vm2051 = vweird.f32 %v2044
    %vm2052 = vmor %vm2050, %vm2051
    %v2053 = vsel %vm2052, %v2044, %v2049
    %v2054 = vmul.f32 %v2020, %v2043
    %v2055 = vmul.f32 %v2021, %v2053
    %v2057 = vperm.slane %v2009, 0
    %v2059 = vmul.f32 %v2054, %v2057
    %v2060 = vmul.f32 %v2055, %v2057
    %v2062 = vperm.slane %v2011, 0
    %v2064 = vadd.f32 %v2059, %v2062
    %v2065 = vadd.f32 %v2060, %v2062
    %s2066 = scalar_lea.vmem %s33, 32
    %v2067 = vld [vmem:[%s2066] sm:$0xff]
    %v2068 = vld [vmem:[%s2066 + $0x8] sm:$0xff]
    %v2069 = vld [vmem:[%s2066 + $0x10] sm:$0xff]
    %v2070 = vld [vmem:[%s2066 + $0x18] sm:$0xff]
    %s2071 = scalar_lea.vmem %s35, 1
    %v2072 = vld [vmem:[%s2071] sm:$0x1]
    %v2074 = vperm.slane %v2072, 0
    %v2077 = vsel %vm208, %v2064, 0
    %v2080 = vsel %vm208, %v2065, 0
    %2082 = vmatpush.msra.mxu0 0.0
    %2083 = vmatpush.msra.mxu0 0.0
    %2084 = vmatpush.msra.mxu0 0.0
    %2085 = vmatpush.msra.mxu0 0.0
    %2086 = vmatpush.msra.mxu0 0.0
    %2087 = vmatpush.msra.mxu0 0.0
    %2088 = vmatpush.msra.mxu0 0.0
    %2089 = vmatpush.msra.mxu0 0.0
    %2090 = vmatpush.msra.mxu0 0.0
    %2091 = vmatpush.msra.mxu0 0.0
    %2092 = vmatpush.msra.mxu0 0.0
    %2093 = vmatpush.msra.mxu0 0.0
    %2094 = vmatpush.msra.mxu0 %v2070
    %2095 = vmatpush.msra.mxu0 %v2069
    %2096 = vmatpush.msra.mxu0 %v2068
    %2097 = vmatpush.msra.mxu0 %v2067
    %2098 = vmatmul.f32.gmra.mxu0 %v2077
    %v2099 = vpop.f32.mrf.mxu0
    %v2100 = vadd.f32 %v2074, %v2099
    %2101 = vmatmul.f32.gmra.mxu0 %v2080
    %v2102 = vpop.f32.mrf.mxu0
    %v2103 = vadd.f32 %v2074, %v2102
    %2104 = vdwg.mxu0
    %v2105 = vmul.f32 %v2100, %v2100
    %v2106 = vmul.f32 %v2103, %v2103
    %v2107 = vmul.f32 %v2100, %v2105
    %v2108 = vmul.f32 %v2103, %v2106
    %v2109 = vmul.f32 %v2107, 0.044715
    %v2110 = vmul.f32 %v2108, 0.044715
    %v2111 = vadd.f32 %v2100, %v2109
    %v2112 = vadd.f32 %v2103, %v2110
    %v2113 = vmul.f32 %v2111, 0.7978846
    %v2114 = vmul.f32 %v2112, 0.7978846
    %v2115 = vtanh.pop %v2113
    %v2116 = vtanh.pop %v2114
    %v2117 = vadd.f32 %v2115, 1.0
    %v2118 = vadd.f32 %v2116, 1.0
    %v2119 = vmul.f32 %v2117, 0.5
    %v2120 = vmul.f32 %v2118, 0.5
    %v2121 = vmul.f32 %v2100, %v2119
    %v2122 = vmul.f32 %v2103, %v2120
    %s2123 = scalar_lea.vmem %s37, 64
    %v2124 = vld [vmem:[%s2123] sm:$0xff]
    %v2125 = vld [vmem:[%s2123 + $0x8] sm:$0xff]
    %v2126 = vld [vmem:[%s2123 + $0x10] sm:$0xff]
    %v2127 = vld [vmem:[%s2123 + $0x18] sm:$0xff]
    %v2128 = vld [vmem:[%s2123 + $0x20] sm:$0xff]
    %v2129 = vld [vmem:[%s2123 + $0x28] sm:$0xff]
    %v2130 = vld [vmem:[%s2123 + $0x30] sm:$0xff]
    %v2131 = vld [vmem:[%s2123 + $0x38] sm:$0xff]
    %s2132 = scalar_lea.vmem %s39, 1
    %v2133 = vld [vmem:[%s2132] sm:$0x1]
    %v2135 = vperm.slane %v2133, 0
    %v2138 = vsel %vm1156, %v2121, 0
    %v2141 = vsel %vm1156, %v2122, 0
    %2143 = vmatpush.msra.mxu0 0.0
    %2144 = vmatpush.msra.mxu0 0.0
    %2145 = vmatpush.msra.mxu0 0.0
    %2146 = vmatpush.msra.mxu0 0.0
    %2147 = vmatpush.msra.mxu0 0.0
    %2148 = vmatpush.msra.mxu0 0.0
    %2149 = vmatpush.msra.mxu0 0.0
    %2150 = vmatpush.msra.mxu0 0.0
    %2151 = vmatpush.msra.mxu0 %v2131
    %2152 = vmatpush.msra.mxu0 %v2130
    %2153 = vmatpush.msra.mxu0 %v2129
    %2154 = vmatpush.msra.mxu0 %v2128
    %2155 = vmatpush.msra.mxu0 %v2127
    %2156 = vmatpush.msra.mxu0 %v2126
    %2157 = vmatpush.msra.mxu0 %v2125
    %2158 = vmatpush.msra.mxu0 %v2124
    %2159 = vmatmul.f32.gmra.mxu0 %v2138
    %v2160 = vpop.f32.mrf.mxu0
    %v2161 = vadd.f32 %v2135, %v2160
    %2162 = vmatmul.f32.gmra.mxu0 %v2141
    %v2163 = vpop.f32.mrf.mxu0
    %v2164 = vadd.f32 %v2135, %v2163
    %2165 = vdwg.mxu0
    %v2166 = vadd.f32 %v2161, %v2064
    %v2167 = vadd.f32 %v2164, %v2065
    %s2168 = scalar_lea.vmem %s41, 1
    %v2169 = vld [vmem:[%s2168] sm:$0x1]
    %s2170 = scalar_lea.vmem %s43, 1
    %v2171 = vld [vmem:[%s2170] sm:$0x1]
    %v2172 = vsel %vm208, %v2166, 0.0
    %2173 = vadd.xlane.f32.xlu0 %v2172
    %v2174 = vpop.xlane.xlu0 %2173
    %v2175 = vsel %vm208, %v2167, 0.0
    %2176 = vadd.xlane.f32.xlu0 %v2175
    %v2177 = vpop.xlane.xlu0 %2176
    %v2178 = vmul.f32 %v2174, %v221
    %v2179 = vmul.f32 %v2177, %v221
    %v2180 = vsub.f32 %v2166, %v2178
    %v2181 = vsub.f32 %v2167, %v2179
    %v2182 = vmul.f32 %v2180, %v2180
    %v2183 = vmul.f32 %v2181, %v2181
    %v2184 = vsel %vm208, %v2182, 0.0
    %2185 = vadd.xlane.f32.xlu0 %v2184
    %v2186 = vpop.xlane.xlu0 %2185
    %v2187 = vsel %vm208, %v2183, 0.0
    %2188 = vadd.xlane.f32.xlu0 %v2187
    %v2189 = vpop.xlane.xlu0 %2188
    %v2190 = vmul.f32 %v2186, %v221
    %v2191 = vmul.f32 %v2189, %v221
    %v2192 = vadd.f32 %v2190, 1e-12
    %v2193 = vadd.f32 %v2191, 1e-12
    %v2194 = vrsqrt.pop %v2192
    %v2195 = vmul.f32 %v2194, %v2192
    %v2196 = vmul.f32 %v2195, %v2194
    %v2197 = vmul.f32 0.5, %v2196
    %v2198 = vsub.f32 1.5, %v2197
    %v2199 = vmul.f32 %v2194, %v2198
    %vm2200 = vweird.f32 %v2192
    %vm2201 = vweird.f32 %v2194
    %vm2202 = vmor %vm2200, %vm2201
    %v2203 = vsel %vm2202, %v2194, %v2199
    %v2204 = vrsqrt.pop %v2193
    %v2205 = vmul.f32 %v2204, %v2193
    %v2206 = vmul.f32 %v2205, %v2204
    %v2207 = vmul.f32 0.5, %v2206
    %v2208 = vsub.f32 1.5, %v2207
    %v2209 = vmul.f32 %v2204, %v2208
    %vm2210 = vweird.f32 %v2193
    %vm2211 = vweird.f32 %v2204
    %vm2212 = vmor %vm2210, %vm2211
    %v2213 = vsel %vm2212, %v2204, %v2209
    %v2214 = vmul.f32 %v2180, %v2203
    %v2215 = vmul.f32 %v2181, %v2213
    %v2217 = vperm.slane %v2169, 0
    %v2219 = vmul.f32 %v2214, %v2217
    %v2220 = vmul.f32 %v2215, %v2217
    %v2222 = vperm.slane %v2171, 0
    %v2224 = vadd.f32 %v2219, %v2222
    %v2225 = vadd.f32 %v2220, %v2222
    %2226 = vst.msk [vmem:[#allocation6] sm:$0xff] %vm208, %v2224
    %s2227 = scalar_lea.vmem [#allocation6], 8
    %2228 = vst.msk [vmem:[%s2227] sm:$0xff] %vm208, %v2225
    %2229 = vst.msk [vmem:[#allocation2] sm:$0xff] %vm208, %v2224
    %2230 = vst.msk [vmem:[#allocation2 + $0x8] sm:$0xff] %vm208, %v2225
    %v2231 = vld [vmem:[#allocation2] ss:$8 sm:$0x3]
    %v2232 = vld [vmem:[%s45] sm:$0xff]
    %v2233 = vld [vmem:[%s45 + $0x8] sm:$0xff]
    %v2234 = vld [vmem:[%s45 + $0x10] sm:$0xff]
    %v2235 = vld [vmem:[%s45 + $0x18] sm:$0xff]
    %v2236 = vld [vmem:[%s47] sm:$0x1]
    %v2238 = vperm.slane %v2236, 0
    %v2241 = vsel %vm208, %v2231, 0
    %2243 = vmatpush.msra.mxu0 0.0
    %2244 = vmatpush.msra.mxu0 0.0
    %2245 = vmatpush.msra.mxu0 0.0
    %2246 = vmatpush.msra.mxu0 0.0
    %2247 = vmatpush.msra.mxu0 0.0
    %2248 = vmatpush.msra.mxu0 0.0
    %2249 = vmatpush.msra.mxu0 0.0
    %2250 = vmatpush.msra.mxu0 0.0
    %2251 = vmatpush.msra.mxu0 0.0
    %2252 = vmatpush.msra.mxu0 0.0
    %2253 = vmatpush.msra.mxu0 0.0
    %2254 = vmatpush.msra.mxu0 0.0
    %2255 = vmatpush.msra.mxu0 %v2235
    %2256 = vmatpush.msra.mxu0 %v2234
    %2257 = vmatpush.msra.mxu0 %v2233
    %2258 = vmatpush.msra.mxu0 %v2232
    %2259 = vmatmul.f32.gmra.mxu0 %v2241
    %v2260 = vpop.f32.mrf.mxu0
    %v2261 = vadd.f32 %v2238, %v2260
    %2262 = vdwg.mxu0
    %v2263 = vtanh.pop %v2261
    %vm2264 = vcmask 254976
    %2265 = vst.msk [vmem:[#allocation7] sm:$0x3] %vm2264, %v2263
    %v2266 = vld [vmem:[%s49] sm:$0xff]
    %v2267 = vld [vmem:[%s49 + $0x8] sm:$0xff]
    %v2268 = vld [vmem:[%s49 + $0x10] sm:$0xff]
    %v2269 = vld [vmem:[%s49 + $0x18] sm:$0xff]
    %v2270 = vld [vmem:[%s51] sm:$0x1]
    %v2272 = vperm.slane %v2270, 0
    %v2275 = vsel %vm208, %v2263, 0
    %2277 = vmatpush.msra.mxu0 0.0
    %2278 = vmatpush.msra.mxu0 0.0
    %2279 = vmatpush.msra.mxu0 0.0
    %2280 = vmatpush.msra.mxu0 0.0
    %2281 = vmatpush.msra.mxu0 0.0
    %2282 = vmatpush.msra.mxu0 0.0
    %2283 = vmatpush.msra.mxu0 0.0
    %2284 = vmatpush.msra.mxu0 0.0
    %2285 = vmatpush.msra.mxu0 0.0
    %2286 = vmatpush.msra.mxu0 0.0
    %2287 = vmatpush.msra.mxu0 0.0
    %2288 = vmatpush.msra.mxu0 0.0
    %2289 = vmatpush.msra.mxu0 %v2269
    %2290 = vmatpush.msra.mxu0 %v2268
    %2291 = vmatpush.msra.mxu0 %v2267
    %2292 = vmatpush.msra.mxu0 %v2266
    %2293 = vmatmul.f32.gmra.mxu0 %v2275
    %v2294 = vpop.f32.mrf.mxu0
    %v2295 = vadd.f32 %v2272, %v2294
    %2296 = vdwg.mxu0
    %vm2297 = vcmask 17408
    %2298 = vst.msk [vmem:[#allocation9] sm:$0x3] %vm2297, %v2295
    // Predicated region
    $region110: #{_lambda_.1} parent=1 // pred_check
      _
    $region111: #{_lambda_.1} parent=1 // pred_check_branch
      %2300 = sbr.rel (0) target = $region113
    $region112: #{_lambda_.1} parent=1 // pred_region
      %2302 = vsyncadd [#allocation4], 0
      %s2303 = sshll.u32 [#allocation6], 4
      %s2304 = int_to_ptr.vmem [resolvable:$true] %s2303
      %s2305 = sshll.u32 %s53, 4
      %s2306 = int_to_ptr.hbm [resolvable:$true] %s2305
      %2311 = dma.vmem_to_hbm [thread:$0]  %s2304, 256, %s2306, [#allocation4], 128, 128, 8
    $region113: #{_lambda_.1} parent=1 // pred_fallthru
      _
    // Predicated region
    $region114: #{_lambda_.1} parent=1 // pred_check
      _
    $region115: #{_lambda_.1} parent=1 // pred_check_branch
      %2313 = sbr.rel (0) target = $region117
    $region116: #{_lambda_.1} parent=1 // pred_region
      %2315 = vsyncadd [#allocation8], 0
      %s2317 = sshll.u32 [#allocation7], 4
      %s2318 = int_to_ptr.vmem [resolvable:$true] %s2317
      %s2319 = sshll.u32 %s55, 4
      %s2320 = int_to_ptr.hbm [resolvable:$true] %s2319
      %2322 = dma.vmem_to_hbm [thread:$0]  %s2318, 32, %s2320, [#allocation8]
    $region117: #{_lambda_.1} parent=1 // pred_fallthru
      _
    // Predicated region
    $region118: #{_lambda_.1} parent=1 // pred_check
      _
    $region119: #{_lambda_.1} parent=1 // pred_check_branch
      %2324 = sbr.rel (0) target = $region121
    $region120: #{_lambda_.1} parent=1 // pred_region
      %2326 = vsyncadd [#allocation8], 0
      %s2328 = sshll.u32 [#allocation9], 4
      %s2329 = int_to_ptr.vmem [resolvable:$true] %s2328
      %s2330 = sshll.u32 %s57, 4
      %s2331 = int_to_ptr.hbm [resolvable:$true] %s2330
      %2333 = dma.vmem_to_hbm [thread:$0]  %s2329, 32, %s2331, [#allocation8]
    $region121: #{_lambda_.1} parent=1 // pred_fallthru
      _
    // Predicated region
    $region122: #{_lambda_.1} parent=1 // pred_check
      _
    $region123: #{_lambda_.1} parent=1 // pred_check_branch
      %2335 = sbr.rel (0) target = $region125
    $region124: #{_lambda_.1} parent=1 // pred_region
      %2337 = vsyncadd [#allocation11], 0
      %s2338 = sshll.u32 [#allocation10], 4
      %s2339 = int_to_ptr.vmem [resolvable:$true] %s2338
      %s2340 = sshll.u32 %s59, 4
      %s2341 = int_to_ptr.hbm [resolvable:$true] %s2340
      %2346 = dma.vmem_to_hbm [thread:$0]  %s2339, 512, %s2341, [#allocation11], 128, 128, 8
    $region125: #{_lambda_.1} parent=1 // pred_fallthru
      _
    // Predicated region
    $region126: #{_lambda_.1} parent=1 // pred_check
      _
    $region127: #{_lambda_.1} parent=1 // pred_check_branch
      %2348 = sbr.rel (0) target = $region129
    $region128: #{_lambda_.1} parent=1 // pred_region
      %2350 = vsyncadd [#allocation11], 0
      %s2351 = sshll.u32 [#allocation12], 4
      %s2352 = int_to_ptr.vmem [resolvable:$true] %s2351
      %s2353 = sshll.u32 %s61, 4
      %s2354 = int_to_ptr.hbm [resolvable:$true] %s2353
      %2359 = dma.vmem_to_hbm [thread:$0]  %s2352, 512, %s2354, [#allocation11], 128, 128, 8
    $region129: #{_lambda_.1} parent=1 // pred_fallthru
      _
    // Predicated region
    $region130: #{_lambda_.1} parent=1 // pred_check
      _
    $region131: #{_lambda_.1} parent=1 // pred_check_branch
      %2361 = sbr.rel (0) target = $region133
    $region132: #{_lambda_.1} parent=1 // pred_region
      %2363 = dma.done [#allocation4], 256
    $region133: #{_lambda_.1} parent=1 // pred_fallthru
      _
    // Predicated region
    $region134: #{_lambda_.1} parent=1 // pred_check
      _
    $region135: #{_lambda_.1} parent=1 // pred_check_branch
      %2365 = sbr.rel (0) target = $region137
    $region136: #{_lambda_.1} parent=1 // pred_region
      %2367 = dma.done [#allocation8], 32
    $region137: #{_lambda_.1} parent=1 // pred_fallthru
      _
    // Predicated region
    $region138: #{_lambda_.1} parent=1 // pred_check
      _
    $region139: #{_lambda_.1} parent=1 // pred_check_branch
      %2369 = sbr.rel (0) target = $region141
    $region140: #{_lambda_.1} parent=1 // pred_region
      %2371 = dma.done [#allocation8], 32
    $region141: #{_lambda_.1} parent=1 // pred_fallthru
      _
    // Predicated region
    $region142: #{_lambda_.1} parent=1 // pred_check
      _
    $region143: #{_lambda_.1} parent=1 // pred_check_branch
      %2373 = sbr.rel (0) target = $region145
    $region144: #{_lambda_.1} parent=1 // pred_region
      %2375 = dma.done [#allocation11], 512
    $region145: #{_lambda_.1} parent=1 // pred_fallthru
      _
    // Predicated region
    $region146: #{_lambda_.1} parent=1 // pred_check
      _
    $region147: #{_lambda_.1} parent=1 // pred_check_branch
      %2377 = sbr.rel (0) target = $region149
    $region148: #{_lambda_.1} parent=1 // pred_region
      %2379 = dma.done [#allocation11], 512
    $region149: #{_lambda_.1} parent=1 // pred_fallthru
      _
    %2380 = vsyncpa [#allocation4], 1
    %2381 = vsyncpa [#allocation8], 1
    %2382 = vsyncpa [#allocation11], 1
    %2383 = vsyncpa [#allocation5], 1

</llo_original>
